<compile_context>
chip_gen: v7x
topology: tpu7x:2x2x1
jax: 0.10.0
libtpu: 0.0.40
codegen_flags: <defaults>
</compile_context>

<pallas_src>
import jax
import jax.numpy as jnp
from jax.experimental import pallas as pl
from jax.experimental.pallas import tpu as pltpu


_VMEM = pl.BlockSpec(memory_space=pltpu.MemorySpace.VMEM)
_LRELU_SLOPE = 0.2
_BN_EPS = 1e-5
_CHANNELS = [(3, 64), (64, 128), (128, 256), (256, 512), (512, 1024)]


# ----------------------------- Pallas kernels ------------------------------

def _leaky_relu(y):
    # one mul + one max (cheaper than mul + cmp + select)
    return jnp.maximum(y, _LRELU_SLOPE * y)


def conv0_kernel(x_ref, w_ref, b_ref, o_ref):
    """Layer 0: im2col matmul (depthwise folded into pointwise) + bias + LeakyReLU.

    x_ref: (M, 32)  bf16 im2col patches (27 real taps + 5 zero-pad columns)
    w_ref: (32, 64) bf16 folded weights  W[k*3+c, o] = wd[k, c] * wp[c, o]
    b_ref: (1, 64)  f32  folded bias     bd @ wp + bp
    """
    y = jnp.dot(x_ref[...], w_ref[...], preferred_element_type=jnp.float32)
    y = y + b_ref[...]
    o_ref[...] = _leaky_relu(y)


def _dsconv_bn_body(taps_ref, wd_ref, wp_ref, b_ref, gamma_ref, beta_ref):
    """Shared body: 9-tap depthwise MAC (VPU) + bf16 pointwise matmul (MXU) + bias
    + training-mode BatchNorm + LeakyReLU. Returns the (M, Cout) f32 activation."""
    # depthwise: init accumulator from tap 0 (bias already folded into b_ref)
    acc = taps_ref[0].astype(jnp.float32) * wd_ref[0]
    for k in range(1, 9):                       # static unroll
        acc = acc + taps_ref[k].astype(jnp.float32) * wd_ref[k]
    # pointwise 1x1 conv: bf16 MXU operands, f32 accumulation
    y = jnp.dot(acc.astype(jnp.bfloat16), wp_ref[...],
                preferred_element_type=jnp.float32) + b_ref[...]
    # BatchNorm (batch statistics over M = N*H*W) + LeakyReLU, fused before store
    mean = jnp.mean(y, axis=0, keepdims=True)
    d = y - mean
    var = jnp.mean(d * d, axis=0, keepdims=True)          # biased variance
    yn = d * jax.lax.rsqrt(var + _BN_EPS) * gamma_ref[...] + beta_ref[...]
    return _leaky_relu(yn)


def dsconv_bn_kernel(taps_ref, wd_ref, wp_ref, b_ref, gamma_ref, beta_ref, o_ref):
    """Layers 1..3: fused DSConv + BN + LeakyReLU."""
    o_ref[...] = _dsconv_bn_body(taps_ref, wd_ref, wp_ref, b_ref, gamma_ref, beta_ref)


def dsconv_bn_pool_head_kernel(taps_ref, wd_ref, wp_ref, b_ref, gamma_ref, beta_ref,
                               pool_ref, wh_ref, bh_ref, o_ref):
    """Layer 4 fully fused: DSConv + BN + LeakyReLU + AdaptiveAvgPool(1) + head 1x1 conv
    + sigmoid.  pool_ref is the (N, M) averaging matrix, wh/bh the head weights."""
    y = _dsconv_bn_body(taps_ref, wd_ref, wp_ref, b_ref, gamma_ref, beta_ref)  # (M, 1024)
    pooled = jnp.dot(pool_ref[...], y, preferred_element_type=jnp.float32)     # (N, 1024)
    z = jnp.dot(pooled, wh_ref[...], preferred_element_type=jnp.float32) + bh_ref[...]
    # sigmoid; exp overflow for very negative z yields 1/inf = 0, still in [0, 1]
    o_ref[...] = 1.0 / (1.0 + jnp.exp(-z))


# ------------------------------ pallas_call glue ----------------------------

def conv0(x_im2col, w, b):
    m = x_im2col.shape[0]
    cout = w.shape[1]
    return pl.pallas_call(
        conv0_kernel,
        out_shape=jax.ShapeDtypeStruct((m, cout), jnp.float32),
        in_specs=[_VMEM] * 3,
        out_specs=_VMEM,
    )(x_im2col, w, b)


def dsconv_bn(taps, wd, wp, b, gamma, beta):
    m = taps.shape[1]
    cout = wp.shape[1]
    return pl.pallas_call(
        dsconv_bn_kernel,
        out_shape=jax.ShapeDtypeStruct((m, cout), jnp.float32),
        in_specs=[_VMEM] * 6,
        out_specs=_VMEM,
    )(taps, wd, wp, b, gamma, beta)


def dsconv_bn_pool_head(taps, wd, wp, b, gamma, beta, pool, wh, bh):
    n = pool.shape[0]
    return pl.pallas_call(
        dsconv_bn_pool_head_kernel,
        out_shape=jax.ShapeDtypeStruct((n, 1), jnp.float32),
        in_specs=[_VMEM] * 9,
        out_specs=_VMEM,
    )(taps, wd, wp, b, gamma, beta, pool, wh, bh)


def _pad_and_taps(x_nhwc, k=3, stride=2, pad=1):
    """Glue: 9 stride-2 shifted slabs of the zero-padded input, each (N*Ho*Wo, C).
    Pure data rearrangement (no arithmetic); fuses under jit."""
    n, h, w, c = x_nhwc.shape
    ho = (h + 2 * pad - k) // stride + 1
    wo = (w + 2 * pad - k) // stride + 1
    xp = jnp.pad(x_nhwc, ((0, 0), (pad, pad), (pad, pad), (0, 0)))
    taps = []
    for ky in range(k):
        for kx in range(k):
            t = jax.lax.slice(
                xp,
                (0, ky, kx, 0),
                (n, ky + stride * (ho - 1) + 1, kx + stride * (wo - 1) + 1, c),
                (1, stride, stride, 1),
            )
            taps.append(t.reshape(n * ho * wo, c))
    return taps, ho, wo


# ------------------------------ parameters ---------------------------------

def init_params(key):
    params = {}
    for li, (cin, cout) in enumerate(_CHANNELS):
        key, k1, k2, k3, k4 = jax.random.split(key, 5)
        bd_dw = 1.0 / jnp.sqrt(9.0)            # depthwise fan_in = 1*3*3
        bd_pw = 1.0 / jnp.sqrt(float(cin))     # pointwise fan_in = cin
        params[f"conv{li}"] = dict(
            wd=jax.random.uniform(k1, (9, 1, cin), jnp.float32, -bd_dw, bd_dw),
            bd=jax.random.uniform(k2, (1, cin), jnp.float32, -bd_dw, bd_dw),
            wp=jax.random.uniform(k3, (cin, cout), jnp.float32, -bd_pw, bd_pw),
            bp=jax.random.uniform(k4, (1, cout), jnp.float32, -bd_pw, bd_pw),
        )
        if li > 0:  # BatchNorm after every DSConv except the first
            params[f"bn{li}"] = dict(
                gamma=jnp.ones((1, cout), jnp.float32),
                beta=jnp.zeros((1, cout), jnp.float32),
            )
    key, k1, k2 = jax.random.split(key, 3)
    bh = 1.0 / jnp.sqrt(1024.0)
    params["head_w"] = jax.random.uniform(k1, (1024, 1), jnp.float32, -bh, bh)
    params["head_b"] = jax.random.uniform(k2, (1, 1), jnp.float32, -bh, bh)
    return params


def _prepare_params(params):
    """Weight folding / casting done in glue (cheap; fuses under jit)."""
    pp = {}
    # Layer 0: fold depthwise into pointwise -> single im2col matmul weight.
    p0 = params["conv0"]
    wd0, wp0 = p0["wd"], p0["wp"]                              # (9,1,3), (3,64)
    w_eff = (wd0.reshape(9, 3, 1) * wp0.reshape(1, 3, 64)).reshape(27, 64)
    w_eff = jnp.pad(w_eff, ((0, 5), (0, 0))).astype(jnp.bfloat16)   # K: 27 -> 32
    pp["conv0"] = dict(w=w_eff, b=p0["bd"] @ wp0 + p0["bp"])
    for li in range(1, 5):
        p = params[f"conv{li}"]
        pp[f"conv{li}"] = dict(
            wd=p["wd"],                                        # (9,1,Cin) f32 (VPU MAC)
            wp=p["wp"].astype(jnp.bfloat16),                   # (Cin,Cout) bf16 (MXU)
            b=p["bd"] @ p["wp"] + p["bp"],                     # folded bias, f32
            gamma=params[f"bn{li}"]["gamma"],
            beta=params[f"bn{li}"]["beta"],
        )
    pp["head_w"] = params["head_w"]
    pp["head_b"] = params["head_b"]
    return pp


# ------------------------------- forward -----------------------------------

def discriminator_forward(x_nchw, params):
    pp = _prepare_params(params)
    # NCHW -> NHWC
    x = jnp.transpose(x_nchw, (0, 2, 3, 1)).astype(jnp.float32)
    n = x.shape[0]

    # Layer 0: im2col matmul (Cin=3) + LeakyReLU (no BN on this layer)
    taps, ho, wo = _pad_and_taps(x)
    im2col = jnp.concatenate(taps, axis=-1)                    # (M, 27), k-major
    im2col = jnp.pad(im2col, ((0, 0), (0, 5))).astype(jnp.bfloat16)
    y = conv0(im2col, pp["conv0"]["w"], pp["conv0"]["b"])      # (M, 64)
    x = y.reshape(n, ho, wo, 64)

    # Layers 1..3: fused DSConv + BN + LeakyReLU
    for li in range(1, 4):
        cout = _CHANNELS[li][1]
        taps, ho, wo = _pad_and_taps(x)
        taps = jnp.stack(taps, axis=0).astype(jnp.bfloat16)    # (9, M, Cin)
        p = pp[f"conv{li}"]
        y = dsconv_bn(taps, p["wd"], p["wp"], p["b"], p["gamma"], p["beta"])
        x = y.reshape(n, ho, wo, cout)

    # Layer 4: fused DSConv + BN + LeakyReLU + AvgPool(1) + head 1x1 conv + sigmoid
    taps, ho, wo = _pad_and_taps(x)
    taps = jnp.stack(taps, axis=0).astype(jnp.bfloat16)
    p = pp["conv4"]
    hw = ho * wo
    # (N, M) per-sample averaging matrix (exact AdaptiveAvgPool2d(1) for any spatial size)
    pool = jnp.kron(jnp.eye(n, dtype=jnp.float32),
                    jnp.ones((1, hw), jnp.float32) / float(hw))
    out = dsconv_bn_pool_head(taps, p["wd"], p["wp"], p["b"], p["gamma"], p["beta"],
                              pool, pp["head_w"], pp["head_b"])   # (N, 1)
    return out.reshape(n)


# --------------------------------- main -------------------------------------

if __name__ == "__main__":
    key = jax.random.PRNGKey(0)
    key, kx, kp = jax.random.split(key, 3)
    # Discriminator expects 3-channel images; deterministic small example (NCHW like PyTorch)
    x = jax.random.normal(kx, (2, 3, 16, 16), jnp.float32)
    params = init_params(kp)

    fwd = jax.jit(discriminator_forward)
    out = jax.block_until_ready(fwd(x, params))

    assert out.shape == (2,)
    assert bool(jnp.all(jnp.isfinite(out)))
    assert bool(jnp.all((out >= 0.0) & (out <= 1.0)))
    print("KERNEL_OK")
</pallas_src>

<mosaic_0001>
module attributes {stable_mosaic.version = 11 : i64} {
  func.func @conv0_kernel(%arg0: memref<128x32xbf16, #tpu.memory_space<vmem>>, %arg1: memref<32x64xbf16, #tpu.memory_space<vmem>>, %arg2: memref<1x64xf32, #tpu.memory_space<vmem>>, %arg3: memref<128x64xf32, #tpu.memory_space<vmem>>) attributes {dimension_semantics = [], scalar_prefetch = 0 : i64, scratch_operands = 0 : i64, tpu.core_type = #tpu.core_type<tc>} {
    %c0 = arith.constant 0 : index
    %c0_0 = arith.constant 0 : index
    %0 = vector.load %arg0[%c0, %c0_0] : memref<128x32xbf16, #tpu.memory_space<vmem>>, vector<128x32xbf16>
    %c0_1 = arith.constant 0 : index
    %c0_2 = arith.constant 0 : index
    %1 = vector.load %arg1[%c0_1, %c0_2] : memref<32x64xbf16, #tpu.memory_space<vmem>>, vector<32x64xbf16>
    %cst = arith.constant dense<0.000000e+00> : vector<128x64xf32>
    %2 = tpu.matmul %0, %1, %cst {dimension_numbers = #tpu.dot_dimension_numbers<[1], [0], [0], [1], [0, 0, 1, 1], [], []>} : vector<128x32xbf16>, vector<32x64xbf16>, vector<128x64xf32> -> vector<128x64xf32>
    %c0_3 = arith.constant 0 : index
    %c0_4 = arith.constant 0 : index
    %3 = vector.load %arg2[%c0_3, %c0_4] : memref<1x64xf32, #tpu.memory_space<vmem>>, vector<1x64xf32>
    %4 = vector.broadcast %3 : vector<1x64xf32> to vector<128x64xf32>
    %5 = arith.addf %2, %4 : vector<128x64xf32>
    %cst_5 = arith.constant 2.000000e-01 : f32
    %6 = vector.broadcast %cst_5 : f32 to vector<128x64xf32>
    %7 = arith.mulf %6, %5 : vector<128x64xf32>
    %8 = arith.maximumf %5, %7 : vector<128x64xf32>
    %c0_6 = arith.constant 0 : index
    %c0_7 = arith.constant 0 : index
    %9 = vector.load %arg3[%c0_6, %c0_7] : memref<128x64xf32, #tpu.memory_space<vmem>>, vector<128x64xf32>
    tpu.vector_store %arg3[%c0_6, %c0_7], %8 {strides = array<i32>} : memref<128x64xf32, #tpu.memory_space<vmem>>, vector<128x64xf32>,
    return
  }
}

module attributes {stable_mosaic.version = 11 : i64} {
  func.func @dsconv_bn_kernel(%arg0: memref<9x32x64xbf16, #tpu.memory_space<vmem>>, %arg1: memref<9x1x64xf32, #tpu.memory_space<vmem>>, %arg2: memref<64x128xbf16, #tpu.memory_space<vmem>>, %arg3: memref<1x128xf32, #tpu.memory_space<vmem>>, %arg4: memref<1x128xf32, #tpu.memory_space<vmem>>, %arg5: memref<1x128xf32, #tpu.memory_space<vmem>>, %arg6: memref<32x128xf32, #tpu.memory_space<vmem>>) attributes {dimension_semantics = [], scalar_prefetch = 0 : i64, scratch_operands = 0 : i64, tpu.core_type = #tpu.core_type<tc>} {
    %c0 = arith.constant 0 : index
    %c0_0 = arith.constant 0 : index
    %c0_1 = arith.constant 0 : index
    %0 = vector.load %arg0[%c0, %c0_0, %c0_1] : memref<9x32x64xbf16, #tpu.memory_space<vmem>>, vector<1x32x64xbf16>
    %1 = vector.shape_cast %0 : vector<1x32x64xbf16> to vector<32x64xbf16>
    %2 = arith.extf %1 : vector<32x64xbf16> to vector<32x64xf32>
    %c0_2 = arith.constant 0 : index
    %c0_3 = arith.constant 0 : index
    %c0_4 = arith.constant 0 : index
    %3 = vector.load %arg1[%c0_2, %c0_3, %c0_4] : memref<9x1x64xf32, #tpu.memory_space<vmem>>, vector<1x1x64xf32>
    %4 = vector.shape_cast %3 : vector<1x1x64xf32> to vector<1x64xf32>
    %5 = vector.broadcast %4 : vector<1x64xf32> to vector<32x64xf32>
    %6 = arith.mulf %2, %5 : vector<32x64xf32>
    %c1 = arith.constant 1 : index
    %c0_5 = arith.constant 0 : index
    %c0_6 = arith.constant 0 : index
    %7 = vector.load %arg0[%c1, %c0_5, %c0_6] : memref<9x32x64xbf16, #tpu.memory_space<vmem>>, vector<1x32x64xbf16>
    %8 = vector.shape_cast %7 : vector<1x32x64xbf16> to vector<32x64xbf16>
    %9 = arith.extf %8 : vector<32x64xbf16> to vector<32x64xf32>
    %c1_7 = arith.constant 1 : index
    %c0_8 = arith.constant 0 : index
    %c0_9 = arith.constant 0 : index
    %10 = vector.load %arg1[%c1_7, %c0_8, %c0_9] : memref<9x1x64xf32, #tpu.memory_space<vmem>>, vector<1x1x64xf32>
    %11 = vector.shape_cast %10 : vector<1x1x64xf32> to vector<1x64xf32>
    %12 = vector.broadcast %11 : vector<1x64xf32> to vector<32x64xf32>
    %13 = arith.mulf %9, %12 : vector<32x64xf32>
    %14 = arith.addf %6, %13 : vector<32x64xf32>
    %c2 = arith.constant 2 : index
    %c0_10 = arith.constant 0 : index
    %c0_11 = arith.constant 0 : index
    %15 = vector.load %arg0[%c2, %c0_10, %c0_11] : memref<9x32x64xbf16, #tpu.memory_space<vmem>>, vector<1x32x64xbf16>
    %16 = vector.shape_cast %15 : vector<1x32x64xbf16> to vector<32x64xbf16>
    %17 = arith.extf %16 : vector<32x64xbf16> to vector<32x64xf32>
    %c2_12 = arith.constant 2 : index
    %c0_13 = arith.constant 0 : index
    %c0_14 = arith.constant 0 : index
    %18 = vector.load %arg1[%c2_12, %c0_13, %c0_14] : memref<9x1x64xf32, #tpu.memory_space<vmem>>, vector<1x1x64xf32>
    %19 = vector.shape_cast %18 : vector<1x1x64xf32> to vector<1x64xf32>
    %20 = vector.broadcast %19 : vector<1x64xf32> to vector<32x64xf32>
    %21 = arith.mulf %17, %20 : vector<32x64xf32>
    %22 = arith.addf %14, %21 : vector<32x64xf32>
    %c3 = arith.constant 3 : index
    %c0_15 = arith.constant 0 : index
    %c0_16 = arith.constant 0 : index
    %23 = vector.load %arg0[%c3, %c0_15, %c0_16] : memref<9x32x64xbf16, #tpu.memory_space<vmem>>, vector<1x32x64xbf16>
    %24 = vector.shape_cast %23 : vector<1x32x64xbf16> to vector<32x64xbf16>
    %25 = arith.extf %24 : vector<32x64xbf16> to vector<32x64xf32>
    %c3_17 = arith.constant 3 : index
    %c0_18 = arith.constant 0 : index
    %c0_19 = arith.constant 0 : index
    %26 = vector.load %arg1[%c3_17, %c0_18, %c0_19] : memref<9x1x64xf32, #tpu.memory_space<vmem>>, vector<1x1x64xf32>
    %27 = vector.shape_cast %26 : vector<1x1x64xf32> to vector<1x64xf32>
    %28 = vector.broadcast %27 : vector<1x64xf32> to vector<32x64xf32>
    %29 = arith.mulf %25, %28 : vector<32x64xf32>
    %30 = arith.addf %22, %29 : vector<32x64xf32>
    %c4 = arith.constant 4 : index
    %c0_20 = arith.constant 0 : index
    %c0_21 = arith.constant 0 : index
    %31 = vector.load %arg0[%c4, %c0_20, %c0_21] : memref<9x32x64xbf16, #tpu.memory_space<vmem>>, vector<1x32x64xbf16>
    %32 = vector.shape_cast %31 : vector<1x32x64xbf16> to vector<32x64xbf16>
    %33 = arith.extf %32 : vector<32x64xbf16> to vector<32x64xf32>
    %c4_22 = arith.constant 4 : index
    %c0_23 = arith.constant 0 : index
    %c0_24 = arith.constant 0 : index
    %34 = vector.load %arg1[%c4_22, %c0_23, %c0_24] : memref<9x1x64xf32, #tpu.memory_space<vmem>>, vector<1x1x64xf32>
    %35 = vector.shape_cast %34 : vector<1x1x64xf32> to vector<1x64xf32>
    %36 = vector.broadcast %35 : vector<1x64xf32> to vector<32x64xf32>
    %37 = arith.mulf %33, %36 : vector<32x64xf32>
    %38 = arith.addf %30, %37 : vector<32x64xf32>
    %c5 = arith.constant 5 : index
    %c0_25 = arith.constant 0 : index
    %c0_26 = arith.constant 0 : index
    %39 = vector.load %arg0[%c5, %c0_25, %c0_26] : memref<9x32x64xbf16, #tpu.memory_space<vmem>>, vector<1x32x64xbf16>
    %40 = vector.shape_cast %39 : vector<1x32x64xbf16> to vector<32x64xbf16>
    %41 = arith.extf %40 : vector<32x64xbf16> to vector<32x64xf32>
    %c5_27 = arith.constant 5 : index
    %c0_28 = arith.constant 0 : index
    %c0_29 = arith.constant 0 : index
    %42 = vector.load %arg1[%c5_27, %c0_28, %c0_29] : memref<9x1x64xf32, #tpu.memory_space<vmem>>, vector<1x1x64xf32>
    %43 = vector.shape_cast %42 : vector<1x1x64xf32> to vector<1x64xf32>
    %44 = vector.broadcast %43 : vector<1x64xf32> to vector<32x64xf32>
    %45 = arith.mulf %41, %44 : vector<32x64xf32>
    %46 = arith.addf %38, %45 : vector<32x64xf32>
    %c6 = arith.constant 6 : index
    %c0_30 = arith.constant 0 : index
    %c0_31 = arith.constant 0 : index
    %47 = vector.load %arg0[%c6, %c0_30, %c0_31] : memref<9x32x64xbf16, #tpu.memory_space<vmem>>, vector<1x32x64xbf16>
    %48 = vector.shape_cast %47 : vector<1x32x64xbf16> to vector<32x64xbf16>
    %49 = arith.extf %48 : vector<32x64xbf16> to vector<32x64xf32>
    %c6_32 = arith.constant 6 : index
    %c0_33 = arith.constant 0 : index
    %c0_34 = arith.constant 0 : index
    %50 = vector.load %arg1[%c6_32, %c0_33, %c0_34] : memref<9x1x64xf32, #tpu.memory_space<vmem>>, vector<1x1x64xf32>
    %51 = vector.shape_cast %50 : vector<1x1x64xf32> to vector<1x64xf32>
    %52 = vector.broadcast %51 : vector<1x64xf32> to vector<32x64xf32>
    %53 = arith.mulf %49, %52 : vector<32x64xf32>
    %54 = arith.addf %46, %53 : vector<32x64xf32>
    %c7 = arith.constant 7 : index
    %c0_35 = arith.constant 0 : index
    %c0_36 = arith.constant 0 : index
    %55 = vector.load %arg0[%c7, %c0_35, %c0_36] : memref<9x32x64xbf16, #tpu.memory_space<vmem>>, vector<1x32x64xbf16>
    %56 = vector.shape_cast %55 : vector<1x32x64xbf16> to vector<32x64xbf16>
    %57 = arith.extf %56 : vector<32x64xbf16> to vector<32x64xf32>
    %c7_37 = arith.constant 7 : index
    %c0_38 = arith.constant 0 : index
    %c0_39 = arith.constant 0 : index
    %58 = vector.load %arg1[%c7_37, %c0_38, %c0_39] : memref<9x1x64xf32, #tpu.memory_space<vmem>>, vector<1x1x64xf32>
    %59 = vector.shape_cast %58 : vector<1x1x64xf32> to vector<1x64xf32>
    %60 = vector.broadcast %59 : vector<1x64xf32> to vector<32x64xf32>
    %61 = arith.mulf %57, %60 : vector<32x64xf32>
    %62 = arith.addf %54, %61 : vector<32x64xf32>
    %c8 = arith.constant 8 : index
    %c0_40 = arith.constant 0 : index
    %c0_41 = arith.constant 0 : index
    %63 = vector.load %arg0[%c8, %c0_40, %c0_41] : memref<9x32x64xbf16, #tpu.memory_space<vmem>>, vector<1x32x64xbf16>
    %64 = vector.shape_cast %63 : vector<1x32x64xbf16> to vector<32x64xbf16>
    %65 = arith.extf %64 : vector<32x64xbf16> to vector<32x64xf32>
    %c8_42 = arith.constant 8 : index
    %c0_43 = arith.constant 0 : index
    %c0_44 = arith.constant 0 : index
    %66 = vector.load %arg1[%c8_42, %c0_43, %c0_44] : memref<9x1x64xf32, #tpu.memory_space<vmem>>, vector<1x1x64xf32>
    %67 = vector.shape_cast %66 : vector<1x1x64xf32> to vector<1x64xf32>
    %68 = vector.broadcast %67 : vector<1x64xf32> to vector<32x64xf32>
    %69 = arith.mulf %65, %68 : vector<32x64xf32>
    %70 = arith.addf %62, %69 : vector<32x64xf32>
    %71 = arith.truncf %70 : vector<32x64xf32> to vector<32x64xbf16>
    %c0_45 = arith.constant 0 : index
    %c0_46 = arith.constant 0 : index
    %72 = vector.load %arg2[%c0_45, %c0_46] : memref<64x128xbf16, #tpu.memory_space<vmem>>, vector<64x128xbf16>
    %cst = arith.constant dense<0.000000e+00> : vector<32x128xf32>
    %73 = tpu.matmul %71, %72, %cst {dimension_numbers = #tpu.dot_dimension_numbers<[1], [0], [0], [1], [0, 0, 1, 1], [], []>} : vector<32x64xbf16>, vector<64x128xbf16>, vector<32x128xf32> -> vector<32x128xf32>
    %c0_47 = arith.constant 0 : index
    %c0_48 = arith.constant 0 : index
    %74 = vector.load %arg3[%c0_47, %c0_48] : memref<1x128xf32, #tpu.memory_space<vmem>>, vector<1x128xf32>
    %75 = vector.broadcast %74 : vector<1x128xf32> to vector<32x128xf32>
    %76 = arith.addf %73, %75 : vector<32x128xf32>
    %cst_49 = arith.constant dense<0.000000e+00> : vector<128xf32>
    %77 = vector.multi_reduction <add>, %76, %cst_49 [0] : vector<32x128xf32> to vector<128xf32>
    %78 = vector.shape_cast %77 : vector<128xf32> to vector<1x128xf32>
    %cst_50 = arith.constant 3.200000e+01 : f32
    %79 = vector.broadcast %cst_50 : f32 to vector<1x128xf32>
    %80 = arith.divf %78, %79 : vector<1x128xf32>
    %81 = vector.broadcast %80 : vector<1x128xf32> to vector<32x128xf32>
    %82 = arith.subf %76, %81 : vector<32x128xf32>
    %83 = arith.mulf %82, %82 : vector<32x128xf32>
    %cst_51 = arith.constant dense<0.000000e+00> : vector<128xf32>
    %84 = vector.multi_reduction <add>, %83, %cst_51 [0] : vector<32x128xf32> to vector<128xf32>
    %85 = vector.shape_cast %84 : vector<128xf32> to vector<1x128xf32>
    %cst_52 = arith.constant 3.200000e+01 : f32
    %86 = vector.broadcast %cst_52 : f32 to vector<1x128xf32>
    %87 = arith.divf %85, %86 : vector<1x128xf32>
    %cst_53 = arith.constant 9.99999974E-6 : f32
    %88 = vector.broadcast %cst_53 : f32 to vector<1x128xf32>
    %89 = arith.addf %87, %88 : vector<1x128xf32>
    %90 = math.rsqrt %89 : vector<1x128xf32>
    %91 = vector.broadcast %90 : vector<1x128xf32> to vector<32x128xf32>
    %92 = arith.mulf %82, %91 : vector<32x128xf32>
    %c0_54 = arith.constant 0 : index
    %c0_55 = arith.constant 0 : index
    %93 = vector.load %arg4[%c0_54, %c0_55] : memref<1x128xf32, #tpu.memory_space<vmem>>, vector<1x128xf32>
    %94 = vector.broadcast %93 : vector<1x128xf32> to vector<32x128xf32>
    %95 = arith.mulf %92, %94 : vector<32x128xf32>
    %c0_56 = arith.constant 0 : index
    %c0_57 = arith.constant 0 : index
    %96 = vector.load %arg5[%c0_56, %c0_57] : memref<1x128xf32, #tpu.memory_space<vmem>>, vector<1x128xf32>
    %97 = vector.broadcast %96 : vector<1x128xf32> to vector<32x128xf32>
    %98 = arith.addf %95, %97 : vector<32x128xf32>
    %cst_58 = arith.constant 2.000000e-01 : f32
    %99 = vector.broadcast %cst_58 : f32 to vector<32x128xf32>
    %100 = arith.mulf %99, %98 : vector<32x128xf32>
    %101 = arith.maximumf %98, %100 : vector<32x128xf32>
    %c0_59 = arith.constant 0 : index
    %c0_60 = arith.constant 0 : index
    %102 = vector.load %arg6[%c0_59, %c0_60] : memref<32x128xf32, #tpu.memory_space<vmem>>, vector<32x128xf32>
    tpu.vector_store %arg6[%c0_59, %c0_60], %101 {strides = array<i32>} : memref<32x128xf32, #tpu.memory_space<vmem>>, vector<32x128xf32>,
    return
  }
}

module attributes {stable_mosaic.version = 11 : i64} {
  func.func @dsconv_bn_kernel(%arg0: memref<9x8x128xbf16, #tpu.memory_space<vmem>>, %arg1: memref<9x1x128xf32, #tpu.memory_space<vmem>>, %arg2: memref<128x256xbf16, #tpu.memory_space<vmem>>, %arg3: memref<1x256xf32, #tpu.memory_space<vmem>>, %arg4: memref<1x256xf32, #tpu.memory_space<vmem>>, %arg5: memref<1x256xf32, #tpu.memory_space<vmem>>, %arg6: memref<8x256xf32, #tpu.memory_space<vmem>>) attributes {dimension_semantics = [], scalar_prefetch = 0 : i64, scratch_operands = 0 : i64, tpu.core_type = #tpu.core_type<tc>} {
    %c0 = arith.constant 0 : index
    %c0_0 = arith.constant 0 : index
    %c0_1 = arith.constant 0 : index
    %0 = vector.load %arg0[%c0, %c0_0, %c0_1] : memref<9x8x128xbf16, #tpu.memory_space<vmem>>, vector<1x8x128xbf16>
    %1 = vector.shape_cast %0 : vector<1x8x128xbf16> to vector<8x128xbf16>
    %2 = arith.extf %1 : vector<8x128xbf16> to vector<8x128xf32>
    %c0_2 = arith.constant 0 : index
    %c0_3 = arith.constant 0 : index
    %c0_4 = arith.constant 0 : index
    %3 = vector.load %arg1[%c0_2, %c0_3, %c0_4] : memref<9x1x128xf32, #tpu.memory_space<vmem>>, vector<1x1x128xf32>
    %4 = vector.shape_cast %3 : vector<1x1x128xf32> to vector<1x128xf32>
    %5 = vector.broadcast %4 : vector<1x128xf32> to vector<8x128xf32>
    %6 = arith.mulf %2, %5 : vector<8x128xf32>
    %c1 = arith.constant 1 : index
    %c0_5 = arith.constant 0 : index
    %c0_6 = arith.constant 0 : index
    %7 = vector.load %arg0[%c1, %c0_5, %c0_6] : memref<9x8x128xbf16, #tpu.memory_space<vmem>>, vector<1x8x128xbf16>
    %8 = vector.shape_cast %7 : vector<1x8x128xbf16> to vector<8x128xbf16>
    %9 = arith.extf %8 : vector<8x128xbf16> to vector<8x128xf32>
    %c1_7 = arith.constant 1 : index
    %c0_8 = arith.constant 0 : index
    %c0_9 = arith.constant 0 : index
    %10 = vector.load %arg1[%c1_7, %c0_8, %c0_9] : memref<9x1x128xf32, #tpu.memory_space<vmem>>, vector<1x1x128xf32>
    %11 = vector.shape_cast %10 : vector<1x1x128xf32> to vector<1x128xf32>
    %12 = vector.broadcast %11 : vector<1x128xf32> to vector<8x128xf32>
    %13 = arith.mulf %9, %12 : vector<8x128xf32>
    %14 = arith.addf %6, %13 : vector<8x128xf32>
    %c2 = arith.constant 2 : index
    %c0_10 = arith.constant 0 : index
    %c0_11 = arith.constant 0 : index
    %15 = vector.load %arg0[%c2, %c0_10, %c0_11] : memref<9x8x128xbf16, #tpu.memory_space<vmem>>, vector<1x8x128xbf16>
    %16 = vector.shape_cast %15 : vector<1x8x128xbf16> to vector<8x128xbf16>
    %17 = arith.extf %16 : vector<8x128xbf16> to vector<8x128xf32>
    %c2_12 = arith.constant 2 : index
    %c0_13 = arith.constant 0 : index
    %c0_14 = arith.constant 0 : index
    %18 = vector.load %arg1[%c2_12, %c0_13, %c0_14] : memref<9x1x128xf32, #tpu.memory_space<vmem>>, vector<1x1x128xf32>
    %19 = vector.shape_cast %18 : vector<1x1x128xf32> to vector<1x128xf32>
    %20 = vector.broadcast %19 : vector<1x128xf32> to vector<8x128xf32>
    %21 = arith.mulf %17, %20 : vector<8x128xf32>
    %22 = arith.addf %14, %21 : vector<8x128xf32>
    %c3 = arith.constant 3 : index
    %c0_15 = arith.constant 0 : index
    %c0_16 = arith.constant 0 : index
    %23 = vector.load %arg0[%c3, %c0_15, %c0_16] : memref<9x8x128xbf16, #tpu.memory_space<vmem>>, vector<1x8x128xbf16>
    %24 = vector.shape_cast %23 : vector<1x8x128xbf16> to vector<8x128xbf16>
    %25 = arith.extf %24 : vector<8x128xbf16> to vector<8x128xf32>
    %c3_17 = arith.constant 3 : index
    %c0_18 = arith.constant 0 : index
    %c0_19 = arith.constant 0 : index
    %26 = vector.load %arg1[%c3_17, %c0_18, %c0_19] : memref<9x1x128xf32, #tpu.memory_space<vmem>>, vector<1x1x128xf32>
    %27 = vector.shape_cast %26 : vector<1x1x128xf32> to vector<1x128xf32>
    %28 = vector.broadcast %27 : vector<1x128xf32> to vector<8x128xf32>
    %29 = arith.mulf %25, %28 : vector<8x128xf32>
    %30 = arith.addf %22, %29 : vector<8x128xf32>
    %c4 = arith.constant 4 : index
    %c0_20 = arith.constant 0 : index
    %c0_21 = arith.constant 0 : index
    %31 = vector.load %arg0[%c4, %c0_20, %c0_21] : memref<9x8x128xbf16, #tpu.memory_space<vmem>>, vector<1x8x128xbf16>
    %32 = vector.shape_cast %31 : vector<1x8x128xbf16> to vector<8x128xbf16>
    %33 = arith.extf %32 : vector<8x128xbf16> to vector<8x128xf32>
    %c4_22 = arith.constant 4 : index
    %c0_23 = arith.constant 0 : index
    %c0_24 = arith.constant 0 : index
    %34 = vector.load %arg1[%c4_22, %c0_23, %c0_24] : memref<9x1x128xf32, #tpu.memory_space<vmem>>, vector<1x1x128xf32>
    %35 = vector.shape_cast %34 : vector<1x1x128xf32> to vector<1x128xf32>
    %36 = vector.broadcast %35 : vector<1x128xf32> to vector<8x128xf32>
    %37 = arith.mulf %33, %36 : vector<8x128xf32>
    %38 = arith.addf %30, %37 : vector<8x128xf32>
    %c5 = arith.constant 5 : index
    %c0_25 = arith.constant 0 : index
    %c0_26 = arith.constant 0 : index
    %39 = vector.load %arg0[%c5, %c0_25, %c0_26] : memref<9x8x128xbf16, #tpu.memory_space<vmem>>, vector<1x8x128xbf16>
    %40 = vector.shape_cast %39 : vector<1x8x128xbf16> to vector<8x128xbf16>
    %41 = arith.extf %40 : vector<8x128xbf16> to vector<8x128xf32>
    %c5_27 = arith.constant 5 : index
    %c0_28 = arith.constant 0 : index
    %c0_29 = arith.constant 0 : index
    %42 = vector.load %arg1[%c5_27, %c0_28, %c0_29] : memref<9x1x128xf32, #tpu.memory_space<vmem>>, vector<1x1x128xf32>
    %43 = vector.shape_cast %42 : vector<1x1x128xf32> to vector<1x128xf32>
    %44 = vector.broadcast %43 : vector<1x128xf32> to vector<8x128xf32>
    %45 = arith.mulf %41, %44 : vector<8x128xf32>
    %46 = arith.addf %38, %45 : vector<8x128xf32>
    %c6 = arith.constant 6 : index
    %c0_30 = arith.constant 0 : index
    %c0_31 = arith.constant 0 : index
    %47 = vector.load %arg0[%c6, %c0_30, %c0_31] : memref<9x8x128xbf16, #tpu.memory_space<vmem>>, vector<1x8x128xbf16>
    %48 = vector.shape_cast %47 : vector<1x8x128xbf16> to vector<8x128xbf16>
    %49 = arith.extf %48 : vector<8x128xbf16> to vector<8x128xf32>
    %c6_32 = arith.constant 6 : index
    %c0_33 = arith.constant 0 : index
    %c0_34 = arith.constant 0 : index
    %50 = vector.load %arg1[%c6_32, %c0_33, %c0_34] : memref<9x1x128xf32, #tpu.memory_space<vmem>>, vector<1x1x128xf32>
    %51 = vector.shape_cast %50 : vector<1x1x128xf32> to vector<1x128xf32>
    %52 = vector.broadcast %51 : vector<1x128xf32> to vector<8x128xf32>
    %53 = arith.mulf %49, %52 : vector<8x128xf32>
    %54 = arith.addf %46, %53 : vector<8x128xf32>
    %c7 = arith.constant 7 : index
    %c0_35 = arith.constant 0 : index
    %c0_36 = arith.constant 0 : index
    %55 = vector.load %arg0[%c7, %c0_35, %c0_36] : memref<9x8x128xbf16, #tpu.memory_space<vmem>>, vector<1x8x128xbf16>
    %56 = vector.shape_cast %55 : vector<1x8x128xbf16> to vector<8x128xbf16>
    %57 = arith.extf %56 : vector<8x128xbf16> to vector<8x128xf32>
    %c7_37 = arith.constant 7 : index
    %c0_38 = arith.constant 0 : index
    %c0_39 = arith.constant 0 : index
    %58 = vector.load %arg1[%c7_37, %c0_38, %c0_39] : memref<9x1x128xf32, #tpu.memory_space<vmem>>, vector<1x1x128xf32>
    %59 = vector.shape_cast %58 : vector<1x1x128xf32> to vector<1x128xf32>
    %60 = vector.broadcast %59 : vector<1x128xf32> to vector<8x128xf32>
    %61 = arith.mulf %57, %60 : vector<8x128xf32>
    %62 = arith.addf %54, %61 : vector<8x128xf32>
    %c8 = arith.constant 8 : index
    %c0_40 = arith.constant 0 : index
    %c0_41 = arith.constant 0 : index
    %63 = vector.load %arg0[%c8, %c0_40, %c0_41] : memref<9x8x128xbf16, #tpu.memory_space<vmem>>, vector<1x8x128xbf16>
    %64 = vector.shape_cast %63 : vector<1x8x128xbf16> to vector<8x128xbf16>
    %65 = arith.extf %64 : vector<8x128xbf16> to vector<8x128xf32>
    %c8_42 = arith.constant 8 : index
    %c0_43 = arith.constant 0 : index
    %c0_44 = arith.constant 0 : index
    %66 = vector.load %arg1[%c8_42, %c0_43, %c0_44] : memref<9x1x128xf32, #tpu.memory_space<vmem>>, vector<1x1x128xf32>
    %67 = vector.shape_cast %66 : vector<1x1x128xf32> to vector<1x128xf32>
    %68 = vector.broadcast %67 : vector<1x128xf32> to vector<8x128xf32>
    %69 = arith.mulf %65, %68 : vector<8x128xf32>
    %70 = arith.addf %62, %69 : vector<8x128xf32>
    %71 = arith.truncf %70 : vector<8x128xf32> to vector<8x128xbf16>
    %c0_45 = arith.constant 0 : index
    %c0_46 = arith.constant 0 : index
    %72 = vector.load %arg2[%c0_45, %c0_46] : memref<128x256xbf16, #tpu.memory_space<vmem>>, vector<128x256xbf16>
    %cst = arith.constant dense<0.000000e+00> : vector<8x256xf32>
    %73 = tpu.matmul %71, %72, %cst {dimension_numbers = #tpu.dot_dimension_numbers<[1], [0], [0], [1], [0, 0, 1, 1], [], []>} : vector<8x128xbf16>, vector<128x256xbf16>, vector<8x256xf32> -> vector<8x256xf32>
    %c0_47 = arith.constant 0 : index
    %c0_48 = arith.constant 0 : index
    %74 = vector.load %arg3[%c0_47, %c0_48] : memref<1x256xf32, #tpu.memory_space<vmem>>, vector<1x256xf32>
    %75 = vector.broadcast %74 : vector<1x256xf32> to vector<8x256xf32>
    %76 = arith.addf %73, %75 : vector<8x256xf32>
    %cst_49 = arith.constant dense<0.000000e+00> : vector<256xf32>
    %77 = vector.multi_reduction <add>, %76, %cst_49 [0] : vector<8x256xf32> to vector<256xf32>
    %78 = vector.shape_cast %77 : vector<256xf32> to vector<1x256xf32>
    %cst_50 = arith.constant 8.000000e+00 : f32
    %79 = vector.broadcast %cst_50 : f32 to vector<1x256xf32>
    %80 = arith.divf %78, %79 : vector<1x256xf32>
    %81 = vector.broadcast %80 : vector<1x256xf32> to vector<8x256xf32>
    %82 = arith.subf %76, %81 : vector<8x256xf32>
    %83 = arith.mulf %82, %82 : vector<8x256xf32>
    %cst_51 = arith.constant dense<0.000000e+00> : vector<256xf32>
    %84 = vector.multi_reduction <add>, %83, %cst_51 [0] : vector<8x256xf32> to vector<256xf32>
    %85 = vector.shape_cast %84 : vector<256xf32> to vector<1x256xf32>
    %cst_52 = arith.constant 8.000000e+00 : f32
    %86 = vector.broadcast %cst_52 : f32 to vector<1x256xf32>
    %87 = arith.divf %85, %86 : vector<1x256xf32>
    %cst_53 = arith.constant 9.99999974E-6 : f32
    %88 = vector.broadcast %cst_53 : f32 to vector<1x256xf32>
    %89 = arith.addf %87, %88 : vector<1x256xf32>
    %90 = math.rsqrt %89 : vector<1x256xf32>
    %91 = vector.broadcast %90 : vector<1x256xf32> to vector<8x256xf32>
    %92 = arith.mulf %82, %91 : vector<8x256xf32>
    %c0_54 = arith.constant 0 : index
    %c0_55 = arith.constant 0 : index
    %93 = vector.load %arg4[%c0_54, %c0_55] : memref<1x256xf32, #tpu.memory_space<vmem>>, vector<1x256xf32>
    %94 = vector.broadcast %93 : vector<1x256xf32> to vector<8x256xf32>
    %95 = arith.mulf %92, %94 : vector<8x256xf32>
    %c0_56 = arith.constant 0 : index
    %c0_57 = arith.constant 0 : index
    %96 = vector.load %arg5[%c0_56, %c0_57] : memref<1x256xf32, #tpu.memory_space<vmem>>, vector<1x256xf32>
    %97 = vector.broadcast %96 : vector<1x256xf32> to vector<8x256xf32>
    %98 = arith.addf %95, %97 : vector<8x256xf32>
    %cst_58 = arith.constant 2.000000e-01 : f32
    %99 = vector.broadcast %cst_58 : f32 to vector<8x256xf32>
    %100 = arith.mulf %99, %98 : vector<8x256xf32>
    %101 = arith.maximumf %98, %100 : vector<8x256xf32>
    %c0_59 = arith.constant 0 : index
    %c0_60 = arith.constant 0 : index
    %102 = vector.load %arg6[%c0_59, %c0_60] : memref<8x256xf32, #tpu.memory_space<vmem>>, vector<8x256xf32>
    tpu.vector_store %arg6[%c0_59, %c0_60], %101 {strides = array<i32>} : memref<8x256xf32, #tpu.memory_space<vmem>>, vector<8x256xf32>,
    return
  }
}

module attributes {stable_mosaic.version = 11 : i64} {
  func.func @dsconv_bn_kernel(%arg0: memref<9x2x256xbf16, #tpu.memory_space<vmem>>, %arg1: memref<9x1x256xf32, #tpu.memory_space<vmem>>, %arg2: memref<256x512xbf16, #tpu.memory_space<vmem>>, %arg3: memref<1x512xf32, #tpu.memory_space<vmem>>, %arg4: memref<1x512xf32, #tpu.memory_space<vmem>>, %arg5: memref<1x512xf32, #tpu.memory_space<vmem>>, %arg6: memref<2x512xf32, #tpu.memory_space<vmem>>) attributes {dimension_semantics = [], scalar_prefetch = 0 : i64, scratch_operands = 0 : i64, tpu.core_type = #tpu.core_type<tc>} {
    %c0 = arith.constant 0 : index
    %c0_0 = arith.constant 0 : index
    %c0_1 = arith.constant 0 : index
    %0 = vector.load %arg0[%c0, %c0_0, %c0_1] : memref<9x2x256xbf16, #tpu.memory_space<vmem>>, vector<1x2x256xbf16>
    %1 = vector.shape_cast %0 : vector<1x2x256xbf16> to vector<2x256xbf16>
    %2 = arith.extf %1 : vector<2x256xbf16> to vector<2x256xf32>
    %c0_2 = arith.constant 0 : index
    %c0_3 = arith.constant 0 : index
    %c0_4 = arith.constant 0 : index
    %3 = vector.load %arg1[%c0_2, %c0_3, %c0_4] : memref<9x1x256xf32, #tpu.memory_space<vmem>>, vector<1x1x256xf32>
    %4 = vector.shape_cast %3 : vector<1x1x256xf32> to vector<1x256xf32>
    %5 = vector.broadcast %4 : vector<1x256xf32> to vector<2x256xf32>
    %6 = arith.mulf %2, %5 : vector<2x256xf32>
    %c1 = arith.constant 1 : index
    %c0_5 = arith.constant 0 : index
    %c0_6 = arith.constant 0 : index
    %7 = vector.load %arg0[%c1, %c0_5, %c0_6] : memref<9x2x256xbf16, #tpu.memory_space<vmem>>, vector<1x2x256xbf16>
    %8 = vector.shape_cast %7 : vector<1x2x256xbf16> to vector<2x256xbf16>
    %9 = arith.extf %8 : vector<2x256xbf16> to vector<2x256xf32>
    %c1_7 = arith.constant 1 : index
    %c0_8 = arith.constant 0 : index
    %c0_9 = arith.constant 0 : index
    %10 = vector.load %arg1[%c1_7, %c0_8, %c0_9] : memref<9x1x256xf32, #tpu.memory_space<vmem>>, vector<1x1x256xf32>
    %11 = vector.shape_cast %10 : vector<1x1x256xf32> to vector<1x256xf32>
    %12 = vector.broadcast %11 : vector<1x256xf32> to vector<2x256xf32>
    %13 = arith.mulf %9, %12 : vector<2x256xf32>
    %14 = arith.addf %6, %13 : vector<2x256xf32>
    %c2 = arith.constant 2 : index
    %c0_10 = arith.constant 0 : index
    %c0_11 = arith.constant 0 : index
    %15 = vector.load %arg0[%c2, %c0_10, %c0_11] : memref<9x2x256xbf16, #tpu.memory_space<vmem>>, vector<1x2x256xbf16>
    %16 = vector.shape_cast %15 : vector<1x2x256xbf16> to vector<2x256xbf16>
    %17 = arith.extf %16 : vector<2x256xbf16> to vector<2x256xf32>
    %c2_12 = arith.constant 2 : index
    %c0_13 = arith.constant 0 : index
    %c0_14 = arith.constant 0 : index
    %18 = vector.load %arg1[%c2_12, %c0_13, %c0_14] : memref<9x1x256xf32, #tpu.memory_space<vmem>>, vector<1x1x256xf32>
    %19 = vector.shape_cast %18 : vector<1x1x256xf32> to vector<1x256xf32>
    %20 = vector.broadcast %19 : vector<1x256xf32> to vector<2x256xf32>
    %21 = arith.mulf %17, %20 : vector<2x256xf32>
    %22 = arith.addf %14, %21 : vector<2x256xf32>
    %c3 = arith.constant 3 : index
    %c0_15 = arith.constant 0 : index
    %c0_16 = arith.constant 0 : index
    %23 = vector.load %arg0[%c3, %c0_15, %c0_16] : memref<9x2x256xbf16, #tpu.memory_space<vmem>>, vector<1x2x256xbf16>
    %24 = vector.shape_cast %23 : vector<1x2x256xbf16> to vector<2x256xbf16>
    %25 = arith.extf %24 : vector<2x256xbf16> to vector<2x256xf32>
    %c3_17 = arith.constant 3 : index
    %c0_18 = arith.constant 0 : index
    %c0_19 = arith.constant 0 : index
    %26 = vector.load %arg1[%c3_17, %c0_18, %c0_19] : memref<9x1x256xf32, #tpu.memory_space<vmem>>, vector<1x1x256xf32>
    %27 = vector.shape_cast %26 : vector<1x1x256xf32> to vector<1x256xf32>
    %28 = vector.broadcast %27 : vector<1x256xf32> to vector<2x256xf32>
    %29 = arith.mulf %25, %28 : vector<2x256xf32>
    %30 = arith.addf %22, %29 : vector<2x256xf32>
    %c4 = arith.constant 4 : index
    %c0_20 = arith.constant 0 : index
    %c0_21 = arith.constant 0 : index
    %31 = vector.load %arg0[%c4, %c0_20, %c0_21] : memref<9x2x256xbf16, #tpu.memory_space<vmem>>, vector<1x2x256xbf16>
    %32 = vector.shape_cast %31 : vector<1x2x256xbf16> to vector<2x256xbf16>
    %33 = arith.extf %32 : vector<2x256xbf16> to vector<2x256xf32>
    %c4_22 = arith.constant 4 : index
    %c0_23 = arith.constant 0 : index
    %c0_24 = arith.constant 0 : index
    %34 = vector.load %arg1[%c4_22, %c0_23, %c0_24] : memref<9x1x256xf32, #tpu.memory_space<vmem>>, vector<1x1x256xf32>
    %35 = vector.shape_cast %34 : vector<1x1x256xf32> to vector<1x256xf32>
    %36 = vector.broadcast %35 : vector<1x256xf32> to vector<2x256xf32>
    %37 = arith.mulf %33, %36 : vector<2x256xf32>
    %38 = arith.addf %30, %37 : vector<2x256xf32>
    %c5 = arith.constant 5 : index
    %c0_25 = arith.constant 0 : index
    %c0_26 = arith.constant 0 : index
    %39 = vector.load %arg0[%c5, %c0_25, %c0_26] : memref<9x2x256xbf16, #tpu.memory_space<vmem>>, vector<1x2x256xbf16>
    %40 = vector.shape_cast %39 : vector<1x2x256xbf16> to vector<2x256xbf16>
    %41 = arith.extf %40 : vector<2x256xbf16> to vector<2x256xf32>
    %c5_27 = arith.constant 5 : index
    %c0_28 = arith.constant 0 : index
    %c0_29 = arith.constant 0 : index
    %42 = vector.load %arg1[%c5_27, %c0_28, %c0_29] : memref<9x1x256xf32, #tpu.memory_space<vmem>>, vector<1x1x256xf32>
    %43 = vector.shape_cast %42 : vector<1x1x256xf32> to vector<1x256xf32>
    %44 = vector.broadcast %43 : vector<1x256xf32> to vector<2x256xf32>
    %45 = arith.mulf %41, %44 : vector<2x256xf32>
    %46 = arith.addf %38, %45 : vector<2x256xf32>
    %c6 = arith.constant 6 : index
    %c0_30 = arith.constant 0 : index
    %c0_31 = arith.constant 0 : index
    %47 = vector.load %arg0[%c6, %c0_30, %c0_31] : memref<9x2x256xbf16, #tpu.memory_space<vmem>>, vector<1x2x256xbf16>
    %48 = vector.shape_cast %47 : vector<1x2x256xbf16> to vector<2x256xbf16>
    %49 = arith.extf %48 : vector<2x256xbf16> to vector<2x256xf32>
    %c6_32 = arith.constant 6 : index
    %c0_33 = arith.constant 0 : index
    %c0_34 = arith.constant 0 : index
    %50 = vector.load %arg1[%c6_32, %c0_33, %c0_34] : memref<9x1x256xf32, #tpu.memory_space<vmem>>, vector<1x1x256xf32>
    %51 = vector.shape_cast %50 : vector<1x1x256xf32> to vector<1x256xf32>
    %52 = vector.broadcast %51 : vector<1x256xf32> to vector<2x256xf32>
    %53 = arith.mulf %49, %52 : vector<2x256xf32>
    %54 = arith.addf %46, %53 : vector<2x256xf32>
    %c7 = arith.constant 7 : index
    %c0_35 = arith.constant 0 : index
    %c0_36 = arith.constant 0 : index
    %55 = vector.load %arg0[%c7, %c0_35, %c0_36] : memref<9x2x256xbf16, #tpu.memory_space<vmem>>, vector<1x2x256xbf16>
    %56 = vector.shape_cast %55 : vector<1x2x256xbf16> to vector<2x256xbf16>
    %57 = arith.extf %56 : vector<2x256xbf16> to vector<2x256xf32>
    %c7_37 = arith.constant 7 : index
    %c0_38 = arith.constant 0 : index
    %c0_39 = arith.constant 0 : index
    %58 = vector.load %arg1[%c7_37, %c0_38, %c0_39] : memref<9x1x256xf32, #tpu.memory_space<vmem>>, vector<1x1x256xf32>
    %59 = vector.shape_cast %58 : vector<1x1x256xf32> to vector<1x256xf32>
    %60 = vector.broadcast %59 : vector<1x256xf32> to vector<2x256xf32>
    %61 = arith.mulf %57, %60 : vector<2x256xf32>
    %62 = arith.addf %54, %61 : vector<2x256xf32>
    %c8 = arith.constant 8 : index
    %c0_40 = arith.constant 0 : index
    %c0_41 = arith.constant 0 : index
    %63 = vector.load %arg0[%c8, %c0_40, %c0_41] : memref<9x2x256xbf16, #tpu.memory_space<vmem>>, vector<1x2x256xbf16>
    %64 = vector.shape_cast %63 : vector<1x2x256xbf16> to vector<2x256xbf16>
    %65 = arith.extf %64 : vector<2x256xbf16> to vector<2x256xf32>
    %c8_42 = arith.constant 8 : index
    %c0_43 = arith.constant 0 : index
    %c0_44 = arith.constant 0 : index
    %66 = vector.load %arg1[%c8_42, %c0_43, %c0_44] : memref<9x1x256xf32, #tpu.memory_space<vmem>>, vector<1x1x256xf32>
    %67 = vector.shape_cast %66 : vector<1x1x256xf32> to vector<1x256xf32>
    %68 = vector.broadcast %67 : vector<1x256xf32> to vector<2x256xf32>
    %69 = arith.mulf %65, %68 : vector<2x256xf32>
    %70 = arith.addf %62, %69 : vector<2x256xf32>
    %71 = arith.truncf %70 : vector<2x256xf32> to vector<2x256xbf16>
    %c0_45 = arith.constant 0 : index
    %c0_46 = arith.constant 0 : index
    %72 = vector.load %arg2[%c0_45, %c0_46] : memref<256x512xbf16, #tpu.memory_space<vmem>>, vector<256x512xbf16>
    %cst = arith.constant dense<0.000000e+00> : vector<2x512xf32>
    %73 = tpu.matmul %71, %72, %cst {dimension_numbers = #tpu.dot_dimension_numbers<[1], [0], [0], [1], [0, 0, 1, 1], [], []>} : vector<2x256xbf16>, vector<256x512xbf16>, vector<2x512xf32> -> vector<2x512xf32>
    %c0_47 = arith.constant 0 : index
    %c0_48 = arith.constant 0 : index
    %74 = vector.load %arg3[%c0_47, %c0_48] : memref<1x512xf32, #tpu.memory_space<vmem>>, vector<1x512xf32>
    %75 = vector.broadcast %74 : vector<1x512xf32> to vector<2x512xf32>
    %76 = arith.addf %73, %75 : vector<2x512xf32>
    %cst_49 = arith.constant dense<0.000000e+00> : vector<512xf32>
    %77 = vector.multi_reduction <add>, %76, %cst_49 [0] : vector<2x512xf32> to vector<512xf32>
    %78 = vector.shape_cast %77 : vector<512xf32> to vector<1x512xf32>
    %cst_50 = arith.constant 2.000000e+00 : f32
    %79 = vector.broadcast %cst_50 : f32 to vector<1x512xf32>
    %80 = arith.divf %78, %79 : vector<1x512xf32>
    %81 = vector.broadcast %80 : vector<1x512xf32> to vector<2x512xf32>
    %82 = arith.subf %76, %81 : vector<2x512xf32>
    %83 = arith.mulf %82, %82 : vector<2x512xf32>
    %cst_51 = arith.constant dense<0.000000e+00> : vector<512xf32>
    %84 = vector.multi_reduction <add>, %83, %cst_51 [0] : vector<2x512xf32> to vector<512xf32>
    %85 = vector.shape_cast %84 : vector<512xf32> to vector<1x512xf32>
    %cst_52 = arith.constant 2.000000e+00 : f32
    %86 = vector.broadcast %cst_52 : f32 to vector<1x512xf32>
    %87 = arith.divf %85, %86 : vector<1x512xf32>
    %cst_53 = arith.constant 9.99999974E-6 : f32
    %88 = vector.broadcast %cst_53 : f32 to vector<1x512xf32>
    %89 = arith.addf %87, %88 : vector<1x512xf32>
    %90 = math.rsqrt %89 : vector<1x512xf32>
    %91 = vector.broadcast %90 : vector<1x512xf32> to vector<2x512xf32>
    %92 = arith.mulf %82, %91 : vector<2x512xf32>
    %c0_54 = arith.constant 0 : index
    %c0_55 = arith.constant 0 : index
    %93 = vector.load %arg4[%c0_54, %c0_55] : memref<1x512xf32, #tpu.memory_space<vmem>>, vector<1x512xf32>
    %94 = vector.broadcast %93 : vector<1x512xf32> to vector<2x512xf32>
    %95 = arith.mulf %92, %94 : vector<2x512xf32>
    %c0_56 = arith.constant 0 : index
    %c0_57 = arith.constant 0 : index
    %96 = vector.load %arg5[%c0_56, %c0_57] : memref<1x512xf32, #tpu.memory_space<vmem>>, vector<1x512xf32>
    %97 = vector.broadcast %96 : vector<1x512xf32> to vector<2x512xf32>
    %98 = arith.addf %95, %97 : vector<2x512xf32>
    %cst_58 = arith.constant 2.000000e-01 : f32
    %99 = vector.broadcast %cst_58 : f32 to vector<2x512xf32>
    %100 = arith.mulf %99, %98 : vector<2x512xf32>
    %101 = arith.maximumf %98, %100 : vector<2x512xf32>
    %c0_59 = arith.constant 0 : index
    %c0_60 = arith.constant 0 : index
    %102 = vector.load %arg6[%c0_59, %c0_60] : memref<2x512xf32, #tpu.memory_space<vmem>>, vector<2x512xf32>
    tpu.vector_store %arg6[%c0_59, %c0_60], %101 {strides = array<i32>} : memref<2x512xf32, #tpu.memory_space<vmem>>, vector<2x512xf32>,
    return
  }
}

module attributes {stable_mosaic.version = 11 : i64} {
  func.func @dsconv_bn_pool_head_kernel(%arg0: memref<9x2x512xbf16, #tpu.memory_space<vmem>>, %arg1: memref<9x1x512xf32, #tpu.memory_space<vmem>>, %arg2: memref<512x1024xbf16, #tpu.memory_space<vmem>>, %arg3: memref<1x1024xf32, #tpu.memory_space<vmem>>, %arg4: memref<1x1024xf32, #tpu.memory_space<vmem>>, %arg5: memref<1x1024xf32, #tpu.memory_space<vmem>>, %arg6: memref<2x2xf32, #tpu.memory_space<vmem>>, %arg7: memref<1024x1xf32, #tpu.memory_space<vmem>>, %arg8: memref<1x1xf32, #tpu.memory_space<vmem>>, %arg9: memref<2x1xf32, #tpu.memory_space<vmem>>) attributes {dimension_semantics = [], scalar_prefetch = 0 : i64, scratch_operands = 0 : i64, tpu.core_type = #tpu.core_type<tc>} {
    %c0 = arith.constant 0 : index
    %c0_0 = arith.constant 0 : index
    %c0_1 = arith.constant 0 : index
    %0 = vector.load %arg0[%c0, %c0_0, %c0_1] : memref<9x2x512xbf16, #tpu.memory_space<vmem>>, vector<1x2x512xbf16>
    %1 = vector.shape_cast %0 : vector<1x2x512xbf16> to vector<2x512xbf16>
    %2 = arith.extf %1 : vector<2x512xbf16> to vector<2x512xf32>
    %c0_2 = arith.constant 0 : index
    %c0_3 = arith.constant 0 : index
    %c0_4 = arith.constant 0 : index
    %3 = vector.load %arg1[%c0_2, %c0_3, %c0_4] : memref<9x1x512xf32, #tpu.memory_space<vmem>>, vector<1x1x512xf32>
    %4 = vector.shape_cast %3 : vector<1x1x512xf32> to vector<1x512xf32>
    %5 = vector.broadcast %4 : vector<1x512xf32> to vector<2x512xf32>
    %6 = arith.mulf %2, %5 : vector<2x512xf32>
    %c1 = arith.constant 1 : index
    %c0_5 = arith.constant 0 : index
    %c0_6 = arith.constant 0 : index
    %7 = vector.load %arg0[%c1, %c0_5, %c0_6] : memref<9x2x512xbf16, #tpu.memory_space<vmem>>, vector<1x2x512xbf16>
    %8 = vector.shape_cast %7 : vector<1x2x512xbf16> to vector<2x512xbf16>
    %9 = arith.extf %8 : vector<2x512xbf16> to vector<2x512xf32>
    %c1_7 = arith.constant 1 : index
    %c0_8 = arith.constant 0 : index
    %c0_9 = arith.constant 0 : index
    %10 = vector.load %arg1[%c1_7, %c0_8, %c0_9] : memref<9x1x512xf32, #tpu.memory_space<vmem>>, vector<1x1x512xf32>
    %11 = vector.shape_cast %10 : vector<1x1x512xf32> to vector<1x512xf32>
    %12 = vector.broadcast %11 : vector<1x512xf32> to vector<2x512xf32>
    %13 = arith.mulf %9, %12 : vector<2x512xf32>
    %14 = arith.addf %6, %13 : vector<2x512xf32>
    %c2 = arith.constant 2 : index
    %c0_10 = arith.constant 0 : index
    %c0_11 = arith.constant 0 : index
    %15 = vector.load %arg0[%c2, %c0_10, %c0_11] : memref<9x2x512xbf16, #tpu.memory_space<vmem>>, vector<1x2x512xbf16>
    %16 = vector.shape_cast %15 : vector<1x2x512xbf16> to vector<2x512xbf16>
    %17 = arith.extf %16 : vector<2x512xbf16> to vector<2x512xf32>
    %c2_12 = arith.constant 2 : index
    %c0_13 = arith.constant 0 : index
    %c0_14 = arith.constant 0 : index
    %18 = vector.load %arg1[%c2_12, %c0_13, %c0_14] : memref<9x1x512xf32, #tpu.memory_space<vmem>>, vector<1x1x512xf32>
    %19 = vector.shape_cast %18 : vector<1x1x512xf32> to vector<1x512xf32>
    %20 = vector.broadcast %19 : vector<1x512xf32> to vector<2x512xf32>
    %21 = arith.mulf %17, %20 : vector<2x512xf32>
    %22 = arith.addf %14, %21 : vector<2x512xf32>
    %c3 = arith.constant 3 : index
    %c0_15 = arith.constant 0 : index
    %c0_16 = arith.constant 0 : index
    %23 = vector.load %arg0[%c3, %c0_15, %c0_16] : memref<9x2x512xbf16, #tpu.memory_space<vmem>>, vector<1x2x512xbf16>
    %24 = vector.shape_cast %23 : vector<1x2x512xbf16> to vector<2x512xbf16>
    %25 = arith.extf %24 : vector<2x512xbf16> to vector<2x512xf32>
    %c3_17 = arith.constant 3 : index
    %c0_18 = arith.constant 0 : index
    %c0_19 = arith.constant 0 : index
    %26 = vector.load %arg1[%c3_17, %c0_18, %c0_19] : memref<9x1x512xf32, #tpu.memory_space<vmem>>, vector<1x1x512xf32>
    %27 = vector.shape_cast %26 : vector<1x1x512xf32> to vector<1x512xf32>
    %28 = vector.broadcast %27 : vector<1x512xf32> to vector<2x512xf32>
    %29 = arith.mulf %25, %28 : vector<2x512xf32>
    %30 = arith.addf %22, %29 : vector<2x512xf32>
    %c4 = arith.constant 4 : index
    %c0_20 = arith.constant 0 : index
    %c0_21 = arith.constant 0 : index
    %31 = vector.load %arg0[%c4, %c0_20, %c0_21] : memref<9x2x512xbf16, #tpu.memory_space<vmem>>, vector<1x2x512xbf16>
    %32 = vector.shape_cast %31 : vector<1x2x512xbf16> to vector<2x512xbf16>
    %33 = arith.extf %32 : vector<2x512xbf16> to vector<2x512xf32>
    %c4_22 = arith.constant 4 : index
    %c0_23 = arith.constant 0 : index
    %c0_24 = arith.constant 0 : index
    %34 = vector.load %arg1[%c4_22, %c0_23, %c0_24] : memref<9x1x512xf32, #tpu.memory_space<vmem>>, vector<1x1x512xf32>
    %35 = vector.shape_cast %34 : vector<1x1x512xf32> to vector<1x512xf32>
    %36 = vector.broadcast %35 : vector<1x512xf32> to vector<2x512xf32>
    %37 = arith.mulf %33, %36 : vector<2x512xf32>
    %38 = arith.addf %30, %37 : vector<2x512xf32>
    %c5 = arith.constant 5 : index
    %c0_25 = arith.constant 0 : index
    %c0_26 = arith.constant 0 : index
    %39 = vector.load %arg0[%c5, %c0_25, %c0_26] : memref<9x2x512xbf16, #tpu.memory_space<vmem>>, vector<1x2x512xbf16>
    %40 = vector.shape_cast %39 : vector<1x2x512xbf16> to vector<2x512xbf16>
    %41 = arith.extf %40 : vector<2x512xbf16> to vector<2x512xf32>
    %c5_27 = arith.constant 5 : index
    %c0_28 = arith.constant 0 : index
    %c0_29 = arith.constant 0 : index
    %42 = vector.load %arg1[%c5_27, %c0_28, %c0_29] : memref<9x1x512xf32, #tpu.memory_space<vmem>>, vector<1x1x512xf32>
    %43 = vector.shape_cast %42 : vector<1x1x512xf32> to vector<1x512xf32>
    %44 = vector.broadcast %43 : vector<1x512xf32> to vector<2x512xf32>
    %45 = arith.mulf %41, %44 : vector<2x512xf32>
    %46 = arith.addf %38, %45 : vector<2x512xf32>
    %c6 = arith.constant 6 : index
    %c0_30 = arith.constant 0 : index
    %c0_31 = arith.constant 0 : index
    %47 = vector.load %arg0[%c6, %c0_30, %c0_31] : memref<9x2x512xbf16, #tpu.memory_space<vmem>>, vector<1x2x512xbf16>
    %48 = vector.shape_cast %47 : vector<1x2x512xbf16> to vector<2x512xbf16>
    %49 = arith.extf %48 : vector<2x512xbf16> to vector<2x512xf32>
    %c6_32 = arith.constant 6 : index
    %c0_33 = arith.constant 0 : index
    %c0_34 = arith.constant 0 : index
    %50 = vector.load %arg1[%c6_32, %c0_33, %c0_34] : memref<9x1x512xf32, #tpu.memory_space<vmem>>, vector<1x1x512xf32>
    %51 = vector.shape_cast %50 : vector<1x1x512xf32> to vector<1x512xf32>
    %52 = vector.broadcast %51 : vector<1x512xf32> to vector<2x512xf32>
    %53 = arith.mulf %49, %52 : vector<2x512xf32>
    %54 = arith.addf %46, %53 : vector<2x512xf32>
    %c7 = arith.constant 7 : index
    %c0_35 = arith.constant 0 : index
    %c0_36 = arith.constant 0 : index
    %55 = vector.load %arg0[%c7, %c0_35, %c0_36] : memref<9x2x512xbf16, #tpu.memory_space<vmem>>, vector<1x2x512xbf16>
    %56 = vector.shape_cast %55 : vector<1x2x512xbf16> to vector<2x512xbf16>
    %57 = arith.extf %56 : vector<2x512xbf16> to vector<2x512xf32>
    %c7_37 = arith.constant 7 : index
    %c0_38 = arith.constant 0 : index
    %c0_39 = arith.constant 0 : index
    %58 = vector.load %arg1[%c7_37, %c0_38, %c0_39] : memref<9x1x512xf32, #tpu.memory_space<vmem>>, vector<1x1x512xf32>
    %59 = vector.shape_cast %58 : vector<1x1x512xf32> to vector<1x512xf32>
    %60 = vector.broadcast %59 : vector<1x512xf32> to vector<2x512xf32>
    %61 = arith.mulf %57, %60 : vector<2x512xf32>
    %62 = arith.addf %54, %61 : vector<2x512xf32>
    %c8 = arith.constant 8 : index
    %c0_40 = arith.constant 0 : index
    %c0_41 = arith.constant 0 : index
    %63 = vector.load %arg0[%c8, %c0_40, %c0_41] : memref<9x2x512xbf16, #tpu.memory_space<vmem>>, vector<1x2x512xbf16>
    %64 = vector.shape_cast %63 : vector<1x2x512xbf16> to vector<2x512xbf16>
    %65 = arith.extf %64 : vector<2x512xbf16> to vector<2x512xf32>
    %c8_42 = arith.constant 8 : index
    %c0_43 = arith.constant 0 : index
    %c0_44 = arith.constant 0 : index
    %66 = vector.load %arg1[%c8_42, %c0_43, %c0_44] : memref<9x1x512xf32, #tpu.memory_space<vmem>>, vector<1x1x512xf32>
    %67 = vector.shape_cast %66 : vector<1x1x512xf32> to vector<1x512xf32>
    %68 = vector.broadcast %67 : vector<1x512xf32> to vector<2x512xf32>
    %69 = arith.mulf %65, %68 : vector<2x512xf32>
    %70 = arith.addf %62, %69 : vector<2x512xf32>
    %71 = arith.truncf %70 : vector<2x512xf32> to vector<2x512xbf16>
    %c0_45 = arith.constant 0 : index
    %c0_46 = arith.constant 0 : index
    %72 = vector.load %arg2[%c0_45, %c0_46] : memref<512x1024xbf16, #tpu.memory_space<vmem>>, vector<512x1024xbf16>
    %cst = arith.constant dense<0.000000e+00> : vector<2x1024xf32>
    %73 = tpu.matmul %71, %72, %cst {dimension_numbers = #tpu.dot_dimension_numbers<[1], [0], [0], [1], [0, 0, 1, 1], [], []>} : vector<2x512xbf16>, vector<512x1024xbf16>, vector<2x1024xf32> -> vector<2x1024xf32>
    %c0_47 = arith.constant 0 : index
    %c0_48 = arith.constant 0 : index
    %74 = vector.load %arg3[%c0_47, %c0_48] : memref<1x1024xf32, #tpu.memory_space<vmem>>, vector<1x1024xf32>
    %75 = vector.broadcast %74 : vector<1x1024xf32> to vector<2x1024xf32>
    %76 = arith.addf %73, %75 : vector<2x1024xf32>
    %cst_49 = arith.constant dense<0.000000e+00> : vector<1024xf32>
    %77 = vector.multi_reduction <add>, %76, %cst_49 [0] : vector<2x1024xf32> to vector<1024xf32>
    %78 = vector.shape_cast %77 : vector<1024xf32> to vector<1x1024xf32>
    %cst_50 = arith.constant 2.000000e+00 : f32
    %79 = vector.broadcast %cst_50 : f32 to vector<1x1024xf32>
    %80 = arith.divf %78, %79 : vector<1x1024xf32>
    %81 = vector.broadcast %80 : vector<1x1024xf32> to vector<2x1024xf32>
    %82 = arith.subf %76, %81 : vector<2x1024xf32>
    %83 = arith.mulf %82, %82 : vector<2x1024xf32>
    %cst_51 = arith.constant dense<0.000000e+00> : vector<1024xf32>
    %84 = vector.multi_reduction <add>, %83, %cst_51 [0] : vector<2x1024xf32> to vector<1024xf32>
    %85 = vector.shape_cast %84 : vector<1024xf32> to vector<1x1024xf32>
    %cst_52 = arith.constant 2.000000e+00 : f32
    %86 = vector.broadcast %cst_52 : f32 to vector<1x1024xf32>
    %87 = arith.divf %85, %86 : vector<1x1024xf32>
    %cst_53 = arith.constant 9.99999974E-6 : f32
    %88 = vector.broadcast %cst_53 : f32 to vector<1x1024xf32>
    %89 = arith.addf %87, %88 : vector<1x1024xf32>
    %90 = math.rsqrt %89 : vector<1x1024xf32>
    %91 = vector.broadcast %90 : vector<1x1024xf32> to vector<2x1024xf32>
    %92 = arith.mulf %82, %91 : vector<2x1024xf32>
    %c0_54 = arith.constant 0 : index
    %c0_55 = arith.constant 0 : index
    %93 = vector.load %arg4[%c0_54, %c0_55] : memref<1x1024xf32, #tpu.memory_space<vmem>>, vector<1x1024xf32>
    %94 = vector.broadcast %93 : vector<1x1024xf32> to vector<2x1024xf32>
    %95 = arith.mulf %92, %94 : vector<2x1024xf32>
    %c0_56 = arith.constant 0 : index
    %c0_57 = arith.constant 0 : index
    %96 = vector.load %arg5[%c0_56, %c0_57] : memref<1x1024xf32, #tpu.memory_space<vmem>>, vector<1x1024xf32>
    %97 = vector.broadcast %96 : vector<1x1024xf32> to vector<2x1024xf32>
    %98 = arith.addf %95, %97 : vector<2x1024xf32>
    %cst_58 = arith.constant 2.000000e-01 : f32
    %99 = vector.broadcast %cst_58 : f32 to vector<2x1024xf32>
    %100 = arith.mulf %99, %98 : vector<2x1024xf32>
    %101 = arith.maximumf %98, %100 : vector<2x1024xf32>
    %c0_59 = arith.constant 0 : index
    %c0_60 = arith.constant 0 : index
    %102 = vector.load %arg6[%c0_59, %c0_60] : memref<2x2xf32, #tpu.memory_space<vmem>>, vector<2x2xf32>
    %cst_61 = arith.constant dense<0.000000e+00> : vector<2x1024xf32>
    %103 = tpu.matmul %102, %101, %cst_61 {dimension_numbers = #tpu.dot_dimension_numbers<[1], [0], [0], [1], [0, 0, 1, 1], [], []>} : vector<2x2xf32>, vector<2x1024xf32>, vector<2x1024xf32> -> vector<2x1024xf32>
    %c0_62 = arith.constant 0 : index
    %c0_63 = arith.constant 0 : index
    %104 = vector.load %arg7[%c0_62, %c0_63] : memref<1024x1xf32, #tpu.memory_space<vmem>>, vector<1024x1xf32>
    %cst_64 = arith.constant dense<0.000000e+00> : vector<2x1xf32>
    %105 = tpu.matmul %103, %104, %cst_64 {dimension_numbers = #tpu.dot_dimension_numbers<[1], [0], [0], [1], [0, 0, 1, 1], [], []>} : vector<2x1024xf32>, vector<1024x1xf32>, vector<2x1xf32> -> vector<2x1xf32>
    %c0_65 = arith.constant 0 : index
    %c0_66 = arith.constant 0 : index
    %106 = vector.load %arg8[%c0_65, %c0_66] : memref<1x1xf32, #tpu.memory_space<vmem>>, vector<1x1xf32>
    %107 = vector.broadcast %106 : vector<1x1xf32> to vector<2x1xf32>
    %108 = arith.addf %105, %107 : vector<2x1xf32>
    %cst_67 = arith.constant 0.000000e+00 : f32
    %109 = vector.broadcast %cst_67 : f32 to vector<2x1xf32>
    %110 = arith.subf %109, %108 : vector<2x1xf32>
    %111 = math.exp %110 : vector<2x1xf32>
    %cst_68 = arith.constant 1.000000e+00 : f32
    %112 = vector.broadcast %cst_68 : f32 to vector<2x1xf32>
    %113 = arith.addf %112, %111 : vector<2x1xf32>
    %cst_69 = arith.constant 1.000000e+00 : f32
    %114 = vector.broadcast %cst_69 : f32 to vector<2x1xf32>
    %115 = arith.divf %114, %113 : vector<2x1xf32>
    %c0_70 = arith.constant 0 : index
    %c0_71 = arith.constant 0 : index
    %116 = vector.load %arg9[%c0_70, %c0_71] : memref<2x1xf32, #tpu.memory_space<vmem>>, vector<2x1xf32>
    tpu.vector_store %arg9[%c0_70, %c0_71], %115 {strides = array<i32>} : memref<2x1xf32, #tpu.memory_space<vmem>>, vector<2x1xf32>,
    return
  }
}

</mosaic_0001>

<llo_original>
// kernel: discriminator_forward.5
$region0: #{discriminator_forward.5}
  #allocation0 [shape = 'u32[]', space=smem, size = 0x4, offset = 0x4, fixed_abs, tag = 'smem constant byte address 0x4 - core index']
  #allocation1 [shape = 'u32[144,128]{1,0:T(1,128)}', space=vmem, size = 0x12000, scoped, tag = 'internal scratch']
  %s0 = inlined_call_operand.vmem [shape: bf16[128,32], index: 0, kind: input, shape index: {}]
  %s1 = inlined_call_operand.vmem [shape: bf16[32,64], index: 1, kind: input, shape index: {}]
  %s2 = inlined_call_operand.vmem [shape: f32[1,64], index: 2, kind: input, shape index: {}]
  %s3 = inlined_call_operand.vmem [shape: f32[128,64], index: 3, kind: output, shape index: {}]
  %s4 = sld [smem:[#allocation0]]
  $region22: #{discriminator_forward.5} parent=0
    _
  %s6 = ssub.s32 1, %s4
  %s7 = scalar_select 0, %s6, %s4
  // Predicated region
  $region2: #{discriminator_forward.5} parent=0 // pred_check
    _
  $region3: #{discriminator_forward.5} parent=0 // pred_check_branch
    %9 = sbr.rel (0) target = $region5
  $region4: #{discriminator_forward.5} parent=0 // pred_region
    _
  $region5: #{discriminator_forward.5} parent=0 // pred_fallthru
    _
  // Predicated region
  $region6: #{discriminator_forward.5} parent=0 // pred_check
    _
  $region7: #{discriminator_forward.5} parent=0 // pred_check_branch
    %11 = sbr.rel (0) target = $region9
  $region8: #{discriminator_forward.5} parent=0 // pred_region
    _
  $region9: #{discriminator_forward.5} parent=0 // pred_fallthru
    _
  // Predicated region
  $region10: #{discriminator_forward.5} parent=0 // pred_check
    _
  $region11: #{discriminator_forward.5} parent=0 // pred_check_branch
    %13 = sbr.rel (0) target = $region13
  $region12: #{discriminator_forward.5} parent=0 // pred_region
    _
  $region13: #{discriminator_forward.5} parent=0 // pred_fallthru
    _
  %v15 = vld [vmem:[%s0] sm:$0xf]
  %v16 = vld [vmem:[%s0 + $0x4] sm:$0xf]
  %v17 = vld [vmem:[%s0 + $0x8] sm:$0xf]
  %v18 = vld [vmem:[%s0 + $0xc] sm:$0xf]
  %v19 = vld [vmem:[%s0 + $0x10] sm:$0xf]
  %v20 = vld [vmem:[%s0 + $0x14] sm:$0xf]
  %v21 = vld [vmem:[%s0 + $0x18] sm:$0xf]
  %v22 = vld [vmem:[%s0 + $0x1c] sm:$0xf]
  %v23 = vld [vmem:[%s0 + $0x20] sm:$0xf]
  %v24 = vld [vmem:[%s0 + $0x24] sm:$0xf]
  %v25 = vld [vmem:[%s0 + $0x28] sm:$0xf]
  %v26 = vld [vmem:[%s0 + $0x2c] sm:$0xf]
  %v27 = vld [vmem:[%s0 + $0x30] sm:$0xf]
  %v28 = vld [vmem:[%s0 + $0x34] sm:$0xf]
  %v29 = vld [vmem:[%s0 + $0x38] sm:$0xf]
  %v30 = vld [vmem:[%s0 + $0x3c] sm:$0xf]
  %v31 = vld [vmem:[%s1] sm:$0xf]
  %v32 = vld [vmem:[%s1 + $0x4] sm:$0xf]
  %v33 = vld [vmem:[%s1 + $0x8] sm:$0xf]
  %v34 = vld [vmem:[%s1 + $0xc] sm:$0xf]
  %v35 = vld [vmem:[%s2] sm:$0x1]
  %v37 = vlaneseq
  %v38 = vshrl.u32 %v37, 7
  %v39 = vsub.s32 0, %v38
  %v40 = vrot.slane %v35, %v39
  %v58 = vunpack.c.l.b16 %v15
  %v59 = vunpack.c.l.b16 %v16
  %v60 = vunpack.c.l.b16 %v17
  %v61 = vunpack.c.l.b16 %v18
  %v62 = vunpack.c.l.b16 %v19
  %v63 = vunpack.c.l.b16 %v20
  %v64 = vunpack.c.l.b16 %v21
  %v65 = vunpack.c.l.b16 %v22
  %v66 = vunpack.c.l.b16 %v23
  %v67 = vunpack.c.l.b16 %v24
  %v68 = vunpack.c.l.b16 %v25
  %v69 = vunpack.c.l.b16 %v26
  %v70 = vunpack.c.l.b16 %v27
  %v71 = vunpack.c.l.b16 %v28
  %v72 = vunpack.c.l.b16 %v29
  %v73 = vunpack.c.l.b16 %v30
  %v74 = vpack.c.b16 %v59, %v58
  %v75 = vpack.c.b16 %v61, %v60
  %v76 = vpack.c.b16 %v63, %v62
  %v77 = vpack.c.b16 %v65, %v64
  %v78 = vpack.c.b16 %v67, %v66
  %v79 = vpack.c.b16 %v69, %v68
  %v80 = vpack.c.b16 %v71, %v70
  %v81 = vpack.c.b16 %v73, %v72
  %v86 = vunpack.c.l.b16 %v31
  %v87 = vunpack.c.l.b16 %v32
  %v88 = vunpack.c.l.b16 %v33
  %v89 = vunpack.c.l.b16 %v34
  %v90 = vpack.c.b16 %v87, %v86
  %v91 = vpack.c.b16 %v89, %v88
  %vm94 = vcmask 261120
  %v96 = vsel %vm94, %v74, 0
  %v99 = vsel %vm94, %v75, 0
  %v102 = vsel %vm94, %v76, 0
  %v105 = vsel %vm94, %v77, 0
  %v108 = vsel %vm94, %v78, 0
  %v111 = vsel %vm94, %v79, 0
  %v114 = vsel %vm94, %v80, 0
  %v117 = vsel %vm94, %v81, 0
  %119 = vmatprep.subr.bf16.mxu0 0
  %120 = vmatpush1.bf16.msra.mxu0 %v90
  %121 = vmatprep.subr.bf16.mxu0 0
  %122 = vmatpush1.bf16.msra.mxu0 %v91
  %123 = vmatprep.subr.bf16.mxu0 0
  %124 = vmatpush1.bf16.msra.mxu0 0
  %125 = vmatprep.subr.bf16.mxu0 0
  %126 = vmatpush1.bf16.msra.mxu0 0
  %127 = vmatprep.subr.bf16.mxu0 0
  %128 = vmatpush1.bf16.msra.mxu0 0
  %129 = vmatprep.subr.bf16.mxu0 0
  %130 = vmatpush1.bf16.msra.mxu0 0
  %131 = vmatprep.subr.bf16.mxu0 0
  %132 = vmatpush1.bf16.msra.mxu0 0
  %133 = vmatprep.subr.bf16.mxu0 0
  %134 = vmatpush1.bf16.msra.mxu0 0
  %135 = vmatprep.subr.bf16.mxu0 0
  %136 = vmatpush1.bf16.msra.mxu0 0
  %137 = vmatprep.subr.bf16.mxu0 0
  %138 = vmatpush1.bf16.msra.mxu0 0
  %139 = vmatprep.subr.bf16.mxu0 0
  %140 = vmatpush1.bf16.msra.mxu0 0
  %141 = vmatprep.subr.bf16.mxu0 0
  %142 = vmatpush1.bf16.msra.mxu0 0
  %143 = vmatprep.subr.bf16.mxu0 0
  %144 = vmatpush1.bf16.msra.mxu0 0
  %145 = vmatprep.subr.bf16.mxu0 0
  %146 = vmatpush1.bf16.msra.mxu0 0
  %147 = vmatprep.subr.bf16.mxu0 0
  %148 = vmatpush1.bf16.msra.mxu0 0
  %149 = vmatprep.subr.bf16.mxu0 0
  %150 = vmatpush1.bf16.msra.mxu0 0
  %151 = vmatprep.mubr.bf16.mxu0 0
  %152 = vmatmul.mubr.bf16.gmra.mrb[0].mxu0 %v96
  %v153 = vpop.f32.mrb[0].mxu0
  %v154 = vadd.f32 %v40, %v153
  %v155 = vpop.f32.mrb[0].mxu0
  %v156 = vpop.f32.mrb[0].mxu0
  %v157 = vadd.f32 %v40, %v156
  %v158 = vpop.f32.mrb[0].mxu0
  %159 = vmatprep.mubr.bf16.mxu0 0
  %160 = vmatmul.mubr.bf16.gmra.mrb[0].mxu0 %v99
  %v161 = vpop.f32.mrb[0].mxu0
  %v162 = vadd.f32 %v40, %v161
  %v163 = vpop.f32.mrb[0].mxu0
  %v164 = vpop.f32.mrb[0].mxu0
  %v165 = vadd.f32 %v40, %v164
  %v166 = vpop.f32.mrb[0].mxu0
  %167 = vmatprep.mubr.bf16.mxu0 0
  %168 = vmatmul.mubr.bf16.gmra.mrb[0].mxu0 %v102
  %v169 = vpop.f32.mrb[0].mxu0
  %v170 = vadd.f32 %v40, %v169
  %v171 = vpop.f32.mrb[0].mxu0
  %v172 = vpop.f32.mrb[0].mxu0
  %v173 = vadd.f32 %v40, %v172
  %v174 = vpop.f32.mrb[0].mxu0
  %175 = vmatprep.mubr.bf16.mxu0 0
  %176 = vmatmul.mubr.bf16.gmra.mrb[0].mxu0 %v105
  %v177 = vpop.f32.mrb[0].mxu0
  %v178 = vadd.f32 %v40, %v177
  %v179 = vpop.f32.mrb[0].mxu0
  %v180 = vpop.f32.mrb[0].mxu0
  %v181 = vadd.f32 %v40, %v180
  %v182 = vpop.f32.mrb[0].mxu0
  %183 = vmatprep.mubr.bf16.mxu0 0
  %184 = vmatmul.mubr.bf16.gmra.mrb[0].mxu0 %v108
  %v185 = vpop.f32.mrb[0].mxu0
  %v186 = vadd.f32 %v40, %v185
  %v187 = vpop.f32.mrb[0].mxu0
  %v188 = vpop.f32.mrb[0].mxu0
  %v189 = vadd.f32 %v40, %v188
  %v190 = vpop.f32.mrb[0].mxu0
  %191 = vmatprep.mubr.bf16.mxu0 0
  %192 = vmatmul.mubr.bf16.gmra.mrb[0].mxu0 %v111
  %v193 = vpop.f32.mrb[0].mxu0
  %v194 = vadd.f32 %v40, %v193
  %v195 = vpop.f32.mrb[0].mxu0
  %v196 = vpop.f32.mrb[0].mxu0
  %v197 = vadd.f32 %v40, %v196
  %v198 = vpop.f32.mrb[0].mxu0
  %199 = vmatprep.mubr.bf16.mxu0 0
  %200 = vmatmul.mubr.bf16.gmra.mrb[0].mxu0 %v114
  %v201 = vpop.f32.mrb[0].mxu0
  %v202 = vadd.f32 %v40, %v201
  %v203 = vpop.f32.mrb[0].mxu0
  %v204 = vpop.f32.mrb[0].mxu0
  %v205 = vadd.f32 %v40, %v204
  %v206 = vpop.f32.mrb[0].mxu0
  %207 = vmatprep.mubr.bf16.mxu0 0
  %208 = vmatmul.mubr.bf16.gmra.mrb[0].mxu0 %v117
  %v209 = vpop.f32.mrb[0].mxu0
  %v210 = vadd.f32 %v40, %v209
  %v211 = vpop.f32.mrb[0].mxu0
  %v212 = vpop.f32.mrb[0].mxu0
  %v213 = vadd.f32 %v40, %v212
  %v214 = vpop.f32.mrb[0].mxu0
  %215 = vdwg.mxu0
  %v216 = vmul.f32 %v154, 0.2
  %v217 = vmul.f32 %v157, 0.2
  %v218 = vmul.f32 %v162, 0.2
  %v219 = vmul.f32 %v165, 0.2
  %v220 = vmul.f32 %v170, 0.2
  %v221 = vmul.f32 %v173, 0.2
  %v222 = vmul.f32 %v178, 0.2
  %v223 = vmul.f32 %v181, 0.2
  %v224 = vmul.f32 %v186, 0.2
  %v225 = vmul.f32 %v189, 0.2
  %v226 = vmul.f32 %v194, 0.2
  %v227 = vmul.f32 %v197, 0.2
  %v228 = vmul.f32 %v202, 0.2
  %v229 = vmul.f32 %v205, 0.2
  %v230 = vmul.f32 %v210, 0.2
  %v231 = vmul.f32 %v213, 0.2
  %v232 = vmax.f32 %v154, %v216
  %v233 = vmax.f32 %v157, %v217
  %v234 = vmax.f32 %v162, %v218
  %v235 = vmax.f32 %v165, %v219
  %v236 = vmax.f32 %v170, %v220
  %v237 = vmax.f32 %v173, %v221
  %v238 = vmax.f32 %v178, %v222
  %v239 = vmax.f32 %v181, %v223
  %v240 = vmax.f32 %v186, %v224
  %v241 = vmax.f32 %v189, %v225
  %v242 = vmax.f32 %v194, %v226
  %v243 = vmax.f32 %v197, %v227
  %v244 = vmax.f32 %v202, %v228
  %v245 = vmax.f32 %v205, %v229
  %v246 = vmax.f32 %v210, %v230
  %v247 = vmax.f32 %v213, %v231
  %vm248 = vcmask 523264
  %249 = vst.msk [vmem:[%s3] sm:$0xff] %vm248, %v232
  %250 = vst.msk [vmem:[%s3 + $0x8] sm:$0xff] %vm248, %v233
  %251 = vst.msk [vmem:[%s3 + $0x10] sm:$0xff] %vm248, %v234
  %252 = vst.msk [vmem:[%s3 + $0x18] sm:$0xff] %vm248, %v235
  %253 = vst.msk [vmem:[%s3 + $0x20] sm:$0xff] %vm248, %v236
  %254 = vst.msk [vmem:[%s3 + $0x28] sm:$0xff] %vm248, %v237
  %255 = vst.msk [vmem:[%s3 + $0x30] sm:$0xff] %vm248, %v238
  %256 = vst.msk [vmem:[%s3 + $0x38] sm:$0xff] %vm248, %v239
  %257 = vst.msk [vmem:[%s3 + $0x40] sm:$0xff] %vm248, %v240
  %258 = vst.msk [vmem:[%s3 + $0x48] sm:$0xff] %vm248, %v241
  %259 = vst.msk [vmem:[%s3 + $0x50] sm:$0xff] %vm248, %v242
  %260 = vst.msk [vmem:[%s3 + $0x58] sm:$0xff] %vm248, %v243
  %261 = vst.msk [vmem:[%s3 + $0x60] sm:$0xff] %vm248, %v244
  %262 = vst.msk [vmem:[%s3 + $0x68] sm:$0xff] %vm248, %v245
  %263 = vst.msk [vmem:[%s3 + $0x70] sm:$0xff] %vm248, %v246
  %264 = vst.msk [vmem:[%s3 + $0x78] sm:$0xff] %vm248, %v247
  // Predicated region
  $region14: #{discriminator_forward.5} parent=0 // pred_check
    _
  $region15: #{discriminator_forward.5} parent=0 // pred_check_branch
    %266 = sbr.rel (0) target = $region17
  $region16: #{discriminator_forward.5} parent=0 // pred_region
    _
  $region17: #{discriminator_forward.5} parent=0 // pred_fallthru
    _
  // Predicated region
  $region18: #{discriminator_forward.5} parent=0 // pred_check
    _
  $region19: #{discriminator_forward.5} parent=0 // pred_check_branch
    %268 = sbr.rel (0) target = $region21
  $region20: #{discriminator_forward.5} parent=0 // pred_region
    _
  $region21: #{discriminator_forward.5} parent=0 // pred_fallthru
    _

// kernel: discriminator_forward.6
$region0: #{discriminator_forward.6}
  #allocation0 [shape = 'u32[]', space=smem, size = 0x4, offset = 0x4, fixed_abs, tag = 'smem constant byte address 0x4 - core index']
  #allocation1 [shape = 'u32[144,128]{1,0:T(1,128)}', space=vmem, size = 0x12000, scoped, tag = 'internal scratch']
  %s0 = inlined_call_operand.vmem [shape: bf16[9,32,64], index: 0, kind: input, shape index: {}]
  %s1 = inlined_call_operand.hbm [shape: f32[9,1,64], index: 1, kind: input, shape index: {}]
  %s2 = inlined_call_operand.vmem [shape: bf16[64,128], index: 2, kind: input, shape index: {}]
  %s3 = inlined_call_operand.vmem [shape: f32[1,128], index: 3, kind: input, shape index: {}]
  %s4 = inlined_call_operand.hbm [shape: f32[1,128], index: 4, kind: input, shape index: {}]
  %s5 = inlined_call_operand.hbm [shape: f32[1,128], index: 5, kind: input, shape index: {}]
  %s6 = inlined_call_operand.vmem [shape: f32[32,128], index: 6, kind: output, shape index: {}]
  %s7 = sld [smem:[#allocation0]]
  $region46: #{discriminator_forward.6} parent=0
    _
  %s9 = ssub.s32 1, %s7
  %s10 = scalar_select 0, %s9, %s7
  $region1: #{discriminator_forward.6} parent=0
    #allocation2 [shape = 'u8[4608]{0}', space=vmem, size = 0x1400, scoped, tag = 'input window, operand 1, single buffered']
    #allocation3 [shape = 's32[1]{0}', space=sflag, size = 0x4, scoped, tag = 'scoped memory for discriminator_forward.6']
    #allocation4 [shape = 'u8[512]{0}', space=vmem, size = 0x400, scoped, tag = 'input window, operand 4, single buffered']
    #allocation5 [shape = 's32[1]{0}', space=sflag, size = 0x4, scoped, tag = 'scoped memory for discriminator_forward.6']
    #allocation6 [shape = 'u8[512]{0}', space=vmem, size = 0x400, scoped, tag = 'input window, operand 5, single buffered']
    %11 = vsyncpa [#allocation3], 0
    %12 = vsyncpa [#allocation5], 0
    // Predicated region
    $region2: #{discriminator_forward.6} parent=1 // pred_check
      _
    $region3: #{discriminator_forward.6} parent=1 // pred_check_branch
      %14 = sbr.rel (0) target = $region5
    $region4: #{discriminator_forward.6} parent=1 // pred_region
      _
    $region5: #{discriminator_forward.6} parent=1 // pred_fallthru
      _
    // Predicated region
    $region6: #{discriminator_forward.6} parent=1 // pred_check
      _
    $region7: #{discriminator_forward.6} parent=1 // pred_check_branch
      %16 = sbr.rel (0) target = $region9
    $region8: #{discriminator_forward.6} parent=1 // pred_region
      %s18 = ssub.s32 144, 144
      %19 = vsyncadd [#allocation3], %s18
      %s20 = sshll.u32 [#allocation2], 4
      %s21 = int_to_ptr.vmem [resolvable:$true] %s20
      %26 = dma.hbm_to_vmem [thread:$0]  %s1, 144, %s21, [#allocation3], 16, 16, 1
    $region9: #{discriminator_forward.6} parent=1 // pred_fallthru
      _
    // Predicated region
    $region10: #{discriminator_forward.6} parent=1 // pred_check
      _
    $region11: #{discriminator_forward.6} parent=1 // pred_check_branch
      %28 = sbr.rel (0) target = $region13
    $region12: #{discriminator_forward.6} parent=1 // pred_region
      _
    $region13: #{discriminator_forward.6} parent=1 // pred_fallthru
      _
    // Predicated region
    $region14: #{discriminator_forward.6} parent=1 // pred_check
      _
    $region15: #{discriminator_forward.6} parent=1 // pred_check_branch
      %30 = sbr.rel (0) target = $region17
    $region16: #{discriminator_forward.6} parent=1 // pred_region
      _
    $region17: #{discriminator_forward.6} parent=1 // pred_fallthru
      _
    // Predicated region
    $region18: #{discriminator_forward.6} parent=1 // pred_check
      _
    $region19: #{discriminator_forward.6} parent=1 // pred_check_branch
      %32 = sbr.rel (0) target = $region21
    $region20: #{discriminator_forward.6} parent=1 // pred_region
      %s34 = ssub.s32 16, 16
      %35 = vsyncadd [#allocation5], %s34
      %s37 = sshll.u32 [#allocation4], 4
      %s38 = int_to_ptr.vmem [resolvable:$true] %s37
      %40 = dma.hbm_to_vmem [thread:$0]  %s4, 16, %s38, [#allocation5]
    $region21: #{discriminator_forward.6} parent=1 // pred_fallthru
      _
    // Predicated region
    $region22: #{discriminator_forward.6} parent=1 // pred_check
      _
    $region23: #{discriminator_forward.6} parent=1 // pred_check_branch
      %42 = sbr.rel (0) target = $region25
    $region24: #{discriminator_forward.6} parent=1 // pred_region
      %s44 = ssub.s32 16, 16
      %45 = vsyncadd [#allocation5], %s44
      %s47 = sshll.u32 [#allocation6], 4
      %s48 = int_to_ptr.vmem [resolvable:$true] %s47
      %50 = dma.hbm_to_vmem [thread:$0]  %s5, 16, %s48, [#allocation5]
    $region25: #{discriminator_forward.6} parent=1 // pred_fallthru
      _
    // Predicated region
    $region26: #{discriminator_forward.6} parent=1 // pred_check
      _
    $region27: #{discriminator_forward.6} parent=1 // pred_check_branch
      %52 = sbr.rel (0) target = $region29
    $region28: #{discriminator_forward.6} parent=1 // pred_region
      %53 = dma.done [#allocation3], 144
    $region29: #{discriminator_forward.6} parent=1 // pred_fallthru
      _
    // Predicated region
    $region30: #{discriminator_forward.6} parent=1 // pred_check
      _
    $region31: #{discriminator_forward.6} parent=1 // pred_check_branch
      %55 = sbr.rel (0) target = $region33
    $region32: #{discriminator_forward.6} parent=1 // pred_region
      %56 = dma.done [#allocation5], 16
    $region33: #{discriminator_forward.6} parent=1 // pred_fallthru
      _
    // Predicated region
    $region34: #{discriminator_forward.6} parent=1 // pred_check
      _
    $region35: #{discriminator_forward.6} parent=1 // pred_check_branch
      %58 = sbr.rel (0) target = $region37
    $region36: #{discriminator_forward.6} parent=1 // pred_region
      %59 = dma.done [#allocation5], 16
    $region37: #{discriminator_forward.6} parent=1 // pred_fallthru
      _
    %v61 = vld [vmem:[%s0] sm:$0xf]
    %v62 = vld [vmem:[%s0 + $0x4] sm:$0xf]
    %v63 = vld [vmem:[%s0 + $0x8] sm:$0xf]
    %v64 = vld [vmem:[%s0 + $0xc] sm:$0xf]
    %v65 = vunpack.c.l.bf16 %v61
    %v66 = vunpack.c.l.bf16 %v62
    %v67 = vunpack.c.l.bf16 %v63
    %v68 = vunpack.c.l.bf16 %v64
    %v69 = vld [vmem:[#allocation2] sm:$0x1]
    %v71 = vlaneseq
    %v72 = vshrl.u32 %v71, 7
    %v73 = vsub.s32 0, %v72
    %v74 = vrot.slane %v69, %v73
    %v76 = vmul.f32 %v65, %v74
    %v77 = vmul.f32 %v66, %v74
    %v78 = vmul.f32 %v67, %v74
    %v79 = vmul.f32 %v68, %v74
    %s80 = scalar_lea.vmem %s0, 16
    %v81 = vld [vmem:[%s80] sm:$0xf]
    %v82 = vld [vmem:[%s80 + $0x4] sm:$0xf]
    %v83 = vld [vmem:[%s80 + $0x8] sm:$0xf]
    %v84 = vld [vmem:[%s80 + $0xc] sm:$0xf]
    %v85 = vunpack.c.l.bf16 %v81
    %v86 = vunpack.c.l.bf16 %v82
    %v87 = vunpack.c.l.bf16 %v83
    %v88 = vunpack.c.l.bf16 %v84
    %s89 = scalar_lea.vmem [#allocation2], 1
    %v90 = vld [vmem:[%s89] sm:$0x1]
    %v92 = vlaneseq
    %v93 = vshrl.u32 %v92, 7
    %v94 = vsub.s32 0, %v93
    %v95 = vrot.slane %v90, %v94
    %v97 = vmul.f32 %v85, %v95
    %v98 = vmul.f32 %v86, %v95
    %v99 = vmul.f32 %v87, %v95
    %v100 = vmul.f32 %v88, %v95
    %v101 = vadd.f32 %v76, %v97
    %v102 = vadd.f32 %v77, %v98
    %v103 = vadd.f32 %v78, %v99
    %v104 = vadd.f32 %v79, %v100
    %s105 = scalar_lea.vmem %s0, 32
    %v106 = vld [vmem:[%s105] sm:$0xf]
    %v107 = vld [vmem:[%s105 + $0x4] sm:$0xf]
    %v108 = vld [vmem:[%s105 + $0x8] sm:$0xf]
    %v109 = vld [vmem:[%s105 + $0xc] sm:$0xf]
    %v110 = vunpack.c.l.bf16 %v106
    %v111 = vunpack.c.l.bf16 %v107
    %v112 = vunpack.c.l.bf16 %v108
    %v113 = vunpack.c.l.bf16 %v109
    %s114 = scalar_lea.vmem [#allocation2], 2
    %v115 = vld [vmem:[%s114] sm:$0x1]
    %v117 = vlaneseq
    %v118 = vshrl.u32 %v117, 7
    %v119 = vsub.s32 0, %v118
    %v120 = vrot.slane %v115, %v119
    %v122 = vmul.f32 %v110, %v120
    %v123 = vmul.f32 %v111, %v120
    %v124 = vmul.f32 %v112, %v120
    %v125 = vmul.f32 %v113, %v120
    %v126 = vadd.f32 %v101, %v122
    %v127 = vadd.f32 %v102, %v123
    %v128 = vadd.f32 %v103, %v124
    %v129 = vadd.f32 %v104, %v125
    %s130 = scalar_lea.vmem %s0, 48
    %v131 = vld [vmem:[%s130] sm:$0xf]
    %v132 = vld [vmem:[%s130 + $0x4] sm:$0xf]
    %v133 = vld [vmem:[%s130 + $0x8] sm:$0xf]
    %v134 = vld [vmem:[%s130 + $0xc] sm:$0xf]
    %v135 = vunpack.c.l.bf16 %v131
    %v136 = vunpack.c.l.bf16 %v132
    %v137 = vunpack.c.l.bf16 %v133
    %v138 = vunpack.c.l.bf16 %v134
    %s139 = scalar_lea.vmem [#allocation2], 3
    %v140 = vld [vmem:[%s139] sm:$0x1]
    %v142 = vlaneseq
    %v143 = vshrl.u32 %v142, 7
    %v144 = vsub.s32 0, %v143
    %v145 = vrot.slane %v140, %v144
    %v147 = vmul.f32 %v135, %v145
    %v148 = vmul.f32 %v136, %v145
    %v149 = vmul.f32 %v137, %v145
    %v150 = vmul.f32 %v138, %v145
    %v151 = vadd.f32 %v126, %v147
    %v152 = vadd.f32 %v127, %v148
    %v153 = vadd.f32 %v128, %v149
    %v154 = vadd.f32 %v129, %v150
    %s155 = scalar_lea.vmem %s0, 64
    %v156 = vld [vmem:[%s155] sm:$0xf]
    %v157 = vld [vmem:[%s155 + $0x4] sm:$0xf]
    %v158 = vld [vmem:[%s155 + $0x8] sm:$0xf]
    %v159 = vld [vmem:[%s155 + $0xc] sm:$0xf]
    %v160 = vunpack.c.l.bf16 %v156
    %v161 = vunpack.c.l.bf16 %v157
    %v162 = vunpack.c.l.bf16 %v158
    %v163 = vunpack.c.l.bf16 %v159
    %s164 = scalar_lea.vmem [#allocation2], 4
    %v165 = vld [vmem:[%s164] sm:$0x1]
    %v167 = vlaneseq
    %v168 = vshrl.u32 %v167, 7
    %v169 = vsub.s32 0, %v168
    %v170 = vrot.slane %v165, %v169
    %v172 = vmul.f32 %v160, %v170
    %v173 = vmul.f32 %v161, %v170
    %v174 = vmul.f32 %v162, %v170
    %v175 = vmul.f32 %v163, %v170
    %v176 = vadd.f32 %v151, %v172
    %v177 = vadd.f32 %v152, %v173
    %v178 = vadd.f32 %v153, %v174
    %v179 = vadd.f32 %v154, %v175
    %s180 = scalar_lea.vmem %s0, 80
    %v181 = vld [vmem:[%s180] sm:$0xf]
    %v182 = vld [vmem:[%s180 + $0x4] sm:$0xf]
    %v183 = vld [vmem:[%s180 + $0x8] sm:$0xf]
    %v184 = vld [vmem:[%s180 + $0xc] sm:$0xf]
    %v185 = vunpack.c.l.bf16 %v181
    %v186 = vunpack.c.l.bf16 %v182
    %v187 = vunpack.c.l.bf16 %v183
    %v188 = vunpack.c.l.bf16 %v184
    %s189 = scalar_lea.vmem [#allocation2], 5
    %v190 = vld [vmem:[%s189] sm:$0x1]
    %v192 = vlaneseq
    %v193 = vshrl.u32 %v192, 7
    %v194 = vsub.s32 0, %v193
    %v195 = vrot.slane %v190, %v194
    %v197 = vmul.f32 %v185, %v195
    %v198 = vmul.f32 %v186, %v195
    %v199 = vmul.f32 %v187, %v195
    %v200 = vmul.f32 %v188, %v195
    %v201 = vadd.f32 %v176, %v197
    %v202 = vadd.f32 %v177, %v198
    %v203 = vadd.f32 %v178, %v199
    %v204 = vadd.f32 %v179, %v200
    %s205 = scalar_lea.vmem %s0, 96
    %v206 = vld [vmem:[%s205] sm:$0xf]
    %v207 = vld [vmem:[%s205 + $0x4] sm:$0xf]
    %v208 = vld [vmem:[%s205 + $0x8] sm:$0xf]
    %v209 = vld [vmem:[%s205 + $0xc] sm:$0xf]
    %v210 = vunpack.c.l.bf16 %v206
    %v211 = vunpack.c.l.bf16 %v207
    %v212 = vunpack.c.l.bf16 %v208
    %v213 = vunpack.c.l.bf16 %v209
    %s214 = scalar_lea.vmem [#allocation2], 6
    %v215 = vld [vmem:[%s214] sm:$0x1]
    %v217 = vlaneseq
    %v218 = vshrl.u32 %v217, 7
    %v219 = vsub.s32 0, %v218
    %v220 = vrot.slane %v215, %v219
    %v222 = vmul.f32 %v210, %v220
    %v223 = vmul.f32 %v211, %v220
    %v224 = vmul.f32 %v212, %v220
    %v225 = vmul.f32 %v213, %v220
    %v226 = vadd.f32 %v201, %v222
    %v227 = vadd.f32 %v202, %v223
    %v228 = vadd.f32 %v203, %v224
    %v229 = vadd.f32 %v204, %v225
    %s230 = scalar_lea.vmem %s0, 112
    %v231 = vld [vmem:[%s230] sm:$0xf]
    %v232 = vld [vmem:[%s230 + $0x4] sm:$0xf]
    %v233 = vld [vmem:[%s230 + $0x8] sm:$0xf]
    %v234 = vld [vmem:[%s230 + $0xc] sm:$0xf]
    %v235 = vunpack.c.l.bf16 %v231
    %v236 = vunpack.c.l.bf16 %v232
    %v237 = vunpack.c.l.bf16 %v233
    %v238 = vunpack.c.l.bf16 %v234
    %s239 = scalar_lea.vmem [#allocation2], 7
    %v240 = vld [vmem:[%s239] sm:$0x1]
    %v242 = vlaneseq
    %v243 = vshrl.u32 %v242, 7
    %v244 = vsub.s32 0, %v243
    %v245 = vrot.slane %v240, %v244
    %v247 = vmul.f32 %v235, %v245
    %v248 = vmul.f32 %v236, %v245
    %v249 = vmul.f32 %v237, %v245
    %v250 = vmul.f32 %v238, %v245
    %v251 = vadd.f32 %v226, %v247
    %v252 = vadd.f32 %v227, %v248
    %v253 = vadd.f32 %v228, %v249
    %v254 = vadd.f32 %v229, %v250
    %s255 = scalar_lea.vmem %s0, 128
    %v256 = vld [vmem:[%s255] sm:$0xf]
    %v257 = vld [vmem:[%s255 + $0x4] sm:$0xf]
    %v258 = vld [vmem:[%s255 + $0x8] sm:$0xf]
    %v259 = vld [vmem:[%s255 + $0xc] sm:$0xf]
    %v260 = vunpack.c.l.bf16 %v256
    %v261 = vunpack.c.l.bf16 %v257
    %v262 = vunpack.c.l.bf16 %v258
    %v263 = vunpack.c.l.bf16 %v259
    %s264 = scalar_lea.vmem [#allocation2], 8
    %v265 = vld [vmem:[%s264] sm:$0x1]
    %v267 = vlaneseq
    %v268 = vshrl.u32 %v267, 7
    %v269 = vsub.s32 0, %v268
    %v270 = vrot.slane %v265, %v269
    %v272 = vmul.f32 %v260, %v270
    %v273 = vmul.f32 %v261, %v270
    %v274 = vmul.f32 %v262, %v270
    %v275 = vmul.f32 %v263, %v270
    %v276 = vadd.f32 %v251, %v272
    %v277 = vadd.f32 %v252, %v273
    %v278 = vadd.f32 %v253, %v274
    %v279 = vadd.f32 %v254, %v275
    %v280 = vpack.c.bf16 %v277, %v276
    %v281 = vpack.c.bf16 %v279, %v278
    %v282 = vld [vmem:[%s2] sm:$0xf]
    %v283 = vld [vmem:[%s2 + $0x4] sm:$0xf]
    %v284 = vld [vmem:[%s2 + $0x8] sm:$0xf]
    %v285 = vld [vmem:[%s2 + $0xc] sm:$0xf]
    %v286 = vld [vmem:[%s2 + $0x10] sm:$0xf]
    %v287 = vld [vmem:[%s2 + $0x14] sm:$0xf]
    %v288 = vld [vmem:[%s2 + $0x18] sm:$0xf]
    %v289 = vld [vmem:[%s2 + $0x1c] sm:$0xf]
    %v290 = vld [vmem:[%s3] sm:$0x1]
    %v292 = vlaneseq
    %v293 = vshrl.u32 %v292, 7
    %v294 = vsub.s32 0, %v293
    %v295 = vrot.slane %v290, %v294
    %v305 = vunpack.c.l.b16 %v282
    %v306 = vunpack.c.l.b16 %v283
    %v307 = vunpack.c.l.b16 %v284
    %v308 = vunpack.c.l.b16 %v285
    %v309 = vunpack.c.l.b16 %v286
    %v310 = vunpack.c.l.b16 %v287
    %v311 = vunpack.c.l.b16 %v288
    %v312 = vunpack.c.l.b16 %v289
    %v313 = vpack.c.b16 %v306, %v305
    %v314 = vpack.c.b16 %v308, %v307
    %v315 = vpack.c.b16 %v310, %v309
    %v316 = vpack.c.b16 %v312, %v311
    %vm321 = vcmask 523264
    %v323 = vsel %vm321, %v280, 0
    %v326 = vsel %vm321, %v281, 0
    %328 = vmatprep.subr.bf16.mxu0 0
    %329 = vmatpush1.bf16.msra.mxu0 %v313
    %330 = vmatprep.subr.bf16.mxu0 0
    %331 = vmatpush1.bf16.msra.mxu0 %v314
    %332 = vmatprep.subr.bf16.mxu0 0
    %333 = vmatpush1.bf16.msra.mxu0 %v315
    %334 = vmatprep.subr.bf16.mxu0 0
    %335 = vmatpush1.bf16.msra.mxu0 %v316
    %336 = vmatprep.subr.bf16.mxu0 0
    %337 = vmatpush1.bf16.msra.mxu0 0
    %338 = vmatprep.subr.bf16.mxu0 0
    %339 = vmatpush1.bf16.msra.mxu0 0
    %340 = vmatprep.subr.bf16.mxu0 0
    %341 = vmatpush1.bf16.msra.mxu0 0
    %342 = vmatprep.subr.bf16.mxu0 0
    %343 = vmatpush1.bf16.msra.mxu0 0
    %344 = vmatprep.subr.bf16.mxu0 0
    %345 = vmatpush1.bf16.msra.mxu0 0
    %346 = vmatprep.subr.bf16.mxu0 0
    %347 = vmatpush1.bf16.msra.mxu0 0
    %348 = vmatprep.subr.bf16.mxu0 0
    %349 = vmatpush1.bf16.msra.mxu0 0
    %350 = vmatprep.subr.bf16.mxu0 0
    %351 = vmatpush1.bf16.msra.mxu0 0
    %352 = vmatprep.subr.bf16.mxu0 0
    %353 = vmatpush1.bf16.msra.mxu0 0
    %354 = vmatprep.subr.bf16.mxu0 0
    %355 = vmatpush1.bf16.msra.mxu0 0
    %356 = vmatprep.subr.bf16.mxu0 0
    %357 = vmatpush1.bf16.msra.mxu0 0
    %358 = vmatprep.subr.bf16.mxu0 0
    %359 = vmatpush1.bf16.msra.mxu0 0
    %360 = vmatprep.mubr.bf16.mxu0 0
    %361 = vmatmul.mubr.bf16.gmra.mrb[0].mxu0 %v323
    %v362 = vpop.f32.mrb[0].mxu0
    %v363 = vadd.f32 %v295, %v362
    %v364 = vpop.f32.mrb[0].mxu0
    %v365 = vpop.f32.mrb[0].mxu0
    %v366 = vadd.f32 %v295, %v365
    %v367 = vpop.f32.mrb[0].mxu0
    %368 = vmatprep.mubr.bf16.mxu0 0
    %369 = vmatmul.mubr.bf16.gmra.mrb[0].mxu0 %v326
    %v370 = vpop.f32.mrb[0].mxu0
    %v371 = vadd.f32 %v295, %v370
    %v372 = vpop.f32.mrb[0].mxu0
    %v373 = vpop.f32.mrb[0].mxu0
    %v374 = vadd.f32 %v295, %v373
    %v375 = vpop.f32.mrb[0].mxu0
    %376 = vdwg.mxu0
    %v377 = vadd.f32 %v363, %v366
    %v378 = vadd.f32 %v377, %v371
    %v379 = vadd.f32 %v378, %v374
    %v380 = vrot.slane %v379, 4
    %v381 = vadd.f32 %v379, %v380
    %v382 = vrot.slane %v381, 2
    %v383 = vadd.f32 %v381, %v382
    %v384 = vrot.slane %v383, 1
    %v385 = vadd.f32 %v383, %v384
    %v386 = vrcp.pop 32.0
    %v387 = vmul.f32 %v385, %v386
    %v388 = vsub.f32 %v363, %v387
    %v389 = vsub.f32 %v366, %v387
    %v390 = vsub.f32 %v371, %v387
    %v391 = vsub.f32 %v374, %v387
    %v392 = vmul.f32 %v388, %v388
    %v393 = vmul.f32 %v389, %v389
    %v394 = vmul.f32 %v390, %v390
    %v395 = vmul.f32 %v391, %v391
    %v396 = vadd.f32 %v392, %v393
    %v397 = vadd.f32 %v396, %v394
    %v398 = vadd.f32 %v397, %v395
    %v399 = vrot.slane %v398, 4
    %v400 = vadd.f32 %v398, %v399
    %v401 = vrot.slane %v400, 2
    %v402 = vadd.f32 %v400, %v401
    %v403 = vrot.slane %v402, 1
    %v404 = vadd.f32 %v402, %v403
    %v405 = vmul.f32 %v404, %v386
    %v406 = vadd.f32 %v405, 1e-05
    %v407 = vrsqrt.pop %v406
    %v408 = vmul.f32 %v388, %v407
    %v409 = vmul.f32 %v389, %v407
    %v410 = vmul.f32 %v390, %v407
    %v411 = vmul.f32 %v391, %v407
    %v412 = vld [vmem:[#allocation4] sm:$0x1]
    %v414 = vlaneseq
    %v415 = vshrl.u32 %v414, 7
    %v416 = vsub.s32 0, %v415
    %v417 = vrot.slane %v412, %v416
    %v419 = vmul.f32 %v408, %v417
    %v420 = vmul.f32 %v409, %v417
    %v421 = vmul.f32 %v410, %v417
    %v422 = vmul.f32 %v411, %v417
    %v423 = vld [vmem:[#allocation6] sm:$0x1]
    %v425 = vlaneseq
    %v426 = vshrl.u32 %v425, 7
    %v427 = vsub.s32 0, %v426
    %v428 = vrot.slane %v423, %v427
    %v430 = vadd.f32 %v419, %v428
    %v431 = vadd.f32 %v420, %v428
    %v432 = vadd.f32 %v421, %v428
    %v433 = vadd.f32 %v422, %v428
    %v434 = vmul.f32 %v430, 0.2
    %v435 = vmul.f32 %v431, 0.2
    %v436 = vmul.f32 %v432, 0.2
    %v437 = vmul.f32 %v433, 0.2
    %v438 = vmax.f32 %v430, %v434
    %v439 = vmax.f32 %v431, %v435
    %v440 = vmax.f32 %v432, %v436
    %v441 = vmax.f32 %v433, %v437
    %442 = vst [vmem:[%s6] sm:$0xff] %v438
    %443 = vst [vmem:[%s6 + $0x8] sm:$0xff] %v439
    %444 = vst [vmem:[%s6 + $0x10] sm:$0xff] %v440
    %445 = vst [vmem:[%s6 + $0x18] sm:$0xff] %v441
    // Predicated region
    $region38: #{discriminator_forward.6} parent=1 // pred_check
      _
    $region39: #{discriminator_forward.6} parent=1 // pred_check_branch
      %447 = sbr.rel (0) target = $region41
    $region40: #{discriminator_forward.6} parent=1 // pred_region
      _
    $region41: #{discriminator_forward.6} parent=1 // pred_fallthru
      _
    // Predicated region
    $region42: #{discriminator_forward.6} parent=1 // pred_check
      _
    $region43: #{discriminator_forward.6} parent=1 // pred_check_branch
      %449 = sbr.rel (0) target = $region45
    $region44: #{discriminator_forward.6} parent=1 // pred_region
      _
    $region45: #{discriminator_forward.6} parent=1 // pred_fallthru
      _
    %450 = vsyncpa [#allocation3], 1
    %451 = vsyncpa [#allocation5], 1

// kernel: discriminator_forward.7
$region0: #{discriminator_forward.7}
  #allocation0 [shape = 'u32[]', space=smem, size = 0x4, offset = 0x4, fixed_abs, tag = 'smem constant byte address 0x4 - core index']
  #allocation1 [shape = 'u32[144,128]{1,0:T(1,128)}', space=vmem, size = 0x12000, scoped, tag = 'internal scratch']
  %s0 = inlined_call_operand.vmem [shape: bf16[9,8,128], index: 0, kind: input, shape index: {}]
  %s1 = inlined_call_operand.hbm [shape: f32[9,1,128], index: 1, kind: input, shape index: {}]
  %s2 = inlined_call_operand.vmem [shape: bf16[128,256], index: 2, kind: input, shape index: {}]
  %s3 = inlined_call_operand.vmem [shape: f32[1,256], index: 3, kind: input, shape index: {}]
  %s4 = inlined_call_operand.hbm [shape: f32[1,256], index: 4, kind: input, shape index: {}]
  %s5 = inlined_call_operand.hbm [shape: f32[1,256], index: 5, kind: input, shape index: {}]
  %s6 = inlined_call_operand.vmem [shape: f32[8,256], index: 6, kind: output, shape index: {}]
  %s7 = sld [smem:[#allocation0]]
  $region46: #{discriminator_forward.7} parent=0
    _
  %s9 = ssub.s32 1, %s7
  %s10 = scalar_select 0, %s9, %s7
  $region1: #{discriminator_forward.7} parent=0
    #allocation2 [shape = 'u8[4608]{0}', space=vmem, size = 0x1400, scoped, tag = 'input window, operand 1, single buffered']
    #allocation3 [shape = 's32[1]{0}', space=sflag, size = 0x4, scoped, tag = 'scoped memory for discriminator_forward.7']
    #allocation4 [shape = 'u8[1024]{0}', space=vmem, size = 0x400, scoped, tag = 'input window, operand 4, single buffered']
    #allocation5 [shape = 's32[1]{0}', space=sflag, size = 0x4, scoped, tag = 'scoped memory for discriminator_forward.7']
    #allocation6 [shape = 'u8[1024]{0}', space=vmem, size = 0x400, scoped, tag = 'input window, operand 5, single buffered']
    %11 = vsyncpa [#allocation3], 0
    %12 = vsyncpa [#allocation5], 0
    // Predicated region
    $region2: #{discriminator_forward.7} parent=1 // pred_check
      _
    $region3: #{discriminator_forward.7} parent=1 // pred_check_branch
      %14 = sbr.rel (0) target = $region5
    $region4: #{discriminator_forward.7} parent=1 // pred_region
      _
    $region5: #{discriminator_forward.7} parent=1 // pred_fallthru
      _
    // Predicated region
    $region6: #{discriminator_forward.7} parent=1 // pred_check
      _
    $region7: #{discriminator_forward.7} parent=1 // pred_check_branch
      %16 = sbr.rel (0) target = $region9
    $region8: #{discriminator_forward.7} parent=1 // pred_region
      %s18 = ssub.s32 144, 144
      %19 = vsyncadd [#allocation3], %s18
      %s20 = sshll.u32 [#allocation2], 4
      %s21 = int_to_ptr.vmem [resolvable:$true] %s20
      %26 = dma.hbm_to_vmem [thread:$0]  %s1, 144, %s21, [#allocation3], 16, 16, 1
    $region9: #{discriminator_forward.7} parent=1 // pred_fallthru
      _
    // Predicated region
    $region10: #{discriminator_forward.7} parent=1 // pred_check
      _
    $region11: #{discriminator_forward.7} parent=1 // pred_check_branch
      %28 = sbr.rel (0) target = $region13
    $region12: #{discriminator_forward.7} parent=1 // pred_region
      _
    $region13: #{discriminator_forward.7} parent=1 // pred_fallthru
      _
    // Predicated region
    $region14: #{discriminator_forward.7} parent=1 // pred_check
      _
    $region15: #{discriminator_forward.7} parent=1 // pred_check_branch
      %30 = sbr.rel (0) target = $region17
    $region16: #{discriminator_forward.7} parent=1 // pred_region
      _
    $region17: #{discriminator_forward.7} parent=1 // pred_fallthru
      _
    // Predicated region
    $region18: #{discriminator_forward.7} parent=1 // pred_check
      _
    $region19: #{discriminator_forward.7} parent=1 // pred_check_branch
      %32 = sbr.rel (0) target = $region21
    $region20: #{discriminator_forward.7} parent=1 // pred_region
      %s34 = ssub.s32 32, 32
      %35 = vsyncadd [#allocation5], %s34
      %s37 = sshll.u32 [#allocation4], 4
      %s38 = int_to_ptr.vmem [resolvable:$true] %s37
      %40 = dma.hbm_to_vmem [thread:$0]  %s4, 32, %s38, [#allocation5]
    $region21: #{discriminator_forward.7} parent=1 // pred_fallthru
      _
    // Predicated region
    $region22: #{discriminator_forward.7} parent=1 // pred_check
      _
    $region23: #{discriminator_forward.7} parent=1 // pred_check_branch
      %42 = sbr.rel (0) target = $region25
    $region24: #{discriminator_forward.7} parent=1 // pred_region
      %s44 = ssub.s32 32, 32
      %45 = vsyncadd [#allocation5], %s44
      %s47 = sshll.u32 [#allocation6], 4
      %s48 = int_to_ptr.vmem [resolvable:$true] %s47
      %50 = dma.hbm_to_vmem [thread:$0]  %s5, 32, %s48, [#allocation5]
    $region25: #{discriminator_forward.7} parent=1 // pred_fallthru
      _
    // Predicated region
    $region26: #{discriminator_forward.7} parent=1 // pred_check
      _
    $region27: #{discriminator_forward.7} parent=1 // pred_check_branch
      %52 = sbr.rel (0) target = $region29
    $region28: #{discriminator_forward.7} parent=1 // pred_region
      %53 = dma.done [#allocation3], 144
    $region29: #{discriminator_forward.7} parent=1 // pred_fallthru
      _
    // Predicated region
    $region30: #{discriminator_forward.7} parent=1 // pred_check
      _
    $region31: #{discriminator_forward.7} parent=1 // pred_check_branch
      %55 = sbr.rel (0) target = $region33
    $region32: #{discriminator_forward.7} parent=1 // pred_region
      %56 = dma.done [#allocation5], 32
    $region33: #{discriminator_forward.7} parent=1 // pred_fallthru
      _
    // Predicated region
    $region34: #{discriminator_forward.7} parent=1 // pred_check
      _
    $region35: #{discriminator_forward.7} parent=1 // pred_check_branch
      %58 = sbr.rel (0) target = $region37
    $region36: #{discriminator_forward.7} parent=1 // pred_region
      %59 = dma.done [#allocation5], 32
    $region37: #{discriminator_forward.7} parent=1 // pred_fallthru
      _
    %v61 = vld [vmem:[%s0] sm:$0xf]
    %v62 = vunpack.c.l.bf16 %v61
    %v63 = vld [vmem:[#allocation2] sm:$0x1]
    %v65 = vlaneseq
    %v66 = vshrl.u32 %v65, 7
    %v67 = vsub.s32 0, %v66
    %v68 = vrot.slane %v63, %v67
    %v70 = vmul.f32 %v62, %v68
    %s71 = scalar_lea.vmem %s0, 4
    %v72 = vld [vmem:[%s71] sm:$0xf]
    %v73 = vunpack.c.l.bf16 %v72
    %s74 = scalar_lea.vmem [#allocation2], 1
    %v75 = vld [vmem:[%s74] sm:$0x1]
    %v77 = vlaneseq
    %v78 = vshrl.u32 %v77, 7
    %v79 = vsub.s32 0, %v78
    %v80 = vrot.slane %v75, %v79
    %v82 = vmul.f32 %v73, %v80
    %v83 = vadd.f32 %v70, %v82
    %s84 = scalar_lea.vmem %s0, 8
    %v85 = vld [vmem:[%s84] sm:$0xf]
    %v86 = vunpack.c.l.bf16 %v85
    %s87 = scalar_lea.vmem [#allocation2], 2
    %v88 = vld [vmem:[%s87] sm:$0x1]
    %v90 = vlaneseq
    %v91 = vshrl.u32 %v90, 7
    %v92 = vsub.s32 0, %v91
    %v93 = vrot.slane %v88, %v92
    %v95 = vmul.f32 %v86, %v93
    %v96 = vadd.f32 %v83, %v95
    %s97 = scalar_lea.vmem %s0, 12
    %v98 = vld [vmem:[%s97] sm:$0xf]
    %v99 = vunpack.c.l.bf16 %v98
    %s100 = scalar_lea.vmem [#allocation2], 3
    %v101 = vld [vmem:[%s100] sm:$0x1]
    %v103 = vlaneseq
    %v104 = vshrl.u32 %v103, 7
    %v105 = vsub.s32 0, %v104
    %v106 = vrot.slane %v101, %v105
    %v108 = vmul.f32 %v99, %v106
    %v109 = vadd.f32 %v96, %v108
    %s110 = scalar_lea.vmem %s0, 16
    %v111 = vld [vmem:[%s110] sm:$0xf]
    %v112 = vunpack.c.l.bf16 %v111
    %s113 = scalar_lea.vmem [#allocation2], 4
    %v114 = vld [vmem:[%s113] sm:$0x1]
    %v116 = vlaneseq
    %v117 = vshrl.u32 %v116, 7
    %v118 = vsub.s32 0, %v117
    %v119 = vrot.slane %v114, %v118
    %v121 = vmul.f32 %v112, %v119
    %v122 = vadd.f32 %v109, %v121
    %s123 = scalar_lea.vmem %s0, 20
    %v124 = vld [vmem:[%s123] sm:$0xf]
    %v125 = vunpack.c.l.bf16 %v124
    %s126 = scalar_lea.vmem [#allocation2], 5
    %v127 = vld [vmem:[%s126] sm:$0x1]
    %v129 = vlaneseq
    %v130 = vshrl.u32 %v129, 7
    %v131 = vsub.s32 0, %v130
    %v132 = vrot.slane %v127, %v131
    %v134 = vmul.f32 %v125, %v132
    %v135 = vadd.f32 %v122, %v134
    %s136 = scalar_lea.vmem %s0, 24
    %v137 = vld [vmem:[%s136] sm:$0xf]
    %v138 = vunpack.c.l.bf16 %v137
    %s139 = scalar_lea.vmem [#allocation2], 6
    %v140 = vld [vmem:[%s139] sm:$0x1]
    %v142 = vlaneseq
    %v143 = vshrl.u32 %v142, 7
    %v144 = vsub.s32 0, %v143
    %v145 = vrot.slane %v140, %v144
    %v147 = vmul.f32 %v138, %v145
    %v148 = vadd.f32 %v135, %v147
    %s149 = scalar_lea.vmem %s0, 28
    %v150 = vld [vmem:[%s149] sm:$0xf]
    %v151 = vunpack.c.l.bf16 %v150
    %s152 = scalar_lea.vmem [#allocation2], 7
    %v153 = vld [vmem:[%s152] sm:$0x1]
    %v155 = vlaneseq
    %v156 = vshrl.u32 %v155, 7
    %v157 = vsub.s32 0, %v156
    %v158 = vrot.slane %v153, %v157
    %v160 = vmul.f32 %v151, %v158
    %v161 = vadd.f32 %v148, %v160
    %s162 = scalar_lea.vmem %s0, 32
    %v163 = vld [vmem:[%s162] sm:$0xf]
    %v164 = vunpack.c.l.bf16 %v163
    %s165 = scalar_lea.vmem [#allocation2], 8
    %v166 = vld [vmem:[%s165] sm:$0x1]
    %v168 = vlaneseq
    %v169 = vshrl.u32 %v168, 7
    %v170 = vsub.s32 0, %v169
    %v171 = vrot.slane %v166, %v170
    %v173 = vmul.f32 %v164, %v171
    %v174 = vadd.f32 %v161, %v173
    %v175 = vpack.c.bf16 %v174, %v174
    %v176 = vld [vmem:[%s2] sm:$0xff]
    %v177 = vld [vmem:[%s2 + $0x8] sm:$0xff]
    %v178 = vld [vmem:[%s2 + $0x10] sm:$0xff]
    %v179 = vld [vmem:[%s2 + $0x18] sm:$0xff]
    %v180 = vld [vmem:[%s2 + $0x20] sm:$0xff]
    %v181 = vld [vmem:[%s2 + $0x28] sm:$0xff]
    %v182 = vld [vmem:[%s2 + $0x30] sm:$0xff]
    %v183 = vld [vmem:[%s2 + $0x38] sm:$0xff]
    %v184 = vld [vmem:[%s2 + $0x40] sm:$0xff]
    %v185 = vld [vmem:[%s2 + $0x48] sm:$0xff]
    %v186 = vld [vmem:[%s2 + $0x50] sm:$0xff]
    %v187 = vld [vmem:[%s2 + $0x58] sm:$0xff]
    %v188 = vld [vmem:[%s2 + $0x60] sm:$0xff]
    %v189 = vld [vmem:[%s2 + $0x68] sm:$0xff]
    %v190 = vld [vmem:[%s2 + $0x70] sm:$0xff]
    %v191 = vld [vmem:[%s2 + $0x78] sm:$0xff]
    %v192 = vld [vmem:[%s3] sm:$0x3]
    %v194 = vlaneseq
    %v195 = vshrl.u32 %v194, 7
    %v196 = vsub.s32 0, %v195
    %v197 = vrot.slane %v192, %v196
    %v198 = vlaneseq
    %v199 = vshrl.u32 %v198, 7
    %v200 = vsub.s32 1, %v199
    %v201 = vrot.slane %v192, %v200
    %v220 = vunpack.c.l.b16 %v176
    %v221 = vunpack.c.h.b16 %v176
    %v222 = vunpack.c.l.b16 %v177
    %v223 = vunpack.c.h.b16 %v177
    %v224 = vunpack.c.l.b16 %v178
    %v225 = vunpack.c.h.b16 %v178
    %v226 = vunpack.c.l.b16 %v179
    %v227 = vunpack.c.h.b16 %v179
    %v228 = vunpack.c.l.b16 %v180
    %v229 = vunpack.c.h.b16 %v180
    %v230 = vunpack.c.l.b16 %v181
    %v231 = vunpack.c.h.b16 %v181
    %v232 = vunpack.c.l.b16 %v182
    %v233 = vunpack.c.h.b16 %v182
    %v234 = vunpack.c.l.b16 %v183
    %v235 = vunpack.c.h.b16 %v183
    %v236 = vunpack.c.l.b16 %v184
    %v237 = vunpack.c.h.b16 %v184
    %v238 = vunpack.c.l.b16 %v185
    %v239 = vunpack.c.h.b16 %v185
    %v240 = vunpack.c.l.b16 %v186
    %v241 = vunpack.c.h.b16 %v186
    %v242 = vunpack.c.l.b16 %v187
    %v243 = vunpack.c.h.b16 %v187
    %v244 = vunpack.c.l.b16 %v188
    %v245 = vunpack.c.h.b16 %v188
    %v246 = vunpack.c.l.b16 %v189
    %v247 = vunpack.c.h.b16 %v189
    %v248 = vunpack.c.l.b16 %v190
    %v249 = vunpack.c.h.b16 %v190
    %v250 = vunpack.c.l.b16 %v191
    %v251 = vunpack.c.h.b16 %v191
    %v252 = vpack.c.b16 %v222, %v220
    %v253 = vpack.c.b16 %v223, %v221
    %v254 = vpack.c.b16 %v226, %v224
    %v255 = vpack.c.b16 %v227, %v225
    %v256 = vpack.c.b16 %v230, %v228
    %v257 = vpack.c.b16 %v231, %v229
    %v258 = vpack.c.b16 %v234, %v232
    %v259 = vpack.c.b16 %v235, %v233
    %v260 = vpack.c.b16 %v238, %v236
    %v261 = vpack.c.b16 %v239, %v237
    %v262 = vpack.c.b16 %v242, %v240
    %v263 = vpack.c.b16 %v243, %v241
    %v264 = vpack.c.b16 %v246, %v244
    %v265 = vpack.c.b16 %v247, %v245
    %v266 = vpack.c.b16 %v250, %v248
    %v267 = vpack.c.b16 %v251, %v249
    %284 = vmatprep.subr.bf16.mxu0 %v253
    %285 = vmatpush1.bf16.msra.mxu0 %v252
    %286 = vmatprep.subr.bf16.mxu0 %v255
    %287 = vmatpush1.bf16.msra.mxu0 %v254
    %288 = vmatprep.subr.bf16.mxu0 %v257
    %289 = vmatpush1.bf16.msra.mxu0 %v256
    %290 = vmatprep.subr.bf16.mxu0 %v259
    %291 = vmatpush1.bf16.msra.mxu0 %v258
    %292 = vmatprep.subr.bf16.mxu0 %v261
    %293 = vmatpush1.bf16.msra.mxu0 %v260
    %294 = vmatprep.subr.bf16.mxu0 %v263
    %295 = vmatpush1.bf16.msra.mxu0 %v262
    %296 = vmatprep.subr.bf16.mxu0 %v265
    %297 = vmatpush1.bf16.msra.mxu0 %v264
    %298 = vmatprep.subr.bf16.mxu0 %v267
    %299 = vmatpush1.bf16.msra.mxu0 %v266
    %300 = vmatprep.subr.bf16.mxu0 0
    %301 = vmatpush1.bf16.msra.mxu0 0
    %302 = vmatprep.subr.bf16.mxu0 0
    %303 = vmatpush1.bf16.msra.mxu0 0
    %304 = vmatprep.subr.bf16.mxu0 0
    %305 = vmatpush1.bf16.msra.mxu0 0
    %306 = vmatprep.subr.bf16.mxu0 0
    %307 = vmatpush1.bf16.msra.mxu0 0
    %308 = vmatprep.subr.bf16.mxu0 0
    %309 = vmatpush1.bf16.msra.mxu0 0
    %310 = vmatprep.subr.bf16.mxu0 0
    %311 = vmatpush1.bf16.msra.mxu0 0
    %312 = vmatprep.subr.bf16.mxu0 0
    %313 = vmatpush1.bf16.msra.mxu0 0
    %314 = vmatprep.subr.bf16.mxu0 0
    %315 = vmatpush1.bf16.msra.mxu0 0
    %316 = vmatprep.mubr.bf16.mxu0 0
    %317 = vmatmul.mubr.bf16.gmra.mrb[0].mxu0 %v175
    %v318 = vpop.f32.mrb[0].mxu0
    %v319 = vadd.f32 %v197, %v318
    %v320 = vpop.f32.mrb[0].mxu0
    %v321 = vadd.f32 %v201, %v320
    %v322 = vpop.f32.mrb[0].mxu0
    %v323 = vpop.f32.mrb[0].mxu0
    %324 = vdwg.mxu0
    %v325 = vrot.slane %v319, 4
    %v326 = vadd.f32 %v319, %v325
    %v327 = vrot.slane %v326, 2
    %v328 = vadd.f32 %v326, %v327
    %v329 = vrot.slane %v328, 1
    %v330 = vadd.f32 %v328, %v329
    %v331 = vrot.slane %v321, 4
    %v332 = vadd.f32 %v321, %v331
    %v333 = vrot.slane %v332, 2
    %v334 = vadd.f32 %v332, %v333
    %v335 = vrot.slane %v334, 1
    %v336 = vadd.f32 %v334, %v335
    %v337 = vrcp.pop 8.0
    %v338 = vmul.f32 %v330, %v337
    %v339 = vmul.f32 %v336, %v337
    %v340 = vsub.f32 %v319, %v338
    %v341 = vsub.f32 %v321, %v339
    %v342 = vmul.f32 %v340, %v340
    %v343 = vmul.f32 %v341, %v341
    %v344 = vrot.slane %v342, 4
    %v345 = vadd.f32 %v342, %v344
    %v346 = vrot.slane %v345, 2
    %v347 = vadd.f32 %v345, %v346
    %v348 = vrot.slane %v347, 1
    %v349 = vadd.f32 %v347, %v348
    %v350 = vrot.slane %v343, 4
    %v351 = vadd.f32 %v343, %v350
    %v352 = vrot.slane %v351, 2
    %v353 = vadd.f32 %v351, %v352
    %v354 = vrot.slane %v353, 1
    %v355 = vadd.f32 %v353, %v354
    %v356 = vmul.f32 %v349, %v337
    %v357 = vmul.f32 %v355, %v337
    %v358 = vadd.f32 %v356, 1e-05
    %v359 = vadd.f32 %v357, 1e-05
    %v360 = vrsqrt.pop %v358
    %v361 = vrsqrt.pop %v359
    %v362 = vmul.f32 %v340, %v360
    %v363 = vmul.f32 %v341, %v361
    %v364 = vld [vmem:[#allocation4] sm:$0x3]
    %v366 = vlaneseq
    %v367 = vshrl.u32 %v366, 7
    %v368 = vsub.s32 0, %v367
    %v369 = vrot.slane %v364, %v368
    %v370 = vlaneseq
    %v371 = vshrl.u32 %v370, 7
    %v372 = vsub.s32 1, %v371
    %v373 = vrot.slane %v364, %v372
    %v376 = vmul.f32 %v362, %v369
    %v377 = vmul.f32 %v363, %v373
    %v378 = vld [vmem:[#allocation6] sm:$0x3]
    %v380 = vlaneseq
    %v381 = vshrl.u32 %v380, 7
    %v382 = vsub.s32 0, %v381
    %v383 = vrot.slane %v378, %v382
    %v384 = vlaneseq
    %v385 = vshrl.u32 %v384, 7
    %v386 = vsub.s32 1, %v385
    %v387 = vrot.slane %v378, %v386
    %v390 = vadd.f32 %v376, %v383
    %v391 = vadd.f32 %v377, %v387
    %v392 = vmul.f32 %v390, 0.2
    %v393 = vmul.f32 %v391, 0.2
    %v394 = vmax.f32 %v390, %v392
    %v395 = vmax.f32 %v391, %v393
    %396 = vst [vmem:[%s6] sm:$0xff] %v394
    %397 = vst [vmem:[%s6 + $0x8] sm:$0xff] %v395
    // Predicated region
    $region38: #{discriminator_forward.7} parent=1 // pred_check
      _
    $region39: #{discriminator_forward.7} parent=1 // pred_check_branch
      %399 = sbr.rel (0) target = $region41
    $region40: #{discriminator_forward.7} parent=1 // pred_region
      _
    $region41: #{discriminator_forward.7} parent=1 // pred_fallthru
      _
    // Predicated region
    $region42: #{discriminator_forward.7} parent=1 // pred_check
      _
    $region43: #{discriminator_forward.7} parent=1 // pred_check_branch
      %401 = sbr.rel (0) target = $region45
    $region44: #{discriminator_forward.7} parent=1 // pred_region
      _
    $region45: #{discriminator_forward.7} parent=1 // pred_fallthru
      _
    %402 = vsyncpa [#allocation3], 1
    %403 = vsyncpa [#allocation5], 1

// kernel: discriminator_forward.8
$region0: #{discriminator_forward.8}
  #allocation0 [shape = 'u32[]', space=smem, size = 0x4, offset = 0x4, fixed_abs, tag = 'smem constant byte address 0x4 - core index']
  #allocation1 [shape = 'u32[144,128]{1,0:T(1,128)}', space=vmem, size = 0x12000, scoped, tag = 'internal scratch']
  %s0 = inlined_call_operand.vmem [shape: bf16[9,2,256], index: 0, kind: input, shape index: {}]
  %s1 = inlined_call_operand.vmem [shape: f32[9,1,256], index: 1, kind: input, shape index: {}]
  %s2 = inlined_call_operand.vmem [shape: bf16[256,512], index: 2, kind: input, shape index: {}]
  %s3 = inlined_call_operand.vmem [shape: f32[1,512], index: 3, kind: input, shape index: {}]
  %s4 = inlined_call_operand.vmem [shape: f32[1,512], index: 4, kind: input, shape index: {}]
  %s5 = inlined_call_operand.vmem [shape: f32[1,512], index: 5, kind: input, shape index: {}]
  %s6 = inlined_call_operand.vmem [shape: f32[2,512], index: 6, kind: output, shape index: {}]
  %s7 = sld [smem:[#allocation0]]
  $region34: #{discriminator_forward.8} parent=0
    _
  %s9 = ssub.s32 1, %s7
  %s10 = scalar_select 0, %s9, %s7
  // Predicated region
  $region2: #{discriminator_forward.8} parent=0 // pred_check
    _
  $region3: #{discriminator_forward.8} parent=0 // pred_check_branch
    %12 = sbr.rel (0) target = $region5
  $region4: #{discriminator_forward.8} parent=0 // pred_region
    _
  $region5: #{discriminator_forward.8} parent=0 // pred_fallthru
    _
  // Predicated region
  $region6: #{discriminator_forward.8} parent=0 // pred_check
    _
  $region7: #{discriminator_forward.8} parent=0 // pred_check_branch
    %14 = sbr.rel (0) target = $region9
  $region8: #{discriminator_forward.8} parent=0 // pred_region
    _
  $region9: #{discriminator_forward.8} parent=0 // pred_fallthru
    _
  // Predicated region
  $region10: #{discriminator_forward.8} parent=0 // pred_check
    _
  $region11: #{discriminator_forward.8} parent=0 // pred_check_branch
    %16 = sbr.rel (0) target = $region13
  $region12: #{discriminator_forward.8} parent=0 // pred_region
    _
  $region13: #{discriminator_forward.8} parent=0 // pred_fallthru
    _
  // Predicated region
  $region14: #{discriminator_forward.8} parent=0 // pred_check
    _
  $region15: #{discriminator_forward.8} parent=0 // pred_check_branch
    %18 = sbr.rel (0) target = $region17
  $region16: #{discriminator_forward.8} parent=0 // pred_region
    _
  $region17: #{discriminator_forward.8} parent=0 // pred_fallthru
    _
  // Predicated region
  $region18: #{discriminator_forward.8} parent=0 // pred_check
    _
  $region19: #{discriminator_forward.8} parent=0 // pred_check_branch
    %20 = sbr.rel (0) target = $region21
  $region20: #{discriminator_forward.8} parent=0 // pred_region
    _
  $region21: #{discriminator_forward.8} parent=0 // pred_fallthru
    _
  // Predicated region
  $region22: #{discriminator_forward.8} parent=0 // pred_check
    _
  $region23: #{discriminator_forward.8} parent=0 // pred_check_branch
    %22 = sbr.rel (0) target = $region25
  $region24: #{discriminator_forward.8} parent=0 // pred_region
    _
  $region25: #{discriminator_forward.8} parent=0 // pred_fallthru
    _
  %v23 = vld [vmem:[%s0] sm:$0x3]
  %v24 = vunpack.c.l.bf16 %v23
  %v25 = vld [vmem:[%s1] sm:$0x3]
  %v27 = vlaneseq
  %v28 = vshrl.u32 %v27, 7
  %v29 = vsub.s32 0, %v28
  %v30 = vrot.slane %v25, %v29
  %v31 = vlaneseq
  %v32 = vshrl.u32 %v31, 7
  %v33 = vsub.s32 1, %v32
  %v34 = vrot.slane %v25, %v33
  %v35 = vcombine.low %v30, %v34
  %v37 = vunpack.c.l.s4 1983009808
  %v38 = vunpack.c.0.s8 %v37
  %v39 = vlaneseq
  %v40 = vshrl.u32 %v39, 7
  %v41 = vsub.s32 %v38, %v40
  %v42 = vrot.slane %v35, %v41
  %v44 = vmul.f32 %v24, %v42
  %s45 = scalar_lea.vmem %s0, 2
  %v46 = vld [vmem:[%s45] sm:$0x3]
  %v47 = vunpack.c.l.bf16 %v46
  %s48 = scalar_lea.vmem %s1, 2
  %v49 = vld [vmem:[%s48] sm:$0x3]
  %v51 = vlaneseq
  %v52 = vshrl.u32 %v51, 7
  %v53 = vsub.s32 0, %v52
  %v54 = vrot.slane %v49, %v53
  %v55 = vlaneseq
  %v56 = vshrl.u32 %v55, 7
  %v57 = vsub.s32 1, %v56
  %v58 = vrot.slane %v49, %v57
  %v59 = vcombine.low %v54, %v58
  %v61 = vunpack.c.l.s4 1983009808
  %v62 = vunpack.c.0.s8 %v61
  %v63 = vlaneseq
  %v64 = vshrl.u32 %v63, 7
  %v65 = vsub.s32 %v62, %v64
  %v66 = vrot.slane %v59, %v65
  %v68 = vmul.f32 %v47, %v66
  %v69 = vadd.f32 %v44, %v68
  %s70 = scalar_lea.vmem %s0, 4
  %v71 = vld [vmem:[%s70] sm:$0x3]
  %v72 = vunpack.c.l.bf16 %v71
  %s73 = scalar_lea.vmem %s1, 4
  %v74 = vld [vmem:[%s73] sm:$0x3]
  %v76 = vlaneseq
  %v77 = vshrl.u32 %v76, 7
  %v78 = vsub.s32 0, %v77
  %v79 = vrot.slane %v74, %v78
  %v80 = vlaneseq
  %v81 = vshrl.u32 %v80, 7
  %v82 = vsub.s32 1, %v81
  %v83 = vrot.slane %v74, %v82
  %v84 = vcombine.low %v79, %v83
  %v86 = vunpack.c.l.s4 1983009808
  %v87 = vunpack.c.0.s8 %v86
  %v88 = vlaneseq
  %v89 = vshrl.u32 %v88, 7
  %v90 = vsub.s32 %v87, %v89
  %v91 = vrot.slane %v84, %v90
  %v93 = vmul.f32 %v72, %v91
  %v94 = vadd.f32 %v69, %v93
  %s95 = scalar_lea.vmem %s0, 6
  %v96 = vld [vmem:[%s95] sm:$0x3]
  %v97 = vunpack.c.l.bf16 %v96
  %s98 = scalar_lea.vmem %s1, 6
  %v99 = vld [vmem:[%s98] sm:$0x3]
  %v101 = vlaneseq
  %v102 = vshrl.u32 %v101, 7
  %v103 = vsub.s32 0, %v102
  %v104 = vrot.slane %v99, %v103
  %v105 = vlaneseq
  %v106 = vshrl.u32 %v105, 7
  %v107 = vsub.s32 1, %v106
  %v108 = vrot.slane %v99, %v107
  %v109 = vcombine.low %v104, %v108
  %v111 = vunpack.c.l.s4 1983009808
  %v112 = vunpack.c.0.s8 %v111
  %v113 = vlaneseq
  %v114 = vshrl.u32 %v113, 7
  %v115 = vsub.s32 %v112, %v114
  %v116 = vrot.slane %v109, %v115
  %v118 = vmul.f32 %v97, %v116
  %v119 = vadd.f32 %v94, %v118
  %s120 = scalar_lea.vmem %s0, 8
  %v121 = vld [vmem:[%s120] sm:$0x3]
  %v122 = vunpack.c.l.bf16 %v121
  %s123 = scalar_lea.vmem %s1, 8
  %v124 = vld [vmem:[%s123] sm:$0x3]
  %v126 = vlaneseq
  %v127 = vshrl.u32 %v126, 7
  %v128 = vsub.s32 0, %v127
  %v129 = vrot.slane %v124, %v128
  %v130 = vlaneseq
  %v131 = vshrl.u32 %v130, 7
  %v132 = vsub.s32 1, %v131
  %v133 = vrot.slane %v124, %v132
  %v134 = vcombine.low %v129, %v133
  %v136 = vunpack.c.l.s4 1983009808
  %v137 = vunpack.c.0.s8 %v136
  %v138 = vlaneseq
  %v139 = vshrl.u32 %v138, 7
  %v140 = vsub.s32 %v137, %v139
  %v141 = vrot.slane %v134, %v140
  %v143 = vmul.f32 %v122, %v141
  %v144 = vadd.f32 %v119, %v143
  %s145 = scalar_lea.vmem %s0, 10
  %v146 = vld [vmem:[%s145] sm:$0x3]
  %v147 = vunpack.c.l.bf16 %v146
  %s148 = scalar_lea.vmem %s1, 10
  %v149 = vld [vmem:[%s148] sm:$0x3]
  %v151 = vlaneseq
  %v152 = vshrl.u32 %v151, 7
  %v153 = vsub.s32 0, %v152
  %v154 = vrot.slane %v149, %v153
  %v155 = vlaneseq
  %v156 = vshrl.u32 %v155, 7
  %v157 = vsub.s32 1, %v156
  %v158 = vrot.slane %v149, %v157
  %v159 = vcombine.low %v154, %v158
  %v161 = vunpack.c.l.s4 1983009808
  %v162 = vunpack.c.0.s8 %v161
  %v163 = vlaneseq
  %v164 = vshrl.u32 %v163, 7
  %v165 = vsub.s32 %v162, %v164
  %v166 = vrot.slane %v159, %v165
  %v168 = vmul.f32 %v147, %v166
  %v169 = vadd.f32 %v144, %v168
  %s170 = scalar_lea.vmem %s0, 12
  %v171 = vld [vmem:[%s170] sm:$0x3]
  %v172 = vunpack.c.l.bf16 %v171
  %s173 = scalar_lea.vmem %s1, 12
  %v174 = vld [vmem:[%s173] sm:$0x3]
  %v176 = vlaneseq
  %v177 = vshrl.u32 %v176, 7
  %v178 = vsub.s32 0, %v177
  %v179 = vrot.slane %v174, %v178
  %v180 = vlaneseq
  %v181 = vshrl.u32 %v180, 7
  %v182 = vsub.s32 1, %v181
  %v183 = vrot.slane %v174, %v182
  %v184 = vcombine.low %v179, %v183
  %v186 = vunpack.c.l.s4 1983009808
  %v187 = vunpack.c.0.s8 %v186
  %v188 = vlaneseq
  %v189 = vshrl.u32 %v188, 7
  %v190 = vsub.s32 %v187, %v189
  %v191 = vrot.slane %v184, %v190
  %v193 = vmul.f32 %v172, %v191
  %v194 = vadd.f32 %v169, %v193
  %s195 = scalar_lea.vmem %s0, 14
  %v196 = vld [vmem:[%s195] sm:$0x3]
  %v197 = vunpack.c.l.bf16 %v196
  %s198 = scalar_lea.vmem %s1, 14
  %v199 = vld [vmem:[%s198] sm:$0x3]
  %v201 = vlaneseq
  %v202 = vshrl.u32 %v201, 7
  %v203 = vsub.s32 0, %v202
  %v204 = vrot.slane %v199, %v203
  %v205 = vlaneseq
  %v206 = vshrl.u32 %v205, 7
  %v207 = vsub.s32 1, %v206
  %v208 = vrot.slane %v199, %v207
  %v209 = vcombine.low %v204, %v208
  %v211 = vunpack.c.l.s4 1983009808
  %v212 = vunpack.c.0.s8 %v211
  %v213 = vlaneseq
  %v214 = vshrl.u32 %v213, 7
  %v215 = vsub.s32 %v212, %v214
  %v216 = vrot.slane %v209, %v215
  %v218 = vmul.f32 %v197, %v216
  %v219 = vadd.f32 %v194, %v218
  %s220 = scalar_lea.vmem %s0, 16
  %v221 = vld [vmem:[%s220] sm:$0x3]
  %v222 = vunpack.c.l.bf16 %v221
  %s223 = scalar_lea.vmem %s1, 16
  %v224 = vld [vmem:[%s223] sm:$0x3]
  %v226 = vlaneseq
  %v227 = vshrl.u32 %v226, 7
  %v228 = vsub.s32 0, %v227
  %v229 = vrot.slane %v224, %v228
  %v230 = vlaneseq
  %v231 = vshrl.u32 %v230, 7
  %v232 = vsub.s32 1, %v231
  %v233 = vrot.slane %v224, %v232
  %v234 = vcombine.low %v229, %v233
  %v236 = vunpack.c.l.s4 1983009808
  %v237 = vunpack.c.0.s8 %v236
  %v238 = vlaneseq
  %v239 = vshrl.u32 %v238, 7
  %v240 = vsub.s32 %v237, %v239
  %v241 = vrot.slane %v234, %v240
  %v243 = vmul.f32 %v222, %v241
  %v244 = vadd.f32 %v219, %v243
  %v247 = vunpack.c.l.s4 1983009808
  %v248 = vunpack.c.0.s8 %v247
  %v249 = vlaneseq
  %v250 = vshrl.u32 %v249, 7
  %v251 = vsub.s32 %v248, %v250
  %v252 = vrot.slane %v244, %v251
  %v253 = vcombine.high %v252, %v252
  %v256 = vpack.c.bf16 %v252, %v252
  %v257 = vpack.c.bf16 %v253, %v253
  %v258 = vld [vmem:[%s2] sm:$0xff]
  %v259 = vld [vmem:[%s2 + $0x8] sm:$0xff]
  %v260 = vld [vmem:[%s2 + $0x10] sm:$0xff]
  %v261 = vld [vmem:[%s2 + $0x18] sm:$0xff]
  %v262 = vld [vmem:[%s2 + $0x20] sm:$0xff]
  %v263 = vld [vmem:[%s2 + $0x28] sm:$0xff]
  %v264 = vld [vmem:[%s2 + $0x30] sm:$0xff]
  %v265 = vld [vmem:[%s2 + $0x38] sm:$0xff]
  %v266 = vld [vmem:[%s2 + $0x40] sm:$0xff]
  %v267 = vld [vmem:[%s2 + $0x48] sm:$0xff]
  %v268 = vld [vmem:[%s2 + $0x50] sm:$0xff]
  %v269 = vld [vmem:[%s2 + $0x58] sm:$0xff]
  %v270 = vld [vmem:[%s2 + $0x60] sm:$0xff]
  %v271 = vld [vmem:[%s2 + $0x68] sm:$0xff]
  %v272 = vld [vmem:[%s2 + $0x70] sm:$0xff]
  %v273 = vld [vmem:[%s2 + $0x78] sm:$0xff]
  %v274 = vld [vmem:[%s2 + $0x80] sm:$0xff]
  %v275 = vld [vmem:[%s2 + $0x88] sm:$0xff]
  %v276 = vld [vmem:[%s2 + $0x90] sm:$0xff]
  %v277 = vld [vmem:[%s2 + $0x98] sm:$0xff]
  %v278 = vld [vmem:[%s2 + $0xa0] sm:$0xff]
  %v279 = vld [vmem:[%s2 + $0xa8] sm:$0xff]
  %v280 = vld [vmem:[%s2 + $0xb0] sm:$0xff]
  %v281 = vld [vmem:[%s2 + $0xb8] sm:$0xff]
  %v282 = vld [vmem:[%s2 + $0xc0] sm:$0xff]
  %v283 = vld [vmem:[%s2 + $0xc8] sm:$0xff]
  %v284 = vld [vmem:[%s2 + $0xd0] sm:$0xff]
  %v285 = vld [vmem:[%s2 + $0xd8] sm:$0xff]
  %v286 = vld [vmem:[%s2 + $0xe0] sm:$0xff]
  %v287 = vld [vmem:[%s2 + $0xe8] sm:$0xff]
  %v288 = vld [vmem:[%s2 + $0xf0] sm:$0xff]
  %v289 = vld [vmem:[%s2 + $0xf8] sm:$0xff]
  %v290 = vld [vmem:[%s2 + $0x100] sm:$0xff]
  %v291 = vld [vmem:[%s2 + $0x108] sm:$0xff]
  %v292 = vld [vmem:[%s2 + $0x110] sm:$0xff]
  %v293 = vld [vmem:[%s2 + $0x118] sm:$0xff]
  %v294 = vld [vmem:[%s2 + $0x120] sm:$0xff]
  %v295 = vld [vmem:[%s2 + $0x128] sm:$0xff]
  %v296 = vld [vmem:[%s2 + $0x130] sm:$0xff]
  %v297 = vld [vmem:[%s2 + $0x138] sm:$0xff]
  %v298 = vld [vmem:[%s2 + $0x140] sm:$0xff]
  %v299 = vld [vmem:[%s2 + $0x148] sm:$0xff]
  %v300 = vld [vmem:[%s2 + $0x150] sm:$0xff]
  %v301 = vld [vmem:[%s2 + $0x158] sm:$0xff]
  %v302 = vld [vmem:[%s2 + $0x160] sm:$0xff]
  %v303 = vld [vmem:[%s2 + $0x168] sm:$0xff]
  %v304 = vld [vmem:[%s2 + $0x170] sm:$0xff]
  %v305 = vld [vmem:[%s2 + $0x178] sm:$0xff]
  %v306 = vld [vmem:[%s2 + $0x180] sm:$0xff]
  %v307 = vld [vmem:[%s2 + $0x188] sm:$0xff]
  %v308 = vld [vmem:[%s2 + $0x190] sm:$0xff]
  %v309 = vld [vmem:[%s2 + $0x198] sm:$0xff]
  %v310 = vld [vmem:[%s2 + $0x1a0] sm:$0xff]
  %v311 = vld [vmem:[%s2 + $0x1a8] sm:$0xff]
  %v312 = vld [vmem:[%s2 + $0x1b0] sm:$0xff]
  %v313 = vld [vmem:[%s2 + $0x1b8] sm:$0xff]
  %v314 = vld [vmem:[%s2 + $0x1c0] sm:$0xff]
  %v315 = vld [vmem:[%s2 + $0x1c8] sm:$0xff]
  %v316 = vld [vmem:[%s2 + $0x1d0] sm:$0xff]
  %v317 = vld [vmem:[%s2 + $0x1d8] sm:$0xff]
  %v318 = vld [vmem:[%s2 + $0x1e0] sm:$0xff]
  %v319 = vld [vmem:[%s2 + $0x1e8] sm:$0xff]
  %v320 = vld [vmem:[%s2 + $0x1f0] sm:$0xff]
  %v321 = vld [vmem:[%s2 + $0x1f8] sm:$0xff]
  %v322 = vld [vmem:[%s3] sm:$0xf]
  %v324 = vlaneseq
  %v325 = vshrl.u32 %v324, 7
  %v326 = vsub.s32 0, %v325
  %v327 = vrot.slane %v322, %v326
  %v328 = vlaneseq
  %v329 = vshrl.u32 %v328, 7
  %v330 = vsub.s32 1, %v329
  %v331 = vrot.slane %v322, %v330
  %v332 = vlaneseq
  %v333 = vshrl.u32 %v332, 7
  %v334 = vsub.s32 2, %v333
  %v335 = vrot.slane %v322, %v334
  %v336 = vlaneseq
  %v337 = vshrl.u32 %v336, 7
  %v338 = vsub.s32 3, %v337
  %v339 = vrot.slane %v322, %v338
  %v408 = vunpack.c.l.b16 %v258
  %v409 = vunpack.c.h.b16 %v258
  %v410 = vunpack.c.l.b16 %v259
  %v411 = vunpack.c.h.b16 %v259
  %v412 = vunpack.c.l.b16 %v260
  %v413 = vunpack.c.h.b16 %v260
  %v414 = vunpack.c.l.b16 %v261
  %v415 = vunpack.c.h.b16 %v261
  %v416 = vunpack.c.l.b16 %v262
  %v417 = vunpack.c.h.b16 %v262
  %v418 = vunpack.c.l.b16 %v263
  %v419 = vunpack.c.h.b16 %v263
  %v420 = vunpack.c.l.b16 %v264
  %v421 = vunpack.c.h.b16 %v264
  %v422 = vunpack.c.l.b16 %v265
  %v423 = vunpack.c.h.b16 %v265
  %v424 = vunpack.c.l.b16 %v266
  %v425 = vunpack.c.h.b16 %v266
  %v426 = vunpack.c.l.b16 %v267
  %v427 = vunpack.c.h.b16 %v267
  %v428 = vunpack.c.l.b16 %v268
  %v429 = vunpack.c.h.b16 %v268
  %v430 = vunpack.c.l.b16 %v269
  %v431 = vunpack.c.h.b16 %v269
  %v432 = vunpack.c.l.b16 %v270
  %v433 = vunpack.c.h.b16 %v270
  %v434 = vunpack.c.l.b16 %v271
  %v435 = vunpack.c.h.b16 %v271
  %v436 = vunpack.c.l.b16 %v272
  %v437 = vunpack.c.h.b16 %v272
  %v438 = vunpack.c.l.b16 %v273
  %v439 = vunpack.c.h.b16 %v273
  %v440 = vunpack.c.l.b16 %v274
  %v441 = vunpack.c.h.b16 %v274
  %v442 = vunpack.c.l.b16 %v275
  %v443 = vunpack.c.h.b16 %v275
  %v444 = vunpack.c.l.b16 %v276
  %v445 = vunpack.c.h.b16 %v276
  %v446 = vunpack.c.l.b16 %v277
  %v447 = vunpack.c.h.b16 %v277
  %v448 = vunpack.c.l.b16 %v278
  %v449 = vunpack.c.h.b16 %v278
  %v450 = vunpack.c.l.b16 %v279
  %v451 = vunpack.c.h.b16 %v279
  %v452 = vunpack.c.l.b16 %v280
  %v453 = vunpack.c.h.b16 %v280
  %v454 = vunpack.c.l.b16 %v281
  %v455 = vunpack.c.h.b16 %v281
  %v456 = vunpack.c.l.b16 %v282
  %v457 = vunpack.c.h.b16 %v282
  %v458 = vunpack.c.l.b16 %v283
  %v459 = vunpack.c.h.b16 %v283
  %v460 = vunpack.c.l.b16 %v284
  %v461 = vunpack.c.h.b16 %v284
  %v462 = vunpack.c.l.b16 %v285
  %v463 = vunpack.c.h.b16 %v285
  %v464 = vunpack.c.l.b16 %v286
  %v465 = vunpack.c.h.b16 %v286
  %v466 = vunpack.c.l.b16 %v287
  %v467 = vunpack.c.h.b16 %v287
  %v468 = vunpack.c.l.b16 %v288
  %v469 = vunpack.c.h.b16 %v288
  %v470 = vunpack.c.l.b16 %v289
  %v471 = vunpack.c.h.b16 %v289
  %v472 = vunpack.c.l.b16 %v290
  %v473 = vunpack.c.h.b16 %v290
  %v474 = vunpack.c.l.b16 %v291
  %v475 = vunpack.c.h.b16 %v291
  %v476 = vunpack.c.l.b16 %v292
  %v477 = vunpack.c.h.b16 %v292
  %v478 = vunpack.c.l.b16 %v293
  %v479 = vunpack.c.h.b16 %v293
  %v480 = vunpack.c.l.b16 %v294
  %v481 = vunpack.c.h.b16 %v294
  %v482 = vunpack.c.l.b16 %v295
  %v483 = vunpack.c.h.b16 %v295
  %v484 = vunpack.c.l.b16 %v296
  %v485 = vunpack.c.h.b16 %v296
  %v486 = vunpack.c.l.b16 %v297
  %v487 = vunpack.c.h.b16 %v297
  %v488 = vunpack.c.l.b16 %v298
  %v489 = vunpack.c.h.b16 %v298
  %v490 = vunpack.c.l.b16 %v299
  %v491 = vunpack.c.h.b16 %v299
  %v492 = vunpack.c.l.b16 %v300
  %v493 = vunpack.c.h.b16 %v300
  %v494 = vunpack.c.l.b16 %v301
  %v495 = vunpack.c.h.b16 %v301
  %v496 = vunpack.c.l.b16 %v302
  %v497 = vunpack.c.h.b16 %v302
  %v498 = vunpack.c.l.b16 %v303
  %v499 = vunpack.c.h.b16 %v303
  %v500 = vunpack.c.l.b16 %v304
  %v501 = vunpack.c.h.b16 %v304
  %v502 = vunpack.c.l.b16 %v305
  %v503 = vunpack.c.h.b16 %v305
  %v504 = vunpack.c.l.b16 %v306
  %v505 = vunpack.c.h.b16 %v306
  %v506 = vunpack.c.l.b16 %v307
  %v507 = vunpack.c.h.b16 %v307
  %v508 = vunpack.c.l.b16 %v308
  %v509 = vunpack.c.h.b16 %v308
  %v510 = vunpack.c.l.b16 %v309
  %v511 = vunpack.c.h.b16 %v309
  %v512 = vunpack.c.l.b16 %v310
  %v513 = vunpack.c.h.b16 %v310
  %v514 = vunpack.c.l.b16 %v311
  %v515 = vunpack.c.h.b16 %v311
  %v516 = vunpack.c.l.b16 %v312
  %v517 = vunpack.c.h.b16 %v312
  %v518 = vunpack.c.l.b16 %v313
  %v519 = vunpack.c.h.b16 %v313
  %v520 = vunpack.c.l.b16 %v314
  %v521 = vunpack.c.h.b16 %v314
  %v522 = vunpack.c.l.b16 %v315
  %v523 = vunpack.c.h.b16 %v315
  %v524 = vunpack.c.l.b16 %v316
  %v525 = vunpack.c.h.b16 %v316
  %v526 = vunpack.c.l.b16 %v317
  %v527 = vunpack.c.h.b16 %v317
  %v528 = vunpack.c.l.b16 %v318
  %v529 = vunpack.c.h.b16 %v318
  %v530 = vunpack.c.l.b16 %v319
  %v531 = vunpack.c.h.b16 %v319
  %v532 = vunpack.c.l.b16 %v320
  %v533 = vunpack.c.h.b16 %v320
  %v534 = vunpack.c.l.b16 %v321
  %v535 = vunpack.c.h.b16 %v321
  %v536 = vpack.c.b16 %v412, %v408
  %v537 = vpack.c.b16 %v413, %v409
  %v538 = vpack.c.b16 %v414, %v410
  %v539 = vpack.c.b16 %v415, %v411
  %v540 = vpack.c.b16 %v420, %v416
  %v541 = vpack.c.b16 %v421, %v417
  %v542 = vpack.c.b16 %v422, %v418
  %v543 = vpack.c.b16 %v423, %v419
  %v544 = vpack.c.b16 %v428, %v424
  %v545 = vpack.c.b16 %v429, %v425
  %v546 = vpack.c.b16 %v430, %v426
  %v547 = vpack.c.b16 %v431, %v427
  %v548 = vpack.c.b16 %v436, %v432
  %v549 = vpack.c.b16 %v437, %v433
  %v550 = vpack.c.b16 %v438, %v434
  %v551 = vpack.c.b16 %v439, %v435
  %v552 = vpack.c.b16 %v444, %v440
  %v553 = vpack.c.b16 %v445, %v441
  %v554 = vpack.c.b16 %v446, %v442
  %v555 = vpack.c.b16 %v447, %v443
  %v556 = vpack.c.b16 %v452, %v448
  %v557 = vpack.c.b16 %v453, %v449
  %v558 = vpack.c.b16 %v454, %v450
  %v559 = vpack.c.b16 %v455, %v451
  %v560 = vpack.c.b16 %v460, %v456
  %v561 = vpack.c.b16 %v461, %v457
  %v562 = vpack.c.b16 %v462, %v458
  %v563 = vpack.c.b16 %v463, %v459
  %v564 = vpack.c.b16 %v468, %v464
  %v565 = vpack.c.b16 %v469, %v465
  %v566 = vpack.c.b16 %v470, %v466
  %v567 = vpack.c.b16 %v471, %v467
  %v568 = vpack.c.b16 %v476, %v472
  %v569 = vpack.c.b16 %v477, %v473
  %v570 = vpack.c.b16 %v478, %v474
  %v571 = vpack.c.b16 %v479, %v475
  %v572 = vpack.c.b16 %v484, %v480
  %v573 = vpack.c.b16 %v485, %v481
  %v574 = vpack.c.b16 %v486, %v482
  %v575 = vpack.c.b16 %v487, %v483
  %v576 = vpack.c.b16 %v492, %v488
  %v577 = vpack.c.b16 %v493, %v489
  %v578 = vpack.c.b16 %v494, %v490
  %v579 = vpack.c.b16 %v495, %v491
  %v580 = vpack.c.b16 %v500, %v496
  %v581 = vpack.c.b16 %v501, %v497
  %v582 = vpack.c.b16 %v502, %v498
  %v583 = vpack.c.b16 %v503, %v499
  %v584 = vpack.c.b16 %v508, %v504
  %v585 = vpack.c.b16 %v509, %v505
  %v586 = vpack.c.b16 %v510, %v506
  %v587 = vpack.c.b16 %v511, %v507
  %v588 = vpack.c.b16 %v516, %v512
  %v589 = vpack.c.b16 %v517, %v513
  %v590 = vpack.c.b16 %v518, %v514
  %v591 = vpack.c.b16 %v519, %v515
  %v592 = vpack.c.b16 %v524, %v520
  %v593 = vpack.c.b16 %v525, %v521
  %v594 = vpack.c.b16 %v526, %v522
  %v595 = vpack.c.b16 %v527, %v523
  %v596 = vpack.c.b16 %v532, %v528
  %v597 = vpack.c.b16 %v533, %v529
  %v598 = vpack.c.b16 %v534, %v530
  %v599 = vpack.c.b16 %v535, %v531
  %664 = vmatprep.subr.bf16.mxu0 %v537
  %665 = vmatpush1.bf16.msra.mxu0 %v536
  %666 = vmatprep.subr.bf16.mxu0 %v541
  %667 = vmatpush1.bf16.msra.mxu0 %v540
  %668 = vmatprep.subr.bf16.mxu0 %v545
  %669 = vmatpush1.bf16.msra.mxu0 %v544
  %670 = vmatprep.subr.bf16.mxu0 %v549
  %671 = vmatpush1.bf16.msra.mxu0 %v548
  %672 = vmatprep.subr.bf16.mxu0 %v553
  %673 = vmatpush1.bf16.msra.mxu0 %v552
  %674 = vmatprep.subr.bf16.mxu0 %v557
  %675 = vmatpush1.bf16.msra.mxu0 %v556
  %676 = vmatprep.subr.bf16.mxu0 %v561
  %677 = vmatpush1.bf16.msra.mxu0 %v560
  %678 = vmatprep.subr.bf16.mxu0 %v565
  %679 = vmatpush1.bf16.msra.mxu0 %v564
  %680 = vmatprep.subr.bf16.mxu0 %v569
  %681 = vmatpush1.bf16.msra.mxu0 %v568
  %682 = vmatprep.subr.bf16.mxu0 %v573
  %683 = vmatpush1.bf16.msra.mxu0 %v572
  %684 = vmatprep.subr.bf16.mxu0 %v577
  %685 = vmatpush1.bf16.msra.mxu0 %v576
  %686 = vmatprep.subr.bf16.mxu0 %v581
  %687 = vmatpush1.bf16.msra.mxu0 %v580
  %688 = vmatprep.subr.bf16.mxu0 %v585
  %689 = vmatpush1.bf16.msra.mxu0 %v584
  %690 = vmatprep.subr.bf16.mxu0 %v589
  %691 = vmatpush1.bf16.msra.mxu0 %v588
  %692 = vmatprep.subr.bf16.mxu0 %v593
  %693 = vmatpush1.bf16.msra.mxu0 %v592
  %694 = vmatprep.subr.bf16.mxu0 %v597
  %695 = vmatpush1.bf16.msra.mxu0 %v596
  %696 = vmatprep.mubr.bf16.mxu0 %v257
  %697 = vmatmul.mubr.bf16.gmra.mrb[0].mxu0 %v256
  %v698 = vpop.f32.mrb[0].mxu0
  %v699 = vadd.f32 %v327, %v698
  %v700 = vpop.f32.mrb[0].mxu0
  %v701 = vadd.f32 %v331, %v700
  %v702 = vpop.f32.mrb[0].mxu0
  %v703 = vpop.f32.mrb[0].mxu0
  %704 = vdwg.mxu0
  %705 = vmatprep.subr.bf16.mxu0 %v539
  %706 = vmatpush1.bf16.msra.mxu0 %v538
  %707 = vmatprep.subr.bf16.mxu0 %v543
  %708 = vmatpush1.bf16.msra.mxu0 %v542
  %709 = vmatprep.subr.bf16.mxu0 %v547
  %710 = vmatpush1.bf16.msra.mxu0 %v546
  %711 = vmatprep.subr.bf16.mxu0 %v551
  %712 = vmatpush1.bf16.msra.mxu0 %v550
  %713 = vmatprep.subr.bf16.mxu0 %v555
  %714 = vmatpush1.bf16.msra.mxu0 %v554
  %715 = vmatprep.subr.bf16.mxu0 %v559
  %716 = vmatpush1.bf16.msra.mxu0 %v558
  %717 = vmatprep.subr.bf16.mxu0 %v563
  %718 = vmatpush1.bf16.msra.mxu0 %v562
  %719 = vmatprep.subr.bf16.mxu0 %v567
  %720 = vmatpush1.bf16.msra.mxu0 %v566
  %721 = vmatprep.subr.bf16.mxu0 %v571
  %722 = vmatpush1.bf16.msra.mxu0 %v570
  %723 = vmatprep.subr.bf16.mxu0 %v575
  %724 = vmatpush1.bf16.msra.mxu0 %v574
  %725 = vmatprep.subr.bf16.mxu0 %v579
  %726 = vmatpush1.bf16.msra.mxu0 %v578
  %727 = vmatprep.subr.bf16.mxu0 %v583
  %728 = vmatpush1.bf16.msra.mxu0 %v582
  %729 = vmatprep.subr.bf16.mxu0 %v587
  %730 = vmatpush1.bf16.msra.mxu0 %v586
  %731 = vmatprep.subr.bf16.mxu0 %v591
  %732 = vmatpush1.bf16.msra.mxu0 %v590
  %733 = vmatprep.subr.bf16.mxu0 %v595
  %734 = vmatpush1.bf16.msra.mxu0 %v594
  %735 = vmatprep.subr.bf16.mxu0 %v599
  %736 = vmatpush1.bf16.msra.mxu0 %v598
  %737 = vmatprep.mubr.bf16.mxu0 %v257
  %738 = vmatmul.mubr.bf16.gmra.mrb[0].mxu0 %v256
  %v739 = vpop.f32.mrb[0].mxu0
  %v740 = vadd.f32 %v335, %v739
  %v741 = vpop.f32.mrb[0].mxu0
  %v742 = vadd.f32 %v339, %v741
  %v743 = vpop.f32.mrb[0].mxu0
  %v744 = vpop.f32.mrb[0].mxu0
  %745 = vdwg.mxu0
  %vm746 = vcmask 1041408
  %v747 = vsel %vm746, %v699, 0.0
  %v748 = vrot.slane %v747, 4
  %v749 = vadd.f32 %v747, %v748
  %v750 = vrot.slane %v749, 2
  %v751 = vadd.f32 %v749, %v750
  %v752 = vrot.slane %v751, 1
  %v753 = vadd.f32 %v751, %v752
  %v754 = vsel %vm746, %v701, 0.0
  %v755 = vrot.slane %v754, 4
  %v756 = vadd.f32 %v754, %v755
  %v757 = vrot.slane %v756, 2
  %v758 = vadd.f32 %v756, %v757
  %v759 = vrot.slane %v758, 1
  %v760 = vadd.f32 %v758, %v759
  %v761 = vsel %vm746, %v740, 0.0
  %v762 = vrot.slane %v761, 4
  %v763 = vadd.f32 %v761, %v762
  %v764 = vrot.slane %v763, 2
  %v765 = vadd.f32 %v763, %v764
  %v766 = vrot.slane %v765, 1
  %v767 = vadd.f32 %v765, %v766
  %v768 = vsel %vm746, %v742, 0.0
  %v769 = vrot.slane %v768, 4
  %v770 = vadd.f32 %v768, %v769
  %v771 = vrot.slane %v770, 2
  %v772 = vadd.f32 %v770, %v771
  %v773 = vrot.slane %v772, 1
  %v774 = vadd.f32 %v772, %v773
  %v775 = vrcp.pop 2.0
  %v776 = vmul.f32 %v753, %v775
  %v777 = vmul.f32 %v760, %v775
  %v778 = vmul.f32 %v767, %v775
  %v779 = vmul.f32 %v774, %v775
  %v780 = vsub.f32 %v699, %v776
  %v781 = vsub.f32 %v701, %v777
  %v782 = vsub.f32 %v740, %v778
  %v783 = vsub.f32 %v742, %v779
  %v784 = vmul.f32 %v780, %v780
  %v785 = vmul.f32 %v781, %v781
  %v786 = vmul.f32 %v782, %v782
  %v787 = vmul.f32 %v783, %v783
  %v788 = vsel %vm746, %v784, 0.0
  %v789 = vrot.slane %v788, 4
  %v790 = vadd.f32 %v788, %v789
  %v791 = vrot.slane %v790, 2
  %v792 = vadd.f32 %v790, %v791
  %v793 = vrot.slane %v792, 1
  %v794 = vadd.f32 %v792, %v793
  %v795 = vsel %vm746, %v785, 0.0
  %v796 = vrot.slane %v795, 4
  %v797 = vadd.f32 %v795, %v796
  %v798 = vrot.slane %v797, 2
  %v799 = vadd.f32 %v797, %v798
  %v800 = vrot.slane %v799, 1
  %v801 = vadd.f32 %v799, %v800
  %v802 = vsel %vm746, %v786, 0.0
  %v803 = vrot.slane %v802, 4
  %v804 = vadd.f32 %v802, %v803
  %v805 = vrot.slane %v804, 2
  %v806 = vadd.f32 %v804, %v805
  %v807 = vrot.slane %v806, 1
  %v808 = vadd.f32 %v806, %v807
  %v809 = vsel %vm746, %v787, 0.0
  %v810 = vrot.slane %v809, 4
  %v811 = vadd.f32 %v809, %v810
  %v812 = vrot.slane %v811, 2
  %v813 = vadd.f32 %v811, %v812
  %v814 = vrot.slane %v813, 1
  %v815 = vadd.f32 %v813, %v814
  %v816 = vmul.f32 %v794, %v775
  %v817 = vmul.f32 %v801, %v775
  %v818 = vmul.f32 %v808, %v775
  %v819 = vmul.f32 %v815, %v775
  %v820 = vadd.f32 %v816, 1e-05
  %v821 = vadd.f32 %v817, 1e-05
  %v822 = vadd.f32 %v818, 1e-05
  %v823 = vadd.f32 %v819, 1e-05
  %v824 = vrsqrt.pop %v820
  %v825 = vrsqrt.pop %v821
  %v826 = vrsqrt.pop %v822
  %v827 = vrsqrt.pop %v823
  %v828 = vmul.f32 %v780, %v824
  %v829 = vmul.f32 %v781, %v825
  %v830 = vmul.f32 %v782, %v826
  %v831 = vmul.f32 %v783, %v827
  %v832 = vld [vmem:[%s4] sm:$0xf]
  %v834 = vlaneseq
  %v835 = vshrl.u32 %v834, 7
  %v836 = vsub.s32 0, %v835
  %v837 = vrot.slane %v832, %v836
  %v838 = vlaneseq
  %v839 = vshrl.u32 %v838, 7
  %v840 = vsub.s32 1, %v839
  %v841 = vrot.slane %v832, %v840
  %v842 = vlaneseq
  %v843 = vshrl.u32 %v842, 7
  %v844 = vsub.s32 2, %v843
  %v845 = vrot.slane %v832, %v844
  %v846 = vlaneseq
  %v847 = vshrl.u32 %v846, 7
  %v848 = vsub.s32 3, %v847
  %v849 = vrot.slane %v832, %v848
  %v854 = vmul.f32 %v828, %v837
  %v855 = vmul.f32 %v829, %v841
  %v856 = vmul.f32 %v830, %v845
  %v857 = vmul.f32 %v831, %v849
  %v858 = vld [vmem:[%s5] sm:$0xf]
  %v860 = vlaneseq
  %v861 = vshrl.u32 %v860, 7
  %v862 = vsub.s32 0, %v861
  %v863 = vrot.slane %v858, %v862
  %v864 = vlaneseq
  %v865 = vshrl.u32 %v864, 7
  %v866 = vsub.s32 1, %v865
  %v867 = vrot.slane %v858, %v866
  %v868 = vlaneseq
  %v869 = vshrl.u32 %v868, 7
  %v870 = vsub.s32 2, %v869
  %v871 = vrot.slane %v858, %v870
  %v872 = vlaneseq
  %v873 = vshrl.u32 %v872, 7
  %v874 = vsub.s32 3, %v873
  %v875 = vrot.slane %v858, %v874
  %v880 = vadd.f32 %v854, %v863
  %v881 = vadd.f32 %v855, %v867
  %v882 = vadd.f32 %v856, %v871
  %v883 = vadd.f32 %v857, %v875
  %v884 = vmul.f32 %v880, 0.2
  %v885 = vmul.f32 %v881, 0.2
  %v886 = vmul.f32 %v882, 0.2
  %v887 = vmul.f32 %v883, 0.2
  %v888 = vmax.f32 %v880, %v884
  %v889 = vmax.f32 %v881, %v885
  %v890 = vmax.f32 %v882, %v886
  %v891 = vmax.f32 %v883, %v887
  %v896 = vcombine.low %v888, %v889
  %v897 = vcombine.low %v890, %v891
  %v899 = vunpack.c.l.s4 1983009808
  %v900 = vunpack.c.0.s8 %v899
  %v901 = vlaneseq
  %v902 = vshrl.u32 %v901, 7
  %v903 = vsub.s32 %v900, %v902
  %v904 = vrot.slane %v896, %v903
  %v906 = vunpack.c.l.s4 1983009808
  %v907 = vunpack.c.0.s8 %v906
  %v908 = vlaneseq
  %v909 = vshrl.u32 %v908, 7
  %v910 = vsub.s32 %v907, %v909
  %v911 = vrot.slane %v897, %v910
  %v912 = vcombine.low %v904, %v911
  %914 = vst [vmem:[%s6] sm:$0xff] %v912
  // Predicated region
  $region26: #{discriminator_forward.8} parent=0 // pred_check
    _
  $region27: #{discriminator_forward.8} parent=0 // pred_check_branch
    %916 = sbr.rel (0) target = $region29
  $region28: #{discriminator_forward.8} parent=0 // pred_region
    _
  $region29: #{discriminator_forward.8} parent=0 // pred_fallthru
    _
  // Predicated region
  $region30: #{discriminator_forward.8} parent=0 // pred_check
    _
  $region31: #{discriminator_forward.8} parent=0 // pred_check_branch
    %918 = sbr.rel (0) target = $region33
  $region32: #{discriminator_forward.8} parent=0 // pred_region
    _
  $region33: #{discriminator_forward.8} parent=0 // pred_fallthru
    _

// kernel: discriminator_forward.9
$region0: #{discriminator_forward.9}
  #allocation0 [shape = 'u32[]', space=smem, size = 0x4, offset = 0x4, fixed_abs, tag = 'smem constant byte address 0x4 - core index']
  #allocation1 [shape = 'u32[144,128]{1,0:T(1,128)}', space=vmem, size = 0x12000, scoped, tag = 'internal scratch']
  #allocation2 [shape = 'f32[1,1]{1,0:T(1,128)S(1)}', space=vmem, size = 0x200, scoped, tag = 'scoped memory for discriminator_forward.9']
  %s0 = inlined_call_operand.vmem [shape: bf16[9,2,512], index: 0, kind: input, shape index: {}]
  %s1 = inlined_call_operand.vmem [shape: f32[9,1,512], index: 1, kind: input, shape index: {}]
  %s2 = inlined_call_operand.vmem [shape: bf16[512,1024], index: 2, kind: input, shape index: {}]
  %s3 = inlined_call_operand.vmem [shape: f32[1,1024], index: 3, kind: input, shape index: {}]
  %s4 = inlined_call_operand.vmem [shape: f32[1,1024], index: 4, kind: input, shape index: {}]
  %s5 = inlined_call_operand.vmem [shape: f32[1,1024], index: 5, kind: input, shape index: {}]
  %s6 = inlined_call_operand.vmem [shape: f32[2,2], index: 6, kind: input, shape index: {}]
  %s7 = inlined_call_operand.vmem [shape: f32[1024,1], index: 7, kind: input, shape index: {}]
  %s8 = inlined_call_operand.<no memory space> [shape: f32[1,1], index: 8, kind: input, shape index: {}]
  %s9 = inlined_call_operand.vmem [shape: f32[2,1], index: 9, kind: output, shape index: {}]
  %s10 = sld [smem:[#allocation0]]
  $region46: #{discriminator_forward.9} parent=0
    _
  %s12 = ssub.s32 1, %s10
  %s13 = scalar_select 0, %s12, %s10
  %v14 = vstv %s8
  %15 = vst [vmem:[#allocation2] sm:$0x1] %v14
  // Predicated region
  $region2: #{discriminator_forward.9} parent=0 // pred_check
    _
  $region3: #{discriminator_forward.9} parent=0 // pred_check_branch
    %17 = sbr.rel (0) target = $region5
  $region4: #{discriminator_forward.9} parent=0 // pred_region
    _
  $region5: #{discriminator_forward.9} parent=0 // pred_fallthru
    _
  // Predicated region
  $region6: #{discriminator_forward.9} parent=0 // pred_check
    _
  $region7: #{discriminator_forward.9} parent=0 // pred_check_branch
    %19 = sbr.rel (0) target = $region9
  $region8: #{discriminator_forward.9} parent=0 // pred_region
    _
  $region9: #{discriminator_forward.9} parent=0 // pred_fallthru
    _
  // Predicated region
  $region10: #{discriminator_forward.9} parent=0 // pred_check
    _
  $region11: #{discriminator_forward.9} parent=0 // pred_check_branch
    %21 = sbr.rel (0) target = $region13
  $region12: #{discriminator_forward.9} parent=0 // pred_region
    _
  $region13: #{discriminator_forward.9} parent=0 // pred_fallthru
    _
  // Predicated region
  $region14: #{discriminator_forward.9} parent=0 // pred_check
    _
  $region15: #{discriminator_forward.9} parent=0 // pred_check_branch
    %23 = sbr.rel (0) target = $region17
  $region16: #{discriminator_forward.9} parent=0 // pred_region
    _
  $region17: #{discriminator_forward.9} parent=0 // pred_fallthru
    _
  // Predicated region
  $region18: #{discriminator_forward.9} parent=0 // pred_check
    _
  $region19: #{discriminator_forward.9} parent=0 // pred_check_branch
    %25 = sbr.rel (0) target = $region21
  $region20: #{discriminator_forward.9} parent=0 // pred_region
    _
  $region21: #{discriminator_forward.9} parent=0 // pred_fallthru
    _
  // Predicated region
  $region22: #{discriminator_forward.9} parent=0 // pred_check
    _
  $region23: #{discriminator_forward.9} parent=0 // pred_check_branch
    %27 = sbr.rel (0) target = $region25
  $region24: #{discriminator_forward.9} parent=0 // pred_region
    _
  $region25: #{discriminator_forward.9} parent=0 // pred_fallthru
    _
  // Predicated region
  $region26: #{discriminator_forward.9} parent=0 // pred_check
    _
  $region27: #{discriminator_forward.9} parent=0 // pred_check_branch
    %29 = sbr.rel (0) target = $region29
  $region28: #{discriminator_forward.9} parent=0 // pred_region
    _
  $region29: #{discriminator_forward.9} parent=0 // pred_fallthru
    _
  // Predicated region
  $region30: #{discriminator_forward.9} parent=0 // pred_check
    _
  $region31: #{discriminator_forward.9} parent=0 // pred_check_branch
    %31 = sbr.rel (0) target = $region33
  $region32: #{discriminator_forward.9} parent=0 // pred_region
    _
  $region33: #{discriminator_forward.9} parent=0 // pred_fallthru
    _
  // Predicated region
  $region34: #{discriminator_forward.9} parent=0 // pred_check
    _
  $region35: #{discriminator_forward.9} parent=0 // pred_check_branch
    %33 = sbr.rel (0) target = $region37
  $region36: #{discriminator_forward.9} parent=0 // pred_region
    _
  $region37: #{discriminator_forward.9} parent=0 // pred_fallthru
    _
  %v34 = vld [vmem:[%s0] sm:$0xf]
  %v35 = vunpack.c.l.bf16 %v34
  %v36 = vld [vmem:[%s1] sm:$0xf]
  %v38 = vlaneseq
  %v39 = vshrl.u32 %v38, 7
  %v40 = vsub.s32 0, %v39
  %v41 = vrot.slane %v36, %v40
  %v42 = vlaneseq
  %v43 = vshrl.u32 %v42, 7
  %v44 = vsub.s32 1, %v43
  %v45 = vrot.slane %v36, %v44
  %v46 = vlaneseq
  %v47 = vshrl.u32 %v46, 7
  %v48 = vsub.s32 2, %v47
  %v49 = vrot.slane %v36, %v48
  %v50 = vlaneseq
  %v51 = vshrl.u32 %v50, 7
  %v52 = vsub.s32 3, %v51
  %v53 = vrot.slane %v36, %v52
  %v54 = vcombine.low %v41, %v45
  %v55 = vcombine.low %v49, %v53
  %v57 = vunpack.c.l.s4 1983009808
  %v58 = vunpack.c.0.s8 %v57
  %v59 = vlaneseq
  %v60 = vshrl.u32 %v59, 7
  %v61 = vsub.s32 %v58, %v60
  %v62 = vrot.slane %v54, %v61
  %v64 = vunpack.c.l.s4 1983009808
  %v65 = vunpack.c.0.s8 %v64
  %v66 = vlaneseq
  %v67 = vshrl.u32 %v66, 7
  %v68 = vsub.s32 %v65, %v67
  %v69 = vrot.slane %v55, %v68
  %v70 = vcombine.low %v62, %v69
  %v72 = vmul.f32 %v35, %v70
  %s73 = scalar_lea.vmem %s0, 4
  %v74 = vld [vmem:[%s73] sm:$0xf]
  %v75 = vunpack.c.l.bf16 %v74
  %s76 = scalar_lea.vmem %s1, 4
  %v77 = vld [vmem:[%s76] sm:$0xf]
  %v79 = vlaneseq
  %v80 = vshrl.u32 %v79, 7
  %v81 = vsub.s32 0, %v80
  %v82 = vrot.slane %v77, %v81
  %v83 = vlaneseq
  %v84 = vshrl.u32 %v83, 7
  %v85 = vsub.s32 1, %v84
  %v86 = vrot.slane %v77, %v85
  %v87 = vlaneseq
  %v88 = vshrl.u32 %v87, 7
  %v89 = vsub.s32 2, %v88
  %v90 = vrot.slane %v77, %v89
  %v91 = vlaneseq
  %v92 = vshrl.u32 %v91, 7
  %v93 = vsub.s32 3, %v92
  %v94 = vrot.slane %v77, %v93
  %v95 = vcombine.low %v82, %v86
  %v96 = vcombine.low %v90, %v94
  %v98 = vunpack.c.l.s4 1983009808
  %v99 = vunpack.c.0.s8 %v98
  %v100 = vlaneseq
  %v101 = vshrl.u32 %v100, 7
  %v102 = vsub.s32 %v99, %v101
  %v103 = vrot.slane %v95, %v102
  %v105 = vunpack.c.l.s4 1983009808
  %v106 = vunpack.c.0.s8 %v105
  %v107 = vlaneseq
  %v108 = vshrl.u32 %v107, 7
  %v109 = vsub.s32 %v106, %v108
  %v110 = vrot.slane %v96, %v109
  %v111 = vcombine.low %v103, %v110
  %v113 = vmul.f32 %v75, %v111
  %v114 = vadd.f32 %v72, %v113
  %s115 = scalar_lea.vmem %s0, 8
  %v116 = vld [vmem:[%s115] sm:$0xf]
  %v117 = vunpack.c.l.bf16 %v116
  %s118 = scalar_lea.vmem %s1, 8
  %v119 = vld [vmem:[%s118] sm:$0xf]
  %v121 = vlaneseq
  %v122 = vshrl.u32 %v121, 7
  %v123 = vsub.s32 0, %v122
  %v124 = vrot.slane %v119, %v123
  %v125 = vlaneseq
  %v126 = vshrl.u32 %v125, 7
  %v127 = vsub.s32 1, %v126
  %v128 = vrot.slane %v119, %v127
  %v129 = vlaneseq
  %v130 = vshrl.u32 %v129, 7
  %v131 = vsub.s32 2, %v130
  %v132 = vrot.slane %v119, %v131
  %v133 = vlaneseq
  %v134 = vshrl.u32 %v133, 7
  %v135 = vsub.s32 3, %v134
  %v136 = vrot.slane %v119, %v135
  %v137 = vcombine.low %v124, %v128
  %v138 = vcombine.low %v132, %v136
  %v140 = vunpack.c.l.s4 1983009808
  %v141 = vunpack.c.0.s8 %v140
  %v142 = vlaneseq
  %v143 = vshrl.u32 %v142, 7
  %v144 = vsub.s32 %v141, %v143
  %v145 = vrot.slane %v137, %v144
  %v147 = vunpack.c.l.s4 1983009808
  %v148 = vunpack.c.0.s8 %v147
  %v149 = vlaneseq
  %v150 = vshrl.u32 %v149, 7
  %v151 = vsub.s32 %v148, %v150
  %v152 = vrot.slane %v138, %v151
  %v153 = vcombine.low %v145, %v152
  %v155 = vmul.f32 %v117, %v153
  %v156 = vadd.f32 %v114, %v155
  %s157 = scalar_lea.vmem %s0, 12
  %v158 = vld [vmem:[%s157] sm:$0xf]
  %v159 = vunpack.c.l.bf16 %v158
  %s160 = scalar_lea.vmem %s1, 12
  %v161 = vld [vmem:[%s160] sm:$0xf]
  %v163 = vlaneseq
  %v164 = vshrl.u32 %v163, 7
  %v165 = vsub.s32 0, %v164
  %v166 = vrot.slane %v161, %v165
  %v167 = vlaneseq
  %v168 = vshrl.u32 %v167, 7
  %v169 = vsub.s32 1, %v168
  %v170 = vrot.slane %v161, %v169
  %v171 = vlaneseq
  %v172 = vshrl.u32 %v171, 7
  %v173 = vsub.s32 2, %v172
  %v174 = vrot.slane %v161, %v173
  %v175 = vlaneseq
  %v176 = vshrl.u32 %v175, 7
  %v177 = vsub.s32 3, %v176
  %v178 = vrot.slane %v161, %v177
  %v179 = vcombine.low %v166, %v170
  %v180 = vcombine.low %v174, %v178
  %v182 = vunpack.c.l.s4 1983009808
  %v183 = vunpack.c.0.s8 %v182
  %v184 = vlaneseq
  %v185 = vshrl.u32 %v184, 7
  %v186 = vsub.s32 %v183, %v185
  %v187 = vrot.slane %v179, %v186
  %v189 = vunpack.c.l.s4 1983009808
  %v190 = vunpack.c.0.s8 %v189
  %v191 = vlaneseq
  %v192 = vshrl.u32 %v191, 7
  %v193 = vsub.s32 %v190, %v192
  %v194 = vrot.slane %v180, %v193
  %v195 = vcombine.low %v187, %v194
  %v197 = vmul.f32 %v159, %v195
  %v198 = vadd.f32 %v156, %v197
  %s199 = scalar_lea.vmem %s0, 16
  %v200 = vld [vmem:[%s199] sm:$0xf]
  %v201 = vunpack.c.l.bf16 %v200
  %s202 = scalar_lea.vmem %s1, 16
  %v203 = vld [vmem:[%s202] sm:$0xf]
  %v205 = vlaneseq
  %v206 = vshrl.u32 %v205, 7
  %v207 = vsub.s32 0, %v206
  %v208 = vrot.slane %v203, %v207
  %v209 = vlaneseq
  %v210 = vshrl.u32 %v209, 7
  %v211 = vsub.s32 1, %v210
  %v212 = vrot.slane %v203, %v211
  %v213 = vlaneseq
  %v214 = vshrl.u32 %v213, 7
  %v215 = vsub.s32 2, %v214
  %v216 = vrot.slane %v203, %v215
  %v217 = vlaneseq
  %v218 = vshrl.u32 %v217, 7
  %v219 = vsub.s32 3, %v218
  %v220 = vrot.slane %v203, %v219
  %v221 = vcombine.low %v208, %v212
  %v222 = vcombine.low %v216, %v220
  %v224 = vunpack.c.l.s4 1983009808
  %v225 = vunpack.c.0.s8 %v224
  %v226 = vlaneseq
  %v227 = vshrl.u32 %v226, 7
  %v228 = vsub.s32 %v225, %v227
  %v229 = vrot.slane %v221, %v228
  %v231 = vunpack.c.l.s4 1983009808
  %v232 = vunpack.c.0.s8 %v231
  %v233 = vlaneseq
  %v234 = vshrl.u32 %v233, 7
  %v235 = vsub.s32 %v232, %v234
  %v236 = vrot.slane %v222, %v235
  %v237 = vcombine.low %v229, %v236
  %v239 = vmul.f32 %v201, %v237
  %v240 = vadd.f32 %v198, %v239
  %s241 = scalar_lea.vmem %s0, 20
  %v242 = vld [vmem:[%s241] sm:$0xf]
  %v243 = vunpack.c.l.bf16 %v242
  %s244 = scalar_lea.vmem %s1, 20
  %v245 = vld [vmem:[%s244] sm:$0xf]
  %v247 = vlaneseq
  %v248 = vshrl.u32 %v247, 7
  %v249 = vsub.s32 0, %v248
  %v250 = vrot.slane %v245, %v249
  %v251 = vlaneseq
  %v252 = vshrl.u32 %v251, 7
  %v253 = vsub.s32 1, %v252
  %v254 = vrot.slane %v245, %v253
  %v255 = vlaneseq
  %v256 = vshrl.u32 %v255, 7
  %v257 = vsub.s32 2, %v256
  %v258 = vrot.slane %v245, %v257
  %v259 = vlaneseq
  %v260 = vshrl.u32 %v259, 7
  %v261 = vsub.s32 3, %v260
  %v262 = vrot.slane %v245, %v261
  %v263 = vcombine.low %v250, %v254
  %v264 = vcombine.low %v258, %v262
  %v266 = vunpack.c.l.s4 1983009808
  %v267 = vunpack.c.0.s8 %v266
  %v268 = vlaneseq
  %v269 = vshrl.u32 %v268, 7
  %v270 = vsub.s32 %v267, %v269
  %v271 = vrot.slane %v263, %v270
  %v273 = vunpack.c.l.s4 1983009808
  %v274 = vunpack.c.0.s8 %v273
  %v275 = vlaneseq
  %v276 = vshrl.u32 %v275, 7
  %v277 = vsub.s32 %v274, %v276
  %v278 = vrot.slane %v264, %v277
  %v279 = vcombine.low %v271, %v278
  %v281 = vmul.f32 %v243, %v279
  %v282 = vadd.f32 %v240, %v281
  %s283 = scalar_lea.vmem %s0, 24
  %v284 = vld [vmem:[%s283] sm:$0xf]
  %v285 = vunpack.c.l.bf16 %v284
  %s286 = scalar_lea.vmem %s1, 24
  %v287 = vld [vmem:[%s286] sm:$0xf]
  %v289 = vlaneseq
  %v290 = vshrl.u32 %v289, 7
  %v291 = vsub.s32 0, %v290
  %v292 = vrot.slane %v287, %v291
  %v293 = vlaneseq
  %v294 = vshrl.u32 %v293, 7
  %v295 = vsub.s32 1, %v294
  %v296 = vrot.slane %v287, %v295
  %v297 = vlaneseq
  %v298 = vshrl.u32 %v297, 7
  %v299 = vsub.s32 2, %v298
  %v300 = vrot.slane %v287, %v299
  %v301 = vlaneseq
  %v302 = vshrl.u32 %v301, 7
  %v303 = vsub.s32 3, %v302
  %v304 = vrot.slane %v287, %v303
  %v305 = vcombine.low %v292, %v296
  %v306 = vcombine.low %v300, %v304
  %v308 = vunpack.c.l.s4 1983009808
  %v309 = vunpack.c.0.s8 %v308
  %v310 = vlaneseq
  %v311 = vshrl.u32 %v310, 7
  %v312 = vsub.s32 %v309, %v311
  %v313 = vrot.slane %v305, %v312
  %v315 = vunpack.c.l.s4 1983009808
  %v316 = vunpack.c.0.s8 %v315
  %v317 = vlaneseq
  %v318 = vshrl.u32 %v317, 7
  %v319 = vsub.s32 %v316, %v318
  %v320 = vrot.slane %v306, %v319
  %v321 = vcombine.low %v313, %v320
  %v323 = vmul.f32 %v285, %v321
  %v324 = vadd.f32 %v282, %v323
  %s325 = scalar_lea.vmem %s0, 28
  %v326 = vld [vmem:[%s325] sm:$0xf]
  %v327 = vunpack.c.l.bf16 %v326
  %s328 = scalar_lea.vmem %s1, 28
  %v329 = vld [vmem:[%s328] sm:$0xf]
  %v331 = vlaneseq
  %v332 = vshrl.u32 %v331, 7
  %v333 = vsub.s32 0, %v332
  %v334 = vrot.slane %v329, %v333
  %v335 = vlaneseq
  %v336 = vshrl.u32 %v335, 7
  %v337 = vsub.s32 1, %v336
  %v338 = vrot.slane %v329, %v337
  %v339 = vlaneseq
  %v340 = vshrl.u32 %v339, 7
  %v341 = vsub.s32 2, %v340
  %v342 = vrot.slane %v329, %v341
  %v343 = vlaneseq
  %v344 = vshrl.u32 %v343, 7
  %v345 = vsub.s32 3, %v344
  %v346 = vrot.slane %v329, %v345
  %v347 = vcombine.low %v334, %v338
  %v348 = vcombine.low %v342, %v346
  %v350 = vunpack.c.l.s4 1983009808
  %v351 = vunpack.c.0.s8 %v350
  %v352 = vlaneseq
  %v353 = vshrl.u32 %v352, 7
  %v354 = vsub.s32 %v351, %v353
  %v355 = vrot.slane %v347, %v354
  %v357 = vunpack.c.l.s4 1983009808
  %v358 = vunpack.c.0.s8 %v357
  %v359 = vlaneseq
  %v360 = vshrl.u32 %v359, 7
  %v361 = vsub.s32 %v358, %v360
  %v362 = vrot.slane %v348, %v361
  %v363 = vcombine.low %v355, %v362
  %v365 = vmul.f32 %v327, %v363
  %v366 = vadd.f32 %v324, %v365
  %s367 = scalar_lea.vmem %s0, 32
  %v368 = vld [vmem:[%s367] sm:$0xf]
  %v369 = vunpack.c.l.bf16 %v368
  %s370 = scalar_lea.vmem %s1, 32
  %v371 = vld [vmem:[%s370] sm:$0xf]
  %v373 = vlaneseq
  %v374 = vshrl.u32 %v373, 7
  %v375 = vsub.s32 0, %v374
  %v376 = vrot.slane %v371, %v375
  %v377 = vlaneseq
  %v378 = vshrl.u32 %v377, 7
  %v379 = vsub.s32 1, %v378
  %v380 = vrot.slane %v371, %v379
  %v381 = vlaneseq
  %v382 = vshrl.u32 %v381, 7
  %v383 = vsub.s32 2, %v382
  %v384 = vrot.slane %v371, %v383
  %v385 = vlaneseq
  %v386 = vshrl.u32 %v385, 7
  %v387 = vsub.s32 3, %v386
  %v388 = vrot.slane %v371, %v387
  %v389 = vcombine.low %v376, %v380
  %v390 = vcombine.low %v384, %v388
  %v392 = vunpack.c.l.s4 1983009808
  %v393 = vunpack.c.0.s8 %v392
  %v394 = vlaneseq
  %v395 = vshrl.u32 %v394, 7
  %v396 = vsub.s32 %v393, %v395
  %v397 = vrot.slane %v389, %v396
  %v399 = vunpack.c.l.s4 1983009808
  %v400 = vunpack.c.0.s8 %v399
  %v401 = vlaneseq
  %v402 = vshrl.u32 %v401, 7
  %v403 = vsub.s32 %v400, %v402
  %v404 = vrot.slane %v390, %v403
  %v405 = vcombine.low %v397, %v404
  %v407 = vmul.f32 %v369, %v405
  %v408 = vadd.f32 %v366, %v407
  %v410 = vcombine.high %v408, %v408
  %v412 = vunpack.c.l.s4 1983009808
  %v413 = vunpack.c.0.s8 %v412
  %v414 = vlaneseq
  %v415 = vshrl.u32 %v414, 7
  %v416 = vsub.s32 %v413, %v415
  %v417 = vrot.slane %v408, %v416
  %v419 = vunpack.c.l.s4 1983009808
  %v420 = vunpack.c.0.s8 %v419
  %v421 = vlaneseq
  %v422 = vshrl.u32 %v421, 7
  %v423 = vsub.s32 %v420, %v422
  %v424 = vrot.slane %v410, %v423
  %v425 = vcombine.high %v417, %v417
  %v426 = vcombine.high %v424, %v424
  %v431 = vpack.c.bf16 %v417, %v417
  %v432 = vpack.c.bf16 %v425, %v425
  %v433 = vpack.c.bf16 %v424, %v424
  %v434 = vpack.c.bf16 %v426, %v426
  %v435 = vld [vmem:[%s2] sm:$0xff]
  %v436 = vld [vmem:[%s2 + $0x8] sm:$0xff]
  %v437 = vld [vmem:[%s2 + $0x10] sm:$0xff]
  %v438 = vld [vmem:[%s2 + $0x18] sm:$0xff]
  %v439 = vld [vmem:[%s2 + $0x20] sm:$0xff]
  %v440 = vld [vmem:[%s2 + $0x28] sm:$0xff]
  %v441 = vld [vmem:[%s2 + $0x30] sm:$0xff]
  %v442 = vld [vmem:[%s2 + $0x38] sm:$0xff]
  %v443 = vld [vmem:[%s2 + $0x40] sm:$0xff]
  %v444 = vld [vmem:[%s2 + $0x48] sm:$0xff]
  %v445 = vld [vmem:[%s2 + $0x50] sm:$0xff]
  %v446 = vld [vmem:[%s2 + $0x58] sm:$0xff]
  %v447 = vld [vmem:[%s2 + $0x60] sm:$0xff]
  %v448 = vld [vmem:[%s2 + $0x68] sm:$0xff]
  %v449 = vld [vmem:[%s2 + $0x70] sm:$0xff]
  %v450 = vld [vmem:[%s2 + $0x78] sm:$0xff]
  %v451 = vld [vmem:[%s2 + $0x80] sm:$0xff]
  %v452 = vld [vmem:[%s2 + $0x88] sm:$0xff]
  %v453 = vld [vmem:[%s2 + $0x90] sm:$0xff]
  %v454 = vld [vmem:[%s2 + $0x98] sm:$0xff]
  %v455 = vld [vmem:[%s2 + $0xa0] sm:$0xff]
  %v456 = vld [vmem:[%s2 + $0xa8] sm:$0xff]
  %v457 = vld [vmem:[%s2 + $0xb0] sm:$0xff]
  %v458 = vld [vmem:[%s2 + $0xb8] sm:$0xff]
  %v459 = vld [vmem:[%s2 + $0xc0] sm:$0xff]
  %v460 = vld [vmem:[%s2 + $0xc8] sm:$0xff]
  %v461 = vld [vmem:[%s2 + $0xd0] sm:$0xff]
  %v462 = vld [vmem:[%s2 + $0xd8] sm:$0xff]
  %v463 = vld [vmem:[%s2 + $0xe0] sm:$0xff]
  %v464 = vld [vmem:[%s2 + $0xe8] sm:$0xff]
  %v465 = vld [vmem:[%s2 + $0xf0] sm:$0xff]
  %v466 = vld [vmem:[%s2 + $0xf8] sm:$0xff]
  %v467 = vld [vmem:[%s2 + $0x100] sm:$0xff]
  %v468 = vld [vmem:[%s2 + $0x108] sm:$0xff]
  %v469 = vld [vmem:[%s2 + $0x110] sm:$0xff]
  %v470 = vld [vmem:[%s2 + $0x118] sm:$0xff]
  %v471 = vld [vmem:[%s2 + $0x120] sm:$0xff]
  %v472 = vld [vmem:[%s2 + $0x128] sm:$0xff]
  %v473 = vld [vmem:[%s2 + $0x130] sm:$0xff]
  %v474 = vld [vmem:[%s2 + $0x138] sm:$0xff]
  %v475 = vld [vmem:[%s2 + $0x140] sm:$0xff]
  %v476 = vld [vmem:[%s2 + $0x148] sm:$0xff]
  %v477 = vld [vmem:[%s2 + $0x150] sm:$0xff]
  %v478 = vld [vmem:[%s2 + $0x158] sm:$0xff]
  %v479 = vld [vmem:[%s2 + $0x160] sm:$0xff]
  %v480 = vld [vmem:[%s2 + $0x168] sm:$0xff]
  %v481 = vld [vmem:[%s2 + $0x170] sm:$0xff]
  %v482 = vld [vmem:[%s2 + $0x178] sm:$0xff]
  %v483 = vld [vmem:[%s2 + $0x180] sm:$0xff]
  %v484 = vld [vmem:[%s2 + $0x188] sm:$0xff]
  %v485 = vld [vmem:[%s2 + $0x190] sm:$0xff]
  %v486 = vld [vmem:[%s2 + $0x198] sm:$0xff]
  %v487 = vld [vmem:[%s2 + $0x1a0] sm:$0xff]
  %v488 = vld [vmem:[%s2 + $0x1a8] sm:$0xff]
  %v489 = vld [vmem:[%s2 + $0x1b0] sm:$0xff]
  %v490 = vld [vmem:[%s2 + $0x1b8] sm:$0xff]
  %v491 = vld [vmem:[%s2 + $0x1c0] sm:$0xff]
  %v492 = vld [vmem:[%s2 + $0x1c8] sm:$0xff]
  %v493 = vld [vmem:[%s2 + $0x1d0] sm:$0xff]
  %v494 = vld [vmem:[%s2 + $0x1d8] sm:$0xff]
  %v495 = vld [vmem:[%s2 + $0x1e0] sm:$0xff]
  %v496 = vld [vmem:[%s2 + $0x1e8] sm:$0xff]
  %v497 = vld [vmem:[%s2 + $0x1f0] sm:$0xff]
  %v498 = vld [vmem:[%s2 + $0x1f8] sm:$0xff]
  %v499 = vld [vmem:[%s2 + $0x200] sm:$0xff]
  %v500 = vld [vmem:[%s2 + $0x208] sm:$0xff]
  %v501 = vld [vmem:[%s2 + $0x210] sm:$0xff]
  %v502 = vld [vmem:[%s2 + $0x218] sm:$0xff]
  %v503 = vld [vmem:[%s2 + $0x220] sm:$0xff]
  %v504 = vld [vmem:[%s2 + $0x228] sm:$0xff]
  %v505 = vld [vmem:[%s2 + $0x230] sm:$0xff]
  %v506 = vld [vmem:[%s2 + $0x238] sm:$0xff]
  %v507 = vld [vmem:[%s2 + $0x240] sm:$0xff]
  %v508 = vld [vmem:[%s2 + $0x248] sm:$0xff]
  %v509 = vld [vmem:[%s2 + $0x250] sm:$0xff]
  %v510 = vld [vmem:[%s2 + $0x258] sm:$0xff]
  %v511 = vld [vmem:[%s2 + $0x260] sm:$0xff]
  %v512 = vld [vmem:[%s2 + $0x268] sm:$0xff]
  %v513 = vld [vmem:[%s2 + $0x270] sm:$0xff]
  %v514 = vld [vmem:[%s2 + $0x278] sm:$0xff]
  %v515 = vld [vmem:[%s2 + $0x280] sm:$0xff]
  %v516 = vld [vmem:[%s2 + $0x288] sm:$0xff]
  %v517 = vld [vmem:[%s2 + $0x290] sm:$0xff]
  %v518 = vld [vmem:[%s2 + $0x298] sm:$0xff]
  %v519 = vld [vmem:[%s2 + $0x2a0] sm:$0xff]
  %v520 = vld [vmem:[%s2 + $0x2a8] sm:$0xff]
  %v521 = vld [vmem:[%s2 + $0x2b0] sm:$0xff]
  %v522 = vld [vmem:[%s2 + $0x2b8] sm:$0xff]
  %v523 = vld [vmem:[%s2 + $0x2c0] sm:$0xff]
  %v524 = vld [vmem:[%s2 + $0x2c8] sm:$0xff]
  %v525 = vld [vmem:[%s2 + $0x2d0] sm:$0xff]
  %v526 = vld [vmem:[%s2 + $0x2d8] sm:$0xff]
  %v527 = vld [vmem:[%s2 + $0x2e0] sm:$0xff]
  %v528 = vld [vmem:[%s2 + $0x2e8] sm:$0xff]
  %v529 = vld [vmem:[%s2 + $0x2f0] sm:$0xff]
  %v530 = vld [vmem:[%s2 + $0x2f8] sm:$0xff]
  %v531 = vld [vmem:[%s2 + $0x300] sm:$0xff]
  %v532 = vld [vmem:[%s2 + $0x308] sm:$0xff]
  %v533 = vld [vmem:[%s2 + $0x310] sm:$0xff]
  %v534 = vld [vmem:[%s2 + $0x318] sm:$0xff]
  %v535 = vld [vmem:[%s2 + $0x320] sm:$0xff]
  %v536 = vld [vmem:[%s2 + $0x328] sm:$0xff]
  %v537 = vld [vmem:[%s2 + $0x330] sm:$0xff]
  %v538 = vld [vmem:[%s2 + $0x338] sm:$0xff]
  %v539 = vld [vmem:[%s2 + $0x340] sm:$0xff]
  %v540 = vld [vmem:[%s2 + $0x348] sm:$0xff]
  %v541 = vld [vmem:[%s2 + $0x350] sm:$0xff]
  %v542 = vld [vmem:[%s2 + $0x358] sm:$0xff]
  %v543 = vld [vmem:[%s2 + $0x360] sm:$0xff]
  %v544 = vld [vmem:[%s2 + $0x368] sm:$0xff]
  %v545 = vld [vmem:[%s2 + $0x370] sm:$0xff]
  %v546 = vld [vmem:[%s2 + $0x378] sm:$0xff]
  %v547 = vld [vmem:[%s2 + $0x380] sm:$0xff]
  %v548 = vld [vmem:[%s2 + $0x388] sm:$0xff]
  %v549 = vld [vmem:[%s2 + $0x390] sm:$0xff]
  %v550 = vld [vmem:[%s2 + $0x398] sm:$0xff]
  %v551 = vld [vmem:[%s2 + $0x3a0] sm:$0xff]
  %v552 = vld [vmem:[%s2 + $0x3a8] sm:$0xff]
  %v553 = vld [vmem:[%s2 + $0x3b0] sm:$0xff]
  %v554 = vld [vmem:[%s2 + $0x3b8] sm:$0xff]
  %v555 = vld [vmem:[%s2 + $0x3c0] sm:$0xff]
  %v556 = vld [vmem:[%s2 + $0x3c8] sm:$0xff]
  %v557 = vld [vmem:[%s2 + $0x3d0] sm:$0xff]
  %v558 = vld [vmem:[%s2 + $0x3d8] sm:$0xff]
  %v559 = vld [vmem:[%s2 + $0x3e0] sm:$0xff]
  %v560 = vld [vmem:[%s2 + $0x3e8] sm:$0xff]
  %v561 = vld [vmem:[%s2 + $0x3f0] sm:$0xff]
  %v562 = vld [vmem:[%s2 + $0x3f8] sm:$0xff]
  %v563 = vld [vmem:[%s2 + $0x400] sm:$0xff]
  %v564 = vld [vmem:[%s2 + $0x408] sm:$0xff]
  %v565 = vld [vmem:[%s2 + $0x410] sm:$0xff]
  %v566 = vld [vmem:[%s2 + $0x418] sm:$0xff]
  %v567 = vld [vmem:[%s2 + $0x420] sm:$0xff]
  %v568 = vld [vmem:[%s2 + $0x428] sm:$0xff]
  %v569 = vld [vmem:[%s2 + $0x430] sm:$0xff]
  %v570 = vld [vmem:[%s2 + $0x438] sm:$0xff]
  %v571 = vld [vmem:[%s2 + $0x440] sm:$0xff]
  %v572 = vld [vmem:[%s2 + $0x448] sm:$0xff]
  %v573 = vld [vmem:[%s2 + $0x450] sm:$0xff]
  %v574 = vld [vmem:[%s2 + $0x458] sm:$0xff]
  %v575 = vld [vmem:[%s2 + $0x460] sm:$0xff]
  %v576 = vld [vmem:[%s2 + $0x468] sm:$0xff]
  %v577 = vld [vmem:[%s2 + $0x470] sm:$0xff]
  %v578 = vld [vmem:[%s2 + $0x478] sm:$0xff]
  %v579 = vld [vmem:[%s2 + $0x480] sm:$0xff]
  %v580 = vld [vmem:[%s2 + $0x488] sm:$0xff]
  %v581 = vld [vmem:[%s2 + $0x490] sm:$0xff]
  %v582 = vld [vmem:[%s2 + $0x498] sm:$0xff]
  %v583 = vld [vmem:[%s2 + $0x4a0] sm:$0xff]
  %v584 = vld [vmem:[%s2 + $0x4a8] sm:$0xff]
  %v585 = vld [vmem:[%s2 + $0x4b0] sm:$0xff]
  %v586 = vld [vmem:[%s2 + $0x4b8] sm:$0xff]
  %v587 = vld [vmem:[%s2 + $0x4c0] sm:$0xff]
  %v588 = vld [vmem:[%s2 + $0x4c8] sm:$0xff]
  %v589 = vld [vmem:[%s2 + $0x4d0] sm:$0xff]
  %v590 = vld [vmem:[%s2 + $0x4d8] sm:$0xff]
  %v591 = vld [vmem:[%s2 + $0x4e0] sm:$0xff]
  %v592 = vld [vmem:[%s2 + $0x4e8] sm:$0xff]
  %v593 = vld [vmem:[%s2 + $0x4f0] sm:$0xff]
  %v594 = vld [vmem:[%s2 + $0x4f8] sm:$0xff]
  %v595 = vld [vmem:[%s2 + $0x500] sm:$0xff]
  %v596 = vld [vmem:[%s2 + $0x508] sm:$0xff]
  %v597 = vld [vmem:[%s2 + $0x510] sm:$0xff]
  %v598 = vld [vmem:[%s2 + $0x518] sm:$0xff]
  %v599 = vld [vmem:[%s2 + $0x520] sm:$0xff]
  %v600 = vld [vmem:[%s2 + $0x528] sm:$0xff]
  %v601 = vld [vmem:[%s2 + $0x530] sm:$0xff]
  %v602 = vld [vmem:[%s2 + $0x538] sm:$0xff]
  %v603 = vld [vmem:[%s2 + $0x540] sm:$0xff]
  %v604 = vld [vmem:[%s2 + $0x548] sm:$0xff]
  %v605 = vld [vmem:[%s2 + $0x550] sm:$0xff]
  %v606 = vld [vmem:[%s2 + $0x558] sm:$0xff]
  %v607 = vld [vmem:[%s2 + $0x560] sm:$0xff]
  %v608 = vld [vmem:[%s2 + $0x568] sm:$0xff]
  %v609 = vld [vmem:[%s2 + $0x570] sm:$0xff]
  %v610 = vld [vmem:[%s2 + $0x578] sm:$0xff]
  %v611 = vld [vmem:[%s2 + $0x580] sm:$0xff]
  %v612 = vld [vmem:[%s2 + $0x588] sm:$0xff]
  %v613 = vld [vmem:[%s2 + $0x590] sm:$0xff]
  %v614 = vld [vmem:[%s2 + $0x598] sm:$0xff]
  %v615 = vld [vmem:[%s2 + $0x5a0] sm:$0xff]
  %v616 = vld [vmem:[%s2 + $0x5a8] sm:$0xff]
  %v617 = vld [vmem:[%s2 + $0x5b0] sm:$0xff]
  %v618 = vld [vmem:[%s2 + $0x5b8] sm:$0xff]
  %v619 = vld [vmem:[%s2 + $0x5c0] sm:$0xff]
  %v620 = vld [vmem:[%s2 + $0x5c8] sm:$0xff]
  %v621 = vld [vmem:[%s2 + $0x5d0] sm:$0xff]
  %v622 = vld [vmem:[%s2 + $0x5d8] sm:$0xff]
  %v623 = vld [vmem:[%s2 + $0x5e0] sm:$0xff]
  %v624 = vld [vmem:[%s2 + $0x5e8] sm:$0xff]
  %v625 = vld [vmem:[%s2 + $0x5f0] sm:$0xff]
  %v626 = vld [vmem:[%s2 + $0x5f8] sm:$0xff]
  %v627 = vld [vmem:[%s2 + $0x600] sm:$0xff]
  %v628 = vld [vmem:[%s2 + $0x608] sm:$0xff]
  %v629 = vld [vmem:[%s2 + $0x610] sm:$0xff]
  %v630 = vld [vmem:[%s2 + $0x618] sm:$0xff]
  %v631 = vld [vmem:[%s2 + $0x620] sm:$0xff]
  %v632 = vld [vmem:[%s2 + $0x628] sm:$0xff]
  %v633 = vld [vmem:[%s2 + $0x630] sm:$0xff]
  %v634 = vld [vmem:[%s2 + $0x638] sm:$0xff]
  %v635 = vld [vmem:[%s2 + $0x640] sm:$0xff]
  %v636 = vld [vmem:[%s2 + $0x648] sm:$0xff]
  %v637 = vld [vmem:[%s2 + $0x650] sm:$0xff]
  %v638 = vld [vmem:[%s2 + $0x658] sm:$0xff]
  %v639 = vld [vmem:[%s2 + $0x660] sm:$0xff]
  %v640 = vld [vmem:[%s2 + $0x668] sm:$0xff]
  %v641 = vld [vmem:[%s2 + $0x670] sm:$0xff]
  %v642 = vld [vmem:[%s2 + $0x678] sm:$0xff]
  %v643 = vld [vmem:[%s2 + $0x680] sm:$0xff]
  %v644 = vld [vmem:[%s2 + $0x688] sm:$0xff]
  %v645 = vld [vmem:[%s2 + $0x690] sm:$0xff]
  %v646 = vld [vmem:[%s2 + $0x698] sm:$0xff]
  %v647 = vld [vmem:[%s2 + $0x6a0] sm:$0xff]
  %v648 = vld [vmem:[%s2 + $0x6a8] sm:$0xff]
  %v649 = vld [vmem:[%s2 + $0x6b0] sm:$0xff]
  %v650 = vld [vmem:[%s2 + $0x6b8] sm:$0xff]
  %v651 = vld [vmem:[%s2 + $0x6c0] sm:$0xff]
  %v652 = vld [vmem:[%s2 + $0x6c8] sm:$0xff]
  %v653 = vld [vmem:[%s2 + $0x6d0] sm:$0xff]
  %v654 = vld [vmem:[%s2 + $0x6d8] sm:$0xff]
  %v655 = vld [vmem:[%s2 + $0x6e0] sm:$0xff]
  %v656 = vld [vmem:[%s2 + $0x6e8] sm:$0xff]
  %v657 = vld [vmem:[%s2 + $0x6f0] sm:$0xff]
  %v658 = vld [vmem:[%s2 + $0x6f8] sm:$0xff]
  %v659 = vld [vmem:[%s2 + $0x700] sm:$0xff]
  %v660 = vld [vmem:[%s2 + $0x708] sm:$0xff]
  %v661 = vld [vmem:[%s2 + $0x710] sm:$0xff]
  %v662 = vld [vmem:[%s2 + $0x718] sm:$0xff]
  %v663 = vld [vmem:[%s2 + $0x720] sm:$0xff]
  %v664 = vld [vmem:[%s2 + $0x728] sm:$0xff]
  %v665 = vld [vmem:[%s2 + $0x730] sm:$0xff]
  %v666 = vld [vmem:[%s2 + $0x738] sm:$0xff]
  %v667 = vld [vmem:[%s2 + $0x740] sm:$0xff]
  %v668 = vld [vmem:[%s2 + $0x748] sm:$0xff]
  %v669 = vld [vmem:[%s2 + $0x750] sm:$0xff]
  %v670 = vld [vmem:[%s2 + $0x758] sm:$0xff]
  %v671 = vld [vmem:[%s2 + $0x760] sm:$0xff]
  %v672 = vld [vmem:[%s2 + $0x768] sm:$0xff]
  %v673 = vld [vmem:[%s2 + $0x770] sm:$0xff]
  %v674 = vld [vmem:[%s2 + $0x778] sm:$0xff]
  %v675 = vld [vmem:[%s2 + $0x780] sm:$0xff]
  %v676 = vld [vmem:[%s2 + $0x788] sm:$0xff]
  %v677 = vld [vmem:[%s2 + $0x790] sm:$0xff]
  %v678 = vld [vmem:[%s2 + $0x798] sm:$0xff]
  %v679 = vld [vmem:[%s2 + $0x7a0] sm:$0xff]
  %v680 = vld [vmem:[%s2 + $0x7a8] sm:$0xff]
  %v681 = vld [vmem:[%s2 + $0x7b0] sm:$0xff]
  %v682 = vld [vmem:[%s2 + $0x7b8] sm:$0xff]
  %v683 = vld [vmem:[%s2 + $0x7c0] sm:$0xff]
  %v684 = vld [vmem:[%s2 + $0x7c8] sm:$0xff]
  %v685 = vld [vmem:[%s2 + $0x7d0] sm:$0xff]
  %v686 = vld [vmem:[%s2 + $0x7d8] sm:$0xff]
  %v687 = vld [vmem:[%s2 + $0x7e0] sm:$0xff]
  %v688 = vld [vmem:[%s2 + $0x7e8] sm:$0xff]
  %v689 = vld [vmem:[%s2 + $0x7f0] sm:$0xff]
  %v690 = vld [vmem:[%s2 + $0x7f8] sm:$0xff]
  %v691 = vld [vmem:[%s3] sm:$0xff]
  %v693 = vlaneseq
  %v694 = vshrl.u32 %v693, 7
  %v695 = vsub.s32 0, %v694
  %v696 = vrot.slane %v691, %v695
  %v697 = vlaneseq
  %v698 = vshrl.u32 %v697, 7
  %v699 = vsub.s32 1, %v698
  %v700 = vrot.slane %v691, %v699
  %v701 = vlaneseq
  %v702 = vshrl.u32 %v701, 7
  %v703 = vsub.s32 2, %v702
  %v704 = vrot.slane %v691, %v703
  %v705 = vlaneseq
  %v706 = vshrl.u32 %v705, 7
  %v707 = vsub.s32 3, %v706
  %v708 = vrot.slane %v691, %v707
  %v709 = vlaneseq
  %v710 = vshrl.u32 %v709, 7
  %v711 = vsub.s32 4, %v710
  %v712 = vrot.slane %v691, %v711
  %v713 = vlaneseq
  %v714 = vshrl.u32 %v713, 7
  %v715 = vsub.s32 5, %v714
  %v716 = vrot.slane %v691, %v715
  %v717 = vlaneseq
  %v718 = vshrl.u32 %v717, 7
  %v719 = vsub.s32 6, %v718
  %v720 = vrot.slane %v691, %v719
  %v721 = vlaneseq
  %v722 = vshrl.u32 %v721, 7
  %v723 = vsub.s32 7, %v722
  %v724 = vrot.slane %v691, %v723
  %v989 = vunpack.c.l.b16 %v435
  %v990 = vunpack.c.h.b16 %v435
  %v991 = vunpack.c.l.b16 %v436
  %v992 = vunpack.c.h.b16 %v436
  %v993 = vunpack.c.l.b16 %v437
  %v994 = vunpack.c.h.b16 %v437
  %v995 = vunpack.c.l.b16 %v438
  %v996 = vunpack.c.h.b16 %v438
  %v997 = vunpack.c.l.b16 %v439
  %v998 = vunpack.c.h.b16 %v439
  %v999 = vunpack.c.l.b16 %v440
  %v1000 = vunpack.c.h.b16 %v440
  %v1001 = vunpack.c.l.b16 %v441
  %v1002 = vunpack.c.h.b16 %v441
  %v1003 = vunpack.c.l.b16 %v442
  %v1004 = vunpack.c.h.b16 %v442
  %v1005 = vunpack.c.l.b16 %v443
  %v1006 = vunpack.c.h.b16 %v443
  %v1007 = vunpack.c.l.b16 %v444
  %v1008 = vunpack.c.h.b16 %v444
  %v1009 = vunpack.c.l.b16 %v445
  %v1010 = vunpack.c.h.b16 %v445
  %v1011 = vunpack.c.l.b16 %v446
  %v1012 = vunpack.c.h.b16 %v446
  %v1013 = vunpack.c.l.b16 %v447
  %v1014 = vunpack.c.h.b16 %v447
  %v1015 = vunpack.c.l.b16 %v448
  %v1016 = vunpack.c.h.b16 %v448
  %v1017 = vunpack.c.l.b16 %v449
  %v1018 = vunpack.c.h.b16 %v449
  %v1019 = vunpack.c.l.b16 %v450
  %v1020 = vunpack.c.h.b16 %v450
  %v1021 = vunpack.c.l.b16 %v451
  %v1022 = vunpack.c.h.b16 %v451
  %v1023 = vunpack.c.l.b16 %v452
  %v1024 = vunpack.c.h.b16 %v452
  %v1025 = vunpack.c.l.b16 %v453
  %v1026 = vunpack.c.h.b16 %v453
  %v1027 = vunpack.c.l.b16 %v454
  %v1028 = vunpack.c.h.b16 %v454
  %v1029 = vunpack.c.l.b16 %v455
  %v1030 = vunpack.c.h.b16 %v455
  %v1031 = vunpack.c.l.b16 %v456
  %v1032 = vunpack.c.h.b16 %v456
  %v1033 = vunpack.c.l.b16 %v457
  %v1034 = vunpack.c.h.b16 %v457
  %v1035 = vunpack.c.l.b16 %v458
  %v1036 = vunpack.c.h.b16 %v458
  %v1037 = vunpack.c.l.b16 %v459
  %v1038 = vunpack.c.h.b16 %v459
  %v1039 = vunpack.c.l.b16 %v460
  %v1040 = vunpack.c.h.b16 %v460
  %v1041 = vunpack.c.l.b16 %v461
  %v1042 = vunpack.c.h.b16 %v461
  %v1043 = vunpack.c.l.b16 %v462
  %v1044 = vunpack.c.h.b16 %v462
  %v1045 = vunpack.c.l.b16 %v463
  %v1046 = vunpack.c.h.b16 %v463
  %v1047 = vunpack.c.l.b16 %v464
  %v1048 = vunpack.c.h.b16 %v464
  %v1049 = vunpack.c.l.b16 %v465
  %v1050 = vunpack.c.h.b16 %v465
  %v1051 = vunpack.c.l.b16 %v466
  %v1052 = vunpack.c.h.b16 %v466
  %v1053 = vunpack.c.l.b16 %v467
  %v1054 = vunpack.c.h.b16 %v467
  %v1055 = vunpack.c.l.b16 %v468
  %v1056 = vunpack.c.h.b16 %v468
  %v1057 = vunpack.c.l.b16 %v469
  %v1058 = vunpack.c.h.b16 %v469
  %v1059 = vunpack.c.l.b16 %v470
  %v1060 = vunpack.c.h.b16 %v470
  %v1061 = vunpack.c.l.b16 %v471
  %v1062 = vunpack.c.h.b16 %v471
  %v1063 = vunpack.c.l.b16 %v472
  %v1064 = vunpack.c.h.b16 %v472
  %v1065 = vunpack.c.l.b16 %v473
  %v1066 = vunpack.c.h.b16 %v473
  %v1067 = vunpack.c.l.b16 %v474
  %v1068 = vunpack.c.h.b16 %v474
  %v1069 = vunpack.c.l.b16 %v475
  %v1070 = vunpack.c.h.b16 %v475
  %v1071 = vunpack.c.l.b16 %v476
  %v1072 = vunpack.c.h.b16 %v476
  %v1073 = vunpack.c.l.b16 %v477
  %v1074 = vunpack.c.h.b16 %v477
  %v1075 = vunpack.c.l.b16 %v478
  %v1076 = vunpack.c.h.b16 %v478
  %v1077 = vunpack.c.l.b16 %v479
  %v1078 = vunpack.c.h.b16 %v479
  %v1079 = vunpack.c.l.b16 %v480
  %v1080 = vunpack.c.h.b16 %v480
  %v1081 = vunpack.c.l.b16 %v481
  %v1082 = vunpack.c.h.b16 %v481
  %v1083 = vunpack.c.l.b16 %v482
  %v1084 = vunpack.c.h.b16 %v482
  %v1085 = vunpack.c.l.b16 %v483
  %v1086 = vunpack.c.h.b16 %v483
  %v1087 = vunpack.c.l.b16 %v484
  %v1088 = vunpack.c.h.b16 %v484
  %v1089 = vunpack.c.l.b16 %v485
  %v1090 = vunpack.c.h.b16 %v485
  %v1091 = vunpack.c.l.b16 %v486
  %v1092 = vunpack.c.h.b16 %v486
  %v1093 = vunpack.c.l.b16 %v487
  %v1094 = vunpack.c.h.b16 %v487
  %v1095 = vunpack.c.l.b16 %v488
  %v1096 = vunpack.c.h.b16 %v488
  %v1097 = vunpack.c.l.b16 %v489
  %v1098 = vunpack.c.h.b16 %v489
  %v1099 = vunpack.c.l.b16 %v490
  %v1100 = vunpack.c.h.b16 %v490
  %v1101 = vunpack.c.l.b16 %v491
  %v1102 = vunpack.c.h.b16 %v491
  %v1103 = vunpack.c.l.b16 %v492
  %v1104 = vunpack.c.h.b16 %v492
  %v1105 = vunpack.c.l.b16 %v493
  %v1106 = vunpack.c.h.b16 %v493
  %v1107 = vunpack.c.l.b16 %v494
  %v1108 = vunpack.c.h.b16 %v494
  %v1109 = vunpack.c.l.b16 %v495
  %v1110 = vunpack.c.h.b16 %v495
  %v1111 = vunpack.c.l.b16 %v496
  %v1112 = vunpack.c.h.b16 %v496
  %v1113 = vunpack.c.l.b16 %v497
  %v1114 = vunpack.c.h.b16 %v497
  %v1115 = vunpack.c.l.b16 %v498
  %v1116 = vunpack.c.h.b16 %v498
  %v1117 = vunpack.c.l.b16 %v499
  %v1118 = vunpack.c.h.b16 %v499
  %v1119 = vunpack.c.l.b16 %v500
  %v1120 = vunpack.c.h.b16 %v500
  %v1121 = vunpack.c.l.b16 %v501
  %v1122 = vunpack.c.h.b16 %v501
  %v1123 = vunpack.c.l.b16 %v502
  %v1124 = vunpack.c.h.b16 %v502
  %v1125 = vunpack.c.l.b16 %v503
  %v1126 = vunpack.c.h.b16 %v503
  %v1127 = vunpack.c.l.b16 %v504
  %v1128 = vunpack.c.h.b16 %v504
  %v1129 = vunpack.c.l.b16 %v505
  %v1130 = vunpack.c.h.b16 %v505
  %v1131 = vunpack.c.l.b16 %v506
  %v1132 = vunpack.c.h.b16 %v506
  %v1133 = vunpack.c.l.b16 %v507
  %v1134 = vunpack.c.h.b16 %v507
  %v1135 = vunpack.c.l.b16 %v508
  %v1136 = vunpack.c.h.b16 %v508
  %v1137 = vunpack.c.l.b16 %v509
  %v1138 = vunpack.c.h.b16 %v509
  %v1139 = vunpack.c.l.b16 %v510
  %v1140 = vunpack.c.h.b16 %v510
  %v1141 = vunpack.c.l.b16 %v511
  %v1142 = vunpack.c.h.b16 %v511
  %v1143 = vunpack.c.l.b16 %v512
  %v1144 = vunpack.c.h.b16 %v512
  %v1145 = vunpack.c.l.b16 %v513
  %v1146 = vunpack.c.h.b16 %v513
  %v1147 = vunpack.c.l.b16 %v514
  %v1148 = vunpack.c.h.b16 %v514
  %v1149 = vunpack.c.l.b16 %v515
  %v1150 = vunpack.c.h.b16 %v515
  %v1151 = vunpack.c.l.b16 %v516
  %v1152 = vunpack.c.h.b16 %v516
  %v1153 = vunpack.c.l.b16 %v517
  %v1154 = vunpack.c.h.b16 %v517
  %v1155 = vunpack.c.l.b16 %v518
  %v1156 = vunpack.c.h.b16 %v518
  %v1157 = vunpack.c.l.b16 %v519
  %v1158 = vunpack.c.h.b16 %v519
  %v1159 = vunpack.c.l.b16 %v520
  %v1160 = vunpack.c.h.b16 %v520
  %v1161 = vunpack.c.l.b16 %v521
  %v1162 = vunpack.c.h.b16 %v521
  %v1163 = vunpack.c.l.b16 %v522
  %v1164 = vunpack.c.h.b16 %v522
  %v1165 = vunpack.c.l.b16 %v523
  %v1166 = vunpack.c.h.b16 %v523
  %v1167 = vunpack.c.l.b16 %v524
  %v1168 = vunpack.c.h.b16 %v524
  %v1169 = vunpack.c.l.b16 %v525
  %v1170 = vunpack.c.h.b16 %v525
  %v1171 = vunpack.c.l.b16 %v526
  %v1172 = vunpack.c.h.b16 %v526
  %v1173 = vunpack.c.l.b16 %v527
  %v1174 = vunpack.c.h.b16 %v527
  %v1175 = vunpack.c.l.b16 %v528
  %v1176 = vunpack.c.h.b16 %v528
  %v1177 = vunpack.c.l.b16 %v529
  %v1178 = vunpack.c.h.b16 %v529
  %v1179 = vunpack.c.l.b16 %v530
  %v1180 = vunpack.c.h.b16 %v530
  %v1181 = vunpack.c.l.b16 %v531
  %v1182 = vunpack.c.h.b16 %v531
  %v1183 = vunpack.c.l.b16 %v532
  %v1184 = vunpack.c.h.b16 %v532
  %v1185 = vunpack.c.l.b16 %v533
  %v1186 = vunpack.c.h.b16 %v533
  %v1187 = vunpack.c.l.b16 %v534
  %v1188 = vunpack.c.h.b16 %v534
  %v1189 = vunpack.c.l.b16 %v535
  %v1190 = vunpack.c.h.b16 %v535
  %v1191 = vunpack.c.l.b16 %v536
  %v1192 = vunpack.c.h.b16 %v536
  %v1193 = vunpack.c.l.b16 %v537
  %v1194 = vunpack.c.h.b16 %v537
  %v1195 = vunpack.c.l.b16 %v538
  %v1196 = vunpack.c.h.b16 %v538
  %v1197 = vunpack.c.l.b16 %v539
  %v1198 = vunpack.c.h.b16 %v539
  %v1199 = vunpack.c.l.b16 %v540
  %v1200 = vunpack.c.h.b16 %v540
  %v1201 = vunpack.c.l.b16 %v541
  %v1202 = vunpack.c.h.b16 %v541
  %v1203 = vunpack.c.l.b16 %v542
  %v1204 = vunpack.c.h.b16 %v542
  %v1205 = vunpack.c.l.b16 %v543
  %v1206 = vunpack.c.h.b16 %v543
  %v1207 = vunpack.c.l.b16 %v544
  %v1208 = vunpack.c.h.b16 %v544
  %v1209 = vunpack.c.l.b16 %v545
  %v1210 = vunpack.c.h.b16 %v545
  %v1211 = vunpack.c.l.b16 %v546
  %v1212 = vunpack.c.h.b16 %v546
  %v1213 = vunpack.c.l.b16 %v547
  %v1214 = vunpack.c.h.b16 %v547
  %v1215 = vunpack.c.l.b16 %v548
  %v1216 = vunpack.c.h.b16 %v548
  %v1217 = vunpack.c.l.b16 %v549
  %v1218 = vunpack.c.h.b16 %v549
  %v1219 = vunpack.c.l.b16 %v550
  %v1220 = vunpack.c.h.b16 %v550
  %v1221 = vunpack.c.l.b16 %v551
  %v1222 = vunpack.c.h.b16 %v551
  %v1223 = vunpack.c.l.b16 %v552
  %v1224 = vunpack.c.h.b16 %v552
  %v1225 = vunpack.c.l.b16 %v553
  %v1226 = vunpack.c.h.b16 %v553
  %v1227 = vunpack.c.l.b16 %v554
  %v1228 = vunpack.c.h.b16 %v554
  %v1229 = vunpack.c.l.b16 %v555
  %v1230 = vunpack.c.h.b16 %v555
  %v1231 = vunpack.c.l.b16 %v556
  %v1232 = vunpack.c.h.b16 %v556
  %v1233 = vunpack.c.l.b16 %v557
  %v1234 = vunpack.c.h.b16 %v557
  %v1235 = vunpack.c.l.b16 %v558
  %v1236 = vunpack.c.h.b16 %v558
  %v1237 = vunpack.c.l.b16 %v559
  %v1238 = vunpack.c.h.b16 %v559
  %v1239 = vunpack.c.l.b16 %v560
  %v1240 = vunpack.c.h.b16 %v560
  %v1241 = vunpack.c.l.b16 %v561
  %v1242 = vunpack.c.h.b16 %v561
  %v1243 = vunpack.c.l.b16 %v562
  %v1244 = vunpack.c.h.b16 %v562
  %v1245 = vunpack.c.l.b16 %v563
  %v1246 = vunpack.c.h.b16 %v563
  %v1247 = vunpack.c.l.b16 %v564
  %v1248 = vunpack.c.h.b16 %v564
  %v1249 = vunpack.c.l.b16 %v565
  %v1250 = vunpack.c.h.b16 %v565
  %v1251 = vunpack.c.l.b16 %v566
  %v1252 = vunpack.c.h.b16 %v566
  %v1253 = vunpack.c.l.b16 %v567
  %v1254 = vunpack.c.h.b16 %v567
  %v1255 = vunpack.c.l.b16 %v568
  %v1256 = vunpack.c.h.b16 %v568
  %v1257 = vunpack.c.l.b16 %v569
  %v1258 = vunpack.c.h.b16 %v569
  %v1259 = vunpack.c.l.b16 %v570
  %v1260 = vunpack.c.h.b16 %v570
  %v1261 = vunpack.c.l.b16 %v571
  %v1262 = vunpack.c.h.b16 %v571
  %v1263 = vunpack.c.l.b16 %v572
  %v1264 = vunpack.c.h.b16 %v572
  %v1265 = vunpack.c.l.b16 %v573
  %v1266 = vunpack.c.h.b16 %v573
  %v1267 = vunpack.c.l.b16 %v574
  %v1268 = vunpack.c.h.b16 %v574
  %v1269 = vunpack.c.l.b16 %v575
  %v1270 = vunpack.c.h.b16 %v575
  %v1271 = vunpack.c.l.b16 %v576
  %v1272 = vunpack.c.h.b16 %v576
  %v1273 = vunpack.c.l.b16 %v577
  %v1274 = vunpack.c.h.b16 %v577
  %v1275 = vunpack.c.l.b16 %v578
  %v1276 = vunpack.c.h.b16 %v578
  %v1277 = vunpack.c.l.b16 %v579
  %v1278 = vunpack.c.h.b16 %v579
  %v1279 = vunpack.c.l.b16 %v580
  %v1280 = vunpack.c.h.b16 %v580
  %v1281 = vunpack.c.l.b16 %v581
  %v1282 = vunpack.c.h.b16 %v581
  %v1283 = vunpack.c.l.b16 %v582
  %v1284 = vunpack.c.h.b16 %v582
  %v1285 = vunpack.c.l.b16 %v583
  %v1286 = vunpack.c.h.b16 %v583
  %v1287 = vunpack.c.l.b16 %v584
  %v1288 = vunpack.c.h.b16 %v584
  %v1289 = vunpack.c.l.b16 %v585
  %v1290 = vunpack.c.h.b16 %v585
  %v1291 = vunpack.c.l.b16 %v586
  %v1292 = vunpack.c.h.b16 %v586
  %v1293 = vunpack.c.l.b16 %v587
  %v1294 = vunpack.c.h.b16 %v587
  %v1295 = vunpack.c.l.b16 %v588
  %v1296 = vunpack.c.h.b16 %v588
  %v1297 = vunpack.c.l.b16 %v589
  %v1298 = vunpack.c.h.b16 %v589
  %v1299 = vunpack.c.l.b16 %v590
  %v1300 = vunpack.c.h.b16 %v590
  %v1301 = vunpack.c.l.b16 %v591
  %v1302 = vunpack.c.h.b16 %v591
  %v1303 = vunpack.c.l.b16 %v592
  %v1304 = vunpack.c.h.b16 %v592
  %v1305 = vunpack.c.l.b16 %v593
  %v1306 = vunpack.c.h.b16 %v593
  %v1307 = vunpack.c.l.b16 %v594
  %v1308 = vunpack.c.h.b16 %v594
  %v1309 = vunpack.c.l.b16 %v595
  %v1310 = vunpack.c.h.b16 %v595
  %v1311 = vunpack.c.l.b16 %v596
  %v1312 = vunpack.c.h.b16 %v596
  %v1313 = vunpack.c.l.b16 %v597
  %v1314 = vunpack.c.h.b16 %v597
  %v1315 = vunpack.c.l.b16 %v598
  %v1316 = vunpack.c.h.b16 %v598
  %v1317 = vunpack.c.l.b16 %v599
  %v1318 = vunpack.c.h.b16 %v599
  %v1319 = vunpack.c.l.b16 %v600
  %v1320 = vunpack.c.h.b16 %v600
  %v1321 = vunpack.c.l.b16 %v601
  %v1322 = vunpack.c.h.b16 %v601
  %v1323 = vunpack.c.l.b16 %v602
  %v1324 = vunpack.c.h.b16 %v602
  %v1325 = vunpack.c.l.b16 %v603
  %v1326 = vunpack.c.h.b16 %v603
  %v1327 = vunpack.c.l.b16 %v604
  %v1328 = vunpack.c.h.b16 %v604
  %v1329 = vunpack.c.l.b16 %v605
  %v1330 = vunpack.c.h.b16 %v605
  %v1331 = vunpack.c.l.b16 %v606
  %v1332 = vunpack.c.h.b16 %v606
  %v1333 = vunpack.c.l.b16 %v607
  %v1334 = vunpack.c.h.b16 %v607
  %v1335 = vunpack.c.l.b16 %v608
  %v1336 = vunpack.c.h.b16 %v608
  %v1337 = vunpack.c.l.b16 %v609
  %v1338 = vunpack.c.h.b16 %v609
  %v1339 = vunpack.c.l.b16 %v610
  %v1340 = vunpack.c.h.b16 %v610
  %v1341 = vunpack.c.l.b16 %v611
  %v1342 = vunpack.c.h.b16 %v611
  %v1343 = vunpack.c.l.b16 %v612
  %v1344 = vunpack.c.h.b16 %v612
  %v1345 = vunpack.c.l.b16 %v613
  %v1346 = vunpack.c.h.b16 %v613
  %v1347 = vunpack.c.l.b16 %v614
  %v1348 = vunpack.c.h.b16 %v614
  %v1349 = vunpack.c.l.b16 %v615
  %v1350 = vunpack.c.h.b16 %v615
  %v1351 = vunpack.c.l.b16 %v616
  %v1352 = vunpack.c.h.b16 %v616
  %v1353 = vunpack.c.l.b16 %v617
  %v1354 = vunpack.c.h.b16 %v617
  %v1355 = vunpack.c.l.b16 %v618
  %v1356 = vunpack.c.h.b16 %v618
  %v1357 = vunpack.c.l.b16 %v619
  %v1358 = vunpack.c.h.b16 %v619
  %v1359 = vunpack.c.l.b16 %v620
  %v1360 = vunpack.c.h.b16 %v620
  %v1361 = vunpack.c.l.b16 %v621
  %v1362 = vunpack.c.h.b16 %v621
  %v1363 = vunpack.c.l.b16 %v622
  %v1364 = vunpack.c.h.b16 %v622
  %v1365 = vunpack.c.l.b16 %v623
  %v1366 = vunpack.c.h.b16 %v623
  %v1367 = vunpack.c.l.b16 %v624
  %v1368 = vunpack.c.h.b16 %v624
  %v1369 = vunpack.c.l.b16 %v625
  %v1370 = vunpack.c.h.b16 %v625
  %v1371 = vunpack.c.l.b16 %v626
  %v1372 = vunpack.c.h.b16 %v626
  %v1373 = vunpack.c.l.b16 %v627
  %v1374 = vunpack.c.h.b16 %v627
  %v1375 = vunpack.c.l.b16 %v628
  %v1376 = vunpack.c.h.b16 %v628
  %v1377 = vunpack.c.l.b16 %v629
  %v1378 = vunpack.c.h.b16 %v629
  %v1379 = vunpack.c.l.b16 %v630
  %v1380 = vunpack.c.h.b16 %v630
  %v1381 = vunpack.c.l.b16 %v631
  %v1382 = vunpack.c.h.b16 %v631
  %v1383 = vunpack.c.l.b16 %v632
  %v1384 = vunpack.c.h.b16 %v632
  %v1385 = vunpack.c.l.b16 %v633
  %v1386 = vunpack.c.h.b16 %v633
  %v1387 = vunpack.c.l.b16 %v634
  %v1388 = vunpack.c.h.b16 %v634
  %v1389 = vunpack.c.l.b16 %v635
  %v1390 = vunpack.c.h.b16 %v635
  %v1391 = vunpack.c.l.b16 %v636
  %v1392 = vunpack.c.h.b16 %v636
  %v1393 = vunpack.c.l.b16 %v637
  %v1394 = vunpack.c.h.b16 %v637
  %v1395 = vunpack.c.l.b16 %v638
  %v1396 = vunpack.c.h.b16 %v638
  %v1397 = vunpack.c.l.b16 %v639
  %v1398 = vunpack.c.h.b16 %v639
  %v1399 = vunpack.c.l.b16 %v640
  %v1400 = vunpack.c.h.b16 %v640
  %v1401 = vunpack.c.l.b16 %v641
  %v1402 = vunpack.c.h.b16 %v641
  %v1403 = vunpack.c.l.b16 %v642
  %v1404 = vunpack.c.h.b16 %v642
  %v1405 = vunpack.c.l.b16 %v643
  %v1406 = vunpack.c.h.b16 %v643
  %v1407 = vunpack.c.l.b16 %v644
  %v1408 = vunpack.c.h.b16 %v644
  %v1409 = vunpack.c.l.b16 %v645
  %v1410 = vunpack.c.h.b16 %v645
  %v1411 = vunpack.c.l.b16 %v646
  %v1412 = vunpack.c.h.b16 %v646
  %v1413 = vunpack.c.l.b16 %v647
  %v1414 = vunpack.c.h.b16 %v647
  %v1415 = vunpack.c.l.b16 %v648
  %v1416 = vunpack.c.h.b16 %v648
  %v1417 = vunpack.c.l.b16 %v649
  %v1418 = vunpack.c.h.b16 %v649
  %v1419 = vunpack.c.l.b16 %v650
  %v1420 = vunpack.c.h.b16 %v650
  %v1421 = vunpack.c.l.b16 %v651
  %v1422 = vunpack.c.h.b16 %v651
  %v1423 = vunpack.c.l.b16 %v652
  %v1424 = vunpack.c.h.b16 %v652
  %v1425 = vunpack.c.l.b16 %v653
  %v1426 = vunpack.c.h.b16 %v653
  %v1427 = vunpack.c.l.b16 %v654
  %v1428 = vunpack.c.h.b16 %v654
  %v1429 = vunpack.c.l.b16 %v655
  %v1430 = vunpack.c.h.b16 %v655
  %v1431 = vunpack.c.l.b16 %v656
  %v1432 = vunpack.c.h.b16 %v656
  %v1433 = vunpack.c.l.b16 %v657
  %v1434 = vunpack.c.h.b16 %v657
  %v1435 = vunpack.c.l.b16 %v658
  %v1436 = vunpack.c.h.b16 %v658
  %v1437 = vunpack.c.l.b16 %v659
  %v1438 = vunpack.c.h.b16 %v659
  %v1439 = vunpack.c.l.b16 %v660
  %v1440 = vunpack.c.h.b16 %v660
  %v1441 = vunpack.c.l.b16 %v661
  %v1442 = vunpack.c.h.b16 %v661
  %v1443 = vunpack.c.l.b16 %v662
  %v1444 = vunpack.c.h.b16 %v662
  %v1445 = vunpack.c.l.b16 %v663
  %v1446 = vunpack.c.h.b16 %v663
  %v1447 = vunpack.c.l.b16 %v664
  %v1448 = vunpack.c.h.b16 %v664
  %v1449 = vunpack.c.l.b16 %v665
  %v1450 = vunpack.c.h.b16 %v665
  %v1451 = vunpack.c.l.b16 %v666
  %v1452 = vunpack.c.h.b16 %v666
  %v1453 = vunpack.c.l.b16 %v667
  %v1454 = vunpack.c.h.b16 %v667
  %v1455 = vunpack.c.l.b16 %v668
  %v1456 = vunpack.c.h.b16 %v668
  %v1457 = vunpack.c.l.b16 %v669
  %v1458 = vunpack.c.h.b16 %v669
  %v1459 = vunpack.c.l.b16 %v670
  %v1460 = vunpack.c.h.b16 %v670
  %v1461 = vunpack.c.l.b16 %v671
  %v1462 = vunpack.c.h.b16 %v671
  %v1463 = vunpack.c.l.b16 %v672
  %v1464 = vunpack.c.h.b16 %v672
  %v1465 = vunpack.c.l.b16 %v673
  %v1466 = vunpack.c.h.b16 %v673
  %v1467 = vunpack.c.l.b16 %v674
  %v1468 = vunpack.c.h.b16 %v674
  %v1469 = vunpack.c.l.b16 %v675
  %v1470 = vunpack.c.h.b16 %v675
  %v1471 = vunpack.c.l.b16 %v676
  %v1472 = vunpack.c.h.b16 %v676
  %v1473 = vunpack.c.l.b16 %v677
  %v1474 = vunpack.c.h.b16 %v677
  %v1475 = vunpack.c.l.b16 %v678
  %v1476 = vunpack.c.h.b16 %v678
  %v1477 = vunpack.c.l.b16 %v679
  %v1478 = vunpack.c.h.b16 %v679
  %v1479 = vunpack.c.l.b16 %v680
  %v1480 = vunpack.c.h.b16 %v680
  %v1481 = vunpack.c.l.b16 %v681
  %v1482 = vunpack.c.h.b16 %v681
  %v1483 = vunpack.c.l.b16 %v682
  %v1484 = vunpack.c.h.b16 %v682
  %v1485 = vunpack.c.l.b16 %v683
  %v1486 = vunpack.c.h.b16 %v683
  %v1487 = vunpack.c.l.b16 %v684
  %v1488 = vunpack.c.h.b16 %v684
  %v1489 = vunpack.c.l.b16 %v685
  %v1490 = vunpack.c.h.b16 %v685
  %v1491 = vunpack.c.l.b16 %v686
  %v1492 = vunpack.c.h.b16 %v686
  %v1493 = vunpack.c.l.b16 %v687
  %v1494 = vunpack.c.h.b16 %v687
  %v1495 = vunpack.c.l.b16 %v688
  %v1496 = vunpack.c.h.b16 %v688
  %v1497 = vunpack.c.l.b16 %v689
  %v1498 = vunpack.c.h.b16 %v689
  %v1499 = vunpack.c.l.b16 %v690
  %v1500 = vunpack.c.h.b16 %v690
  %v1501 = vpack.c.b16 %v997, %v989
  %v1502 = vpack.c.b16 %v998, %v990
  %v1503 = vpack.c.b16 %v999, %v991
  %v1504 = vpack.c.b16 %v1000, %v992
  %v1505 = vpack.c.b16 %v1001, %v993
  %v1506 = vpack.c.b16 %v1002, %v994
  %v1507 = vpack.c.b16 %v1003, %v995
  %v1508 = vpack.c.b16 %v1004, %v996
  %v1509 = vpack.c.b16 %v1013, %v1005
  %v1510 = vpack.c.b16 %v1014, %v1006
  %v1511 = vpack.c.b16 %v1015, %v1007
  %v1512 = vpack.c.b16 %v1016, %v1008
  %v1513 = vpack.c.b16 %v1017, %v1009
  %v1514 = vpack.c.b16 %v1018, %v1010
  %v1515 = vpack.c.b16 %v1019, %v1011
  %v1516 = vpack.c.b16 %v1020, %v1012
  %v1517 = vpack.c.b16 %v1029, %v1021
  %v1518 = vpack.c.b16 %v1030, %v1022
  %v1519 = vpack.c.b16 %v1031, %v1023
  %v1520 = vpack.c.b16 %v1032, %v1024
  %v1521 = vpack.c.b16 %v1033, %v1025
  %v1522 = vpack.c.b16 %v1034, %v1026
  %v1523 = vpack.c.b16 %v1035, %v1027
  %v1524 = vpack.c.b16 %v1036, %v1028
  %v1525 = vpack.c.b16 %v1045, %v1037
  %v1526 = vpack.c.b16 %v1046, %v1038
  %v1527 = vpack.c.b16 %v1047, %v1039
  %v1528 = vpack.c.b16 %v1048, %v1040
  %v1529 = vpack.c.b16 %v1049, %v1041
  %v1530 = vpack.c.b16 %v1050, %v1042
  %v1531 = vpack.c.b16 %v1051, %v1043
  %v1532 = vpack.c.b16 %v1052, %v1044
  %v1533 = vpack.c.b16 %v1061, %v1053
  %v1534 = vpack.c.b16 %v1062, %v1054
  %v1535 = vpack.c.b16 %v1063, %v1055
  %v1536 = vpack.c.b16 %v1064, %v1056
  %v1537 = vpack.c.b16 %v1065, %v1057
  %v1538 = vpack.c.b16 %v1066, %v1058
  %v1539 = vpack.c.b16 %v1067, %v1059
  %v1540 = vpack.c.b16 %v1068, %v1060
  %v1541 = vpack.c.b16 %v1077, %v1069
  %v1542 = vpack.c.b16 %v1078, %v1070
  %v1543 = vpack.c.b16 %v1079, %v1071
  %v1544 = vpack.c.b16 %v1080, %v1072
  %v1545 = vpack.c.b16 %v1081, %v1073
  %v1546 = vpack.c.b16 %v1082, %v1074
  %v1547 = vpack.c.b16 %v1083, %v1075
  %v1548 = vpack.c.b16 %v1084, %v1076
  %v1549 = vpack.c.b16 %v1093, %v1085
  %v1550 = vpack.c.b16 %v1094, %v1086
  %v1551 = vpack.c.b16 %v1095, %v1087
  %v1552 = vpack.c.b16 %v1096, %v1088
  %v1553 = vpack.c.b16 %v1097, %v1089
  %v1554 = vpack.c.b16 %v1098, %v1090
  %v1555 = vpack.c.b16 %v1099, %v1091
  %v1556 = vpack.c.b16 %v1100, %v1092
  %v1557 = vpack.c.b16 %v1109, %v1101
  %v1558 = vpack.c.b16 %v1110, %v1102
  %v1559 = vpack.c.b16 %v1111, %v1103
  %v1560 = vpack.c.b16 %v1112, %v1104
  %v1561 = vpack.c.b16 %v1113, %v1105
  %v1562 = vpack.c.b16 %v1114, %v1106
  %v1563 = vpack.c.b16 %v1115, %v1107
  %v1564 = vpack.c.b16 %v1116, %v1108
  %v1565 = vpack.c.b16 %v1125, %v1117
  %v1566 = vpack.c.b16 %v1126, %v1118
  %v1567 = vpack.c.b16 %v1127, %v1119
  %v1568 = vpack.c.b16 %v1128, %v1120
  %v1569 = vpack.c.b16 %v1129, %v1121
  %v1570 = vpack.c.b16 %v1130, %v1122
  %v1571 = vpack.c.b16 %v1131, %v1123
  %v1572 = vpack.c.b16 %v1132, %v1124
  %v1573 = vpack.c.b16 %v1141, %v1133
  %v1574 = vpack.c.b16 %v1142, %v1134
  %v1575 = vpack.c.b16 %v1143, %v1135
  %v1576 = vpack.c.b16 %v1144, %v1136
  %v1577 = vpack.c.b16 %v1145, %v1137
  %v1578 = vpack.c.b16 %v1146, %v1138
  %v1579 = vpack.c.b16 %v1147, %v1139
  %v1580 = vpack.c.b16 %v1148, %v1140
  %v1581 = vpack.c.b16 %v1157, %v1149
  %v1582 = vpack.c.b16 %v1158, %v1150
  %v1583 = vpack.c.b16 %v1159, %v1151
  %v1584 = vpack.c.b16 %v1160, %v1152
  %v1585 = vpack.c.b16 %v1161, %v1153
  %v1586 = vpack.c.b16 %v1162, %v1154
  %v1587 = vpack.c.b16 %v1163, %v1155
  %v1588 = vpack.c.b16 %v1164, %v1156
  %v1589 = vpack.c.b16 %v1173, %v1165
  %v1590 = vpack.c.b16 %v1174, %v1166
  %v1591 = vpack.c.b16 %v1175, %v1167
  %v1592 = vpack.c.b16 %v1176, %v1168
  %v1593 = vpack.c.b16 %v1177, %v1169
  %v1594 = vpack.c.b16 %v1178, %v1170
  %v1595 = vpack.c.b16 %v1179, %v1171
  %v1596 = vpack.c.b16 %v1180, %v1172
  %v1597 = vpack.c.b16 %v1189, %v1181
  %v1598 = vpack.c.b16 %v1190, %v1182
  %v1599 = vpack.c.b16 %v1191, %v1183
  %v1600 = vpack.c.b16 %v1192, %v1184
  %v1601 = vpack.c.b16 %v1193, %v1185
  %v1602 = vpack.c.b16 %v1194, %v1186
  %v1603 = vpack.c.b16 %v1195, %v1187
  %v1604 = vpack.c.b16 %v1196, %v1188
  %v1605 = vpack.c.b16 %v1205, %v1197
  %v1606 = vpack.c.b16 %v1206, %v1198
  %v1607 = vpack.c.b16 %v1207, %v1199
  %v1608 = vpack.c.b16 %v1208, %v1200
  %v1609 = vpack.c.b16 %v1209, %v1201
  %v1610 = vpack.c.b16 %v1210, %v1202
  %v1611 = vpack.c.b16 %v1211, %v1203
  %v1612 = vpack.c.b16 %v1212, %v1204
  %v1613 = vpack.c.b16 %v1221, %v1213
  %v1614 = vpack.c.b16 %v1222, %v1214
  %v1615 = vpack.c.b16 %v1223, %v1215
  %v1616 = vpack.c.b16 %v1224, %v1216
  %v1617 = vpack.c.b16 %v1225, %v1217
  %v1618 = vpack.c.b16 %v1226, %v1218
  %v1619 = vpack.c.b16 %v1227, %v1219
  %v1620 = vpack.c.b16 %v1228, %v1220
  %v1621 = vpack.c.b16 %v1237, %v1229
  %v1622 = vpack.c.b16 %v1238, %v1230
  %v1623 = vpack.c.b16 %v1239, %v1231
  %v1624 = vpack.c.b16 %v1240, %v1232
  %v1625 = vpack.c.b16 %v1241, %v1233
  %v1626 = vpack.c.b16 %v1242, %v1234
  %v1627 = vpack.c.b16 %v1243, %v1235
  %v1628 = vpack.c.b16 %v1244, %v1236
  %v1629 = vpack.c.b16 %v1253, %v1245
  %v1630 = vpack.c.b16 %v1254, %v1246
  %v1631 = vpack.c.b16 %v1255, %v1247
  %v1632 = vpack.c.b16 %v1256, %v1248
  %v1633 = vpack.c.b16 %v1257, %v1249
  %v1634 = vpack.c.b16 %v1258, %v1250
  %v1635 = vpack.c.b16 %v1259, %v1251
  %v1636 = vpack.c.b16 %v1260, %v1252
  %v1637 = vpack.c.b16 %v1269, %v1261
  %v1638 = vpack.c.b16 %v1270, %v1262
  %v1639 = vpack.c.b16 %v1271, %v1263
  %v1640 = vpack.c.b16 %v1272, %v1264
  %v1641 = vpack.c.b16 %v1273, %v1265
  %v1642 = vpack.c.b16 %v1274, %v1266
  %v1643 = vpack.c.b16 %v1275, %v1267
  %v1644 = vpack.c.b16 %v1276, %v1268
  %v1645 = vpack.c.b16 %v1285, %v1277
  %v1646 = vpack.c.b16 %v1286, %v1278
  %v1647 = vpack.c.b16 %v1287, %v1279
  %v1648 = vpack.c.b16 %v1288, %v1280
  %v1649 = vpack.c.b16 %v1289, %v1281
  %v1650 = vpack.c.b16 %v1290, %v1282
  %v1651 = vpack.c.b16 %v1291, %v1283
  %v1652 = vpack.c.b16 %v1292, %v1284
  %v1653 = vpack.c.b16 %v1301, %v1293
  %v1654 = vpack.c.b16 %v1302, %v1294
  %v1655 = vpack.c.b16 %v1303, %v1295
  %v1656 = vpack.c.b16 %v1304, %v1296
  %v1657 = vpack.c.b16 %v1305, %v1297
  %v1658 = vpack.c.b16 %v1306, %v1298
  %v1659 = vpack.c.b16 %v1307, %v1299
  %v1660 = vpack.c.b16 %v1308, %v1300
  %v1661 = vpack.c.b16 %v1317, %v1309
  %v1662 = vpack.c.b16 %v1318, %v1310
  %v1663 = vpack.c.b16 %v1319, %v1311
  %v1664 = vpack.c.b16 %v1320, %v1312
  %v1665 = vpack.c.b16 %v1321, %v1313
  %v1666 = vpack.c.b16 %v1322, %v1314
  %v1667 = vpack.c.b16 %v1323, %v1315
  %v1668 = vpack.c.b16 %v1324, %v1316
  %v1669 = vpack.c.b16 %v1333, %v1325
  %v1670 = vpack.c.b16 %v1334, %v1326
  %v1671 = vpack.c.b16 %v1335, %v1327
  %v1672 = vpack.c.b16 %v1336, %v1328
  %v1673 = vpack.c.b16 %v1337, %v1329
  %v1674 = vpack.c.b16 %v1338, %v1330
  %v1675 = vpack.c.b16 %v1339, %v1331
  %v1676 = vpack.c.b16 %v1340, %v1332
  %v1677 = vpack.c.b16 %v1349, %v1341
  %v1678 = vpack.c.b16 %v1350, %v1342
  %v1679 = vpack.c.b16 %v1351, %v1343
  %v1680 = vpack.c.b16 %v1352, %v1344
  %v1681 = vpack.c.b16 %v1353, %v1345
  %v1682 = vpack.c.b16 %v1354, %v1346
  %v1683 = vpack.c.b16 %v1355, %v1347
  %v1684 = vpack.c.b16 %v1356, %v1348
  %v1685 = vpack.c.b16 %v1365, %v1357
  %v1686 = vpack.c.b16 %v1366, %v1358
  %v1687 = vpack.c.b16 %v1367, %v1359
  %v1688 = vpack.c.b16 %v1368, %v1360
  %v1689 = vpack.c.b16 %v1369, %v1361
  %v1690 = vpack.c.b16 %v1370, %v1362
  %v1691 = vpack.c.b16 %v1371, %v1363
  %v1692 = vpack.c.b16 %v1372, %v1364
  %v1693 = vpack.c.b16 %v1381, %v1373
  %v1694 = vpack.c.b16 %v1382, %v1374
  %v1695 = vpack.c.b16 %v1383, %v1375
  %v1696 = vpack.c.b16 %v1384, %v1376
  %v1697 = vpack.c.b16 %v1385, %v1377
  %v1698 = vpack.c.b16 %v1386, %v1378
  %v1699 = vpack.c.b16 %v1387, %v1379
  %v1700 = vpack.c.b16 %v1388, %v1380
  %v1701 = vpack.c.b16 %v1397, %v1389
  %v1702 = vpack.c.b16 %v1398, %v1390
  %v1703 = vpack.c.b16 %v1399, %v1391
  %v1704 = vpack.c.b16 %v1400, %v1392
  %v1705 = vpack.c.b16 %v1401, %v1393
  %v1706 = vpack.c.b16 %v1402, %v1394
  %v1707 = vpack.c.b16 %v1403, %v1395
  %v1708 = vpack.c.b16 %v1404, %v1396
  %v1709 = vpack.c.b16 %v1413, %v1405
  %v1710 = vpack.c.b16 %v1414, %v1406
  %v1711 = vpack.c.b16 %v1415, %v1407
  %v1712 = vpack.c.b16 %v1416, %v1408
  %v1713 = vpack.c.b16 %v1417, %v1409
  %v1714 = vpack.c.b16 %v1418, %v1410
  %v1715 = vpack.c.b16 %v1419, %v1411
  %v1716 = vpack.c.b16 %v1420, %v1412
  %v1717 = vpack.c.b16 %v1429, %v1421
  %v1718 = vpack.c.b16 %v1430, %v1422
  %v1719 = vpack.c.b16 %v1431, %v1423
  %v1720 = vpack.c.b16 %v1432, %v1424
  %v1721 = vpack.c.b16 %v1433, %v1425
  %v1722 = vpack.c.b16 %v1434, %v1426
  %v1723 = vpack.c.b16 %v1435, %v1427
  %v1724 = vpack.c.b16 %v1436, %v1428
  %v1725 = vpack.c.b16 %v1445, %v1437
  %v1726 = vpack.c.b16 %v1446, %v1438
  %v1727 = vpack.c.b16 %v1447, %v1439
  %v1728 = vpack.c.b16 %v1448, %v1440
  %v1729 = vpack.c.b16 %v1449, %v1441
  %v1730 = vpack.c.b16 %v1450, %v1442
  %v1731 = vpack.c.b16 %v1451, %v1443
  %v1732 = vpack.c.b16 %v1452, %v1444
  %v1733 = vpack.c.b16 %v1461, %v1453
  %v1734 = vpack.c.b16 %v1462, %v1454
  %v1735 = vpack.c.b16 %v1463, %v1455
  %v1736 = vpack.c.b16 %v1464, %v1456
  %v1737 = vpack.c.b16 %v1465, %v1457
  %v1738 = vpack.c.b16 %v1466, %v1458
  %v1739 = vpack.c.b16 %v1467, %v1459
  %v1740 = vpack.c.b16 %v1468, %v1460
  %v1741 = vpack.c.b16 %v1477, %v1469
  %v1742 = vpack.c.b16 %v1478, %v1470
  %v1743 = vpack.c.b16 %v1479, %v1471
  %v1744 = vpack.c.b16 %v1480, %v1472
  %v1745 = vpack.c.b16 %v1481, %v1473
  %v1746 = vpack.c.b16 %v1482, %v1474
  %v1747 = vpack.c.b16 %v1483, %v1475
  %v1748 = vpack.c.b16 %v1484, %v1476
  %v1749 = vpack.c.b16 %v1493, %v1485
  %v1750 = vpack.c.b16 %v1494, %v1486
  %v1751 = vpack.c.b16 %v1495, %v1487
  %v1752 = vpack.c.b16 %v1496, %v1488
  %v1753 = vpack.c.b16 %v1497, %v1489
  %v1754 = vpack.c.b16 %v1498, %v1490
  %v1755 = vpack.c.b16 %v1499, %v1491
  %v1756 = vpack.c.b16 %v1500, %v1492
  %2013 = vmatprep.subr.bf16.mxu0 %v1502
  %2014 = vmatpush1.bf16.msra.mxu0 %v1501
  %2015 = vmatprep.subr.bf16.mxu0 %v1510
  %2016 = vmatpush1.bf16.msra.mxu0 %v1509
  %2017 = vmatprep.subr.bf16.mxu0 %v1518
  %2018 = vmatpush1.bf16.msra.mxu0 %v1517
  %2019 = vmatprep.subr.bf16.mxu0 %v1526
  %2020 = vmatpush1.bf16.msra.mxu0 %v1525
  %2021 = vmatprep.subr.bf16.mxu0 %v1534
  %2022 = vmatpush1.bf16.msra.mxu0 %v1533
  %2023 = vmatprep.subr.bf16.mxu0 %v1542
  %2024 = vmatpush1.bf16.msra.mxu0 %v1541
  %2025 = vmatprep.subr.bf16.mxu0 %v1550
  %2026 = vmatpush1.bf16.msra.mxu0 %v1549
  %2027 = vmatprep.subr.bf16.mxu0 %v1558
  %2028 = vmatpush1.bf16.msra.mxu0 %v1557
  %2029 = vmatprep.subr.bf16.mxu0 %v1566
  %2030 = vmatpush1.bf16.msra.mxu0 %v1565
  %2031 = vmatprep.subr.bf16.mxu0 %v1574
  %2032 = vmatpush1.bf16.msra.mxu0 %v1573
  %2033 = vmatprep.subr.bf16.mxu0 %v1582
  %2034 = vmatpush1.bf16.msra.mxu0 %v1581
  %2035 = vmatprep.subr.bf16.mxu0 %v1590
  %2036 = vmatpush1.bf16.msra.mxu0 %v1589
  %2037 = vmatprep.subr.bf16.mxu0 %v1598
  %2038 = vmatpush1.bf16.msra.mxu0 %v1597
  %2039 = vmatprep.subr.bf16.mxu0 %v1606
  %2040 = vmatpush1.bf16.msra.mxu0 %v1605
  %2041 = vmatprep.subr.bf16.mxu0 %v1614
  %2042 = vmatpush1.bf16.msra.mxu0 %v1613
  %2043 = vmatprep.subr.bf16.mxu0 %v1622
  %2044 = vmatpush1.bf16.msra.mxu0 %v1621
  %2045 = vmatprep.mubr.bf16.mxu0 %v432
  %2046 = vmatmul.mubr.bf16.gmra.mrb[0].mxu0 %v431
  %v2047 = vpop.f32.mrb[0].mxu0
  %v2048 = vadd.f32 %v696, %v2047
  %v2049 = vpop.f32.mrb[0].mxu0
  %v2050 = vadd.f32 %v700, %v2049
  %v2051 = vpop.f32.mrb[0].mxu0
  %v2052 = vpop.f32.mrb[0].mxu0
  %2053 = vdwg.mxu0
  %2054 = vmatprep.subr.bf16.mxu0 %v1630
  %2055 = vmatpush1.bf16.msra.mxu0 %v1629
  %2056 = vmatprep.subr.bf16.mxu0 %v1638
  %2057 = vmatpush1.bf16.msra.mxu0 %v1637
  %2058 = vmatprep.subr.bf16.mxu0 %v1646
  %2059 = vmatpush1.bf16.msra.mxu0 %v1645
  %2060 = vmatprep.subr.bf16.mxu0 %v1654
  %2061 = vmatpush1.bf16.msra.mxu0 %v1653
  %2062 = vmatprep.subr.bf16.mxu0 %v1662
  %2063 = vmatpush1.bf16.msra.mxu0 %v1661
  %2064 = vmatprep.subr.bf16.mxu0 %v1670
  %2065 = vmatpush1.bf16.msra.mxu0 %v1669
  %2066 = vmatprep.subr.bf16.mxu0 %v1678
  %2067 = vmatpush1.bf16.msra.mxu0 %v1677
  %2068 = vmatprep.subr.bf16.mxu0 %v1686
  %2069 = vmatpush1.bf16.msra.mxu0 %v1685
  %2070 = vmatprep.subr.bf16.mxu0 %v1694
  %2071 = vmatpush1.bf16.msra.mxu0 %v1693
  %2072 = vmatprep.subr.bf16.mxu0 %v1702
  %2073 = vmatpush1.bf16.msra.mxu0 %v1701
  %2074 = vmatprep.subr.bf16.mxu0 %v1710
  %2075 = vmatpush1.bf16.msra.mxu0 %v1709
  %2076 = vmatprep.subr.bf16.mxu0 %v1718
  %2077 = vmatpush1.bf16.msra.mxu0 %v1717
  %2078 = vmatprep.subr.bf16.mxu0 %v1726
  %2079 = vmatpush1.bf16.msra.mxu0 %v1725
  %2080 = vmatprep.subr.bf16.mxu0 %v1734
  %2081 = vmatpush1.bf16.msra.mxu0 %v1733
  %2082 = vmatprep.subr.bf16.mxu0 %v1742
  %2083 = vmatpush1.bf16.msra.mxu0 %v1741
  %2084 = vmatprep.subr.bf16.mxu0 %v1750
  %2085 = vmatpush1.bf16.msra.mxu0 %v1749
  %2086 = vmatprep.mubr.bf16.mxu0 %v434
  %2087 = vmatmul.mubr.bf16.gmra.mrb[0].mxu0 %v433
  %v2088 = vpop.f32.mrb[0].mxu0
  %v2089 = vadd.f32 %v2048, %v2088
  %v2090 = vpop.f32.mrb[0].mxu0
  %v2091 = vadd.f32 %v2050, %v2090
  %v2092 = vpop.f32.mrb[0].mxu0
  %v2093 = vpop.f32.mrb[0].mxu0
  %2094 = vdwg.mxu0
  %2095 = vmatprep.subr.bf16.mxu0 %v1504
  %2096 = vmatpush1.bf16.msra.mxu0 %v1503
  %2097 = vmatprep.subr.bf16.mxu0 %v1512
  %2098 = vmatpush1.bf16.msra.mxu0 %v1511
  %2099 = vmatprep.subr.bf16.mxu0 %v1520
  %2100 = vmatpush1.bf16.msra.mxu0 %v1519
  %2101 = vmatprep.subr.bf16.mxu0 %v1528
  %2102 = vmatpush1.bf16.msra.mxu0 %v1527
  %2103 = vmatprep.subr.bf16.mxu0 %v1536
  %2104 = vmatpush1.bf16.msra.mxu0 %v1535
  %2105 = vmatprep.subr.bf16.mxu0 %v1544
  %2106 = vmatpush1.bf16.msra.mxu0 %v1543
  %2107 = vmatprep.subr.bf16.mxu0 %v1552
  %2108 = vmatpush1.bf16.msra.mxu0 %v1551
  %2109 = vmatprep.subr.bf16.mxu0 %v1560
  %2110 = vmatpush1.bf16.msra.mxu0 %v1559
  %2111 = vmatprep.subr.bf16.mxu0 %v1568
  %2112 = vmatpush1.bf16.msra.mxu0 %v1567
  %2113 = vmatprep.subr.bf16.mxu0 %v1576
  %2114 = vmatpush1.bf16.msra.mxu0 %v1575
  %2115 = vmatprep.subr.bf16.mxu0 %v1584
  %2116 = vmatpush1.bf16.msra.mxu0 %v1583
  %2117 = vmatprep.subr.bf16.mxu0 %v1592
  %2118 = vmatpush1.bf16.msra.mxu0 %v1591
  %2119 = vmatprep.subr.bf16.mxu0 %v1600
  %2120 = vmatpush1.bf16.msra.mxu0 %v1599
  %2121 = vmatprep.subr.bf16.mxu0 %v1608
  %2122 = vmatpush1.bf16.msra.mxu0 %v1607
  %2123 = vmatprep.subr.bf16.mxu0 %v1616
  %2124 = vmatpush1.bf16.msra.mxu0 %v1615
  %2125 = vmatprep.subr.bf16.mxu0 %v1624
  %2126 = vmatpush1.bf16.msra.mxu0 %v1623
  %2127 = vmatprep.mubr.bf16.mxu0 %v432
  %2128 = vmatmul.mubr.bf16.gmra.mrb[0].mxu0 %v431
  %v2129 = vpop.f32.mrb[0].mxu0
  %v2130 = vadd.f32 %v704, %v2129
  %v2131 = vpop.f32.mrb[0].mxu0
  %v2132 = vadd.f32 %v708, %v2131
  %v2133 = vpop.f32.mrb[0].mxu0
  %v2134 = vpop.f32.mrb[0].mxu0
  %2135 = vdwg.mxu0
  %2136 = vmatprep.subr.bf16.mxu0 %v1632
  %2137 = vmatpush1.bf16.msra.mxu0 %v1631
  %2138 = vmatprep.subr.bf16.mxu0 %v1640
  %2139 = vmatpush1.bf16.msra.mxu0 %v1639
  %2140 = vmatprep.subr.bf16.mxu0 %v1648
  %2141 = vmatpush1.bf16.msra.mxu0 %v1647
  %2142 = vmatprep.subr.bf16.mxu0 %v1656
  %2143 = vmatpush1.bf16.msra.mxu0 %v1655
  %2144 = vmatprep.subr.bf16.mxu0 %v1664
  %2145 = vmatpush1.bf16.msra.mxu0 %v1663
  %2146 = vmatprep.subr.bf16.mxu0 %v1672
  %2147 = vmatpush1.bf16.msra.mxu0 %v1671
  %2148 = vmatprep.subr.bf16.mxu0 %v1680
  %2149 = vmatpush1.bf16.msra.mxu0 %v1679
  %2150 = vmatprep.subr.bf16.mxu0 %v1688
  %2151 = vmatpush1.bf16.msra.mxu0 %v1687
  %2152 = vmatprep.subr.bf16.mxu0 %v1696
  %2153 = vmatpush1.bf16.msra.mxu0 %v1695
  %2154 = vmatprep.subr.bf16.mxu0 %v1704
  %2155 = vmatpush1.bf16.msra.mxu0 %v1703
  %2156 = vmatprep.subr.bf16.mxu0 %v1712
  %2157 = vmatpush1.bf16.msra.mxu0 %v1711
  %2158 = vmatprep.subr.bf16.mxu0 %v1720
  %2159 = vmatpush1.bf16.msra.mxu0 %v1719
  %2160 = vmatprep.subr.bf16.mxu0 %v1728
  %2161 = vmatpush1.bf16.msra.mxu0 %v1727
  %2162 = vmatprep.subr.bf16.mxu0 %v1736
  %2163 = vmatpush1.bf16.msra.mxu0 %v1735
  %2164 = vmatprep.subr.bf16.mxu0 %v1744
  %2165 = vmatpush1.bf16.msra.mxu0 %v1743
  %2166 = vmatprep.subr.bf16.mxu0 %v1752
  %2167 = vmatpush1.bf16.msra.mxu0 %v1751
  %2168 = vmatprep.mubr.bf16.mxu0 %v434
  %2169 = vmatmul.mubr.bf16.gmra.mrb[0].mxu0 %v433
  %v2170 = vpop.f32.mrb[0].mxu0
  %v2171 = vadd.f32 %v2130, %v2170
  %v2172 = vpop.f32.mrb[0].mxu0
  %v2173 = vadd.f32 %v2132, %v2172
  %v2174 = vpop.f32.mrb[0].mxu0
  %v2175 = vpop.f32.mrb[0].mxu0
  %2176 = vdwg.mxu0
  %2177 = vmatprep.subr.bf16.mxu0 %v1506
  %2178 = vmatpush1.bf16.msra.mxu0 %v1505
  %2179 = vmatprep.subr.bf16.mxu0 %v1514
  %2180 = vmatpush1.bf16.msra.mxu0 %v1513
  %2181 = vmatprep.subr.bf16.mxu0 %v1522
  %2182 = vmatpush1.bf16.msra.mxu0 %v1521
  %2183 = vmatprep.subr.bf16.mxu0 %v1530
  %2184 = vmatpush1.bf16.msra.mxu0 %v1529
  %2185 = vmatprep.subr.bf16.mxu0 %v1538
  %2186 = vmatpush1.bf16.msra.mxu0 %v1537
  %2187 = vmatprep.subr.bf16.mxu0 %v1546
  %2188 = vmatpush1.bf16.msra.mxu0 %v1545
  %2189 = vmatprep.subr.bf16.mxu0 %v1554
  %2190 = vmatpush1.bf16.msra.mxu0 %v1553
  %2191 = vmatprep.subr.bf16.mxu0 %v1562
  %2192 = vmatpush1.bf16.msra.mxu0 %v1561
  %2193 = vmatprep.subr.bf16.mxu0 %v1570
  %2194 = vmatpush1.bf16.msra.mxu0 %v1569
  %2195 = vmatprep.subr.bf16.mxu0 %v1578
  %2196 = vmatpush1.bf16.msra.mxu0 %v1577
  %2197 = vmatprep.subr.bf16.mxu0 %v1586
  %2198 = vmatpush1.bf16.msra.mxu0 %v1585
  %2199 = vmatprep.subr.bf16.mxu0 %v1594
  %2200 = vmatpush1.bf16.msra.mxu0 %v1593
  %2201 = vmatprep.subr.bf16.mxu0 %v1602
  %2202 = vmatpush1.bf16.msra.mxu0 %v1601
  %2203 = vmatprep.subr.bf16.mxu0 %v1610
  %2204 = vmatpush1.bf16.msra.mxu0 %v1609
  %2205 = vmatprep.subr.bf16.mxu0 %v1618
  %2206 = vmatpush1.bf16.msra.mxu0 %v1617
  %2207 = vmatprep.subr.bf16.mxu0 %v1626
  %2208 = vmatpush1.bf16.msra.mxu0 %v1625
  %2209 = vmatprep.mubr.bf16.mxu0 %v432
  %2210 = vmatmul.mubr.bf16.gmra.mrb[0].mxu0 %v431
  %v2211 = vpop.f32.mrb[0].mxu0
  %v2212 = vadd.f32 %v712, %v2211
  %v2213 = vpop.f32.mrb[0].mxu0
  %v2214 = vadd.f32 %v716, %v2213
  %v2215 = vpop.f32.mrb[0].mxu0
  %v2216 = vpop.f32.mrb[0].mxu0
  %2217 = vdwg.mxu0
  %2218 = vmatprep.subr.bf16.mxu0 %v1634
  %2219 = vmatpush1.bf16.msra.mxu0 %v1633
  %2220 = vmatprep.subr.bf16.mxu0 %v1642
  %2221 = vmatpush1.bf16.msra.mxu0 %v1641
  %2222 = vmatprep.subr.bf16.mxu0 %v1650
  %2223 = vmatpush1.bf16.msra.mxu0 %v1649
  %2224 = vmatprep.subr.bf16.mxu0 %v1658
  %2225 = vmatpush1.bf16.msra.mxu0 %v1657
  %2226 = vmatprep.subr.bf16.mxu0 %v1666
  %2227 = vmatpush1.bf16.msra.mxu0 %v1665
  %2228 = vmatprep.subr.bf16.mxu0 %v1674
  %2229 = vmatpush1.bf16.msra.mxu0 %v1673
  %2230 = vmatprep.subr.bf16.mxu0 %v1682
  %2231 = vmatpush1.bf16.msra.mxu0 %v1681
  %2232 = vmatprep.subr.bf16.mxu0 %v1690
  %2233 = vmatpush1.bf16.msra.mxu0 %v1689
  %2234 = vmatprep.subr.bf16.mxu0 %v1698
  %2235 = vmatpush1.bf16.msra.mxu0 %v1697
  %2236 = vmatprep.subr.bf16.mxu0 %v1706
  %2237 = vmatpush1.bf16.msra.mxu0 %v1705
  %2238 = vmatprep.subr.bf16.mxu0 %v1714
  %2239 = vmatpush1.bf16.msra.mxu0 %v1713
  %2240 = vmatprep.subr.bf16.mxu0 %v1722
  %2241 = vmatpush1.bf16.msra.mxu0 %v1721
  %2242 = vmatprep.subr.bf16.mxu0 %v1730
  %2243 = vmatpush1.bf16.msra.mxu0 %v1729
  %2244 = vmatprep.subr.bf16.mxu0 %v1738
  %2245 = vmatpush1.bf16.msra.mxu0 %v1737
  %2246 = vmatprep.subr.bf16.mxu0 %v1746
  %2247 = vmatpush1.bf16.msra.mxu0 %v1745
  %2248 = vmatprep.subr.bf16.mxu0 %v1754
  %2249 = vmatpush1.bf16.msra.mxu0 %v1753
  %2250 = vmatprep.mubr.bf16.mxu0 %v434
  %2251 = vmatmul.mubr.bf16.gmra.mrb[0].mxu0 %v433
  %v2252 = vpop.f32.mrb[0].mxu0
  %v2253 = vadd.f32 %v2212, %v2252
  %v2254 = vpop.f32.mrb[0].mxu0
  %v2255 = vadd.f32 %v2214, %v2254
  %v2256 = vpop.f32.mrb[0].mxu0
  %v2257 = vpop.f32.mrb[0].mxu0
  %2258 = vdwg.mxu0
  %2259 = vmatprep.subr.bf16.mxu0 %v1508
  %2260 = vmatpush1.bf16.msra.mxu0 %v1507
  %2261 = vmatprep.subr.bf16.mxu0 %v1516
  %2262 = vmatpush1.bf16.msra.mxu0 %v1515
  %2263 = vmatprep.subr.bf16.mxu0 %v1524
  %2264 = vmatpush1.bf16.msra.mxu0 %v1523
  %2265 = vmatprep.subr.bf16.mxu0 %v1532
  %2266 = vmatpush1.bf16.msra.mxu0 %v1531
  %2267 = vmatprep.subr.bf16.mxu0 %v1540
  %2268 = vmatpush1.bf16.msra.mxu0 %v1539
  %2269 = vmatprep.subr.bf16.mxu0 %v1548
  %2270 = vmatpush1.bf16.msra.mxu0 %v1547
  %2271 = vmatprep.subr.bf16.mxu0 %v1556
  %2272 = vmatpush1.bf16.msra.mxu0 %v1555
  %2273 = vmatprep.subr.bf16.mxu0 %v1564
  %2274 = vmatpush1.bf16.msra.mxu0 %v1563
  %2275 = vmatprep.subr.bf16.mxu0 %v1572
  %2276 = vmatpush1.bf16.msra.mxu0 %v1571
  %2277 = vmatprep.subr.bf16.mxu0 %v1580
  %2278 = vmatpush1.bf16.msra.mxu0 %v1579
  %2279 = vmatprep.subr.bf16.mxu0 %v1588
  %2280 = vmatpush1.bf16.msra.mxu0 %v1587
  %2281 = vmatprep.subr.bf16.mxu0 %v1596
  %2282 = vmatpush1.bf16.msra.mxu0 %v1595
  %2283 = vmatprep.subr.bf16.mxu0 %v1604
  %2284 = vmatpush1.bf16.msra.mxu0 %v1603
  %2285 = vmatprep.subr.bf16.mxu0 %v1612
  %2286 = vmatpush1.bf16.msra.mxu0 %v1611
  %2287 = vmatprep.subr.bf16.mxu0 %v1620
  %2288 = vmatpush1.bf16.msra.mxu0 %v1619
  %2289 = vmatprep.subr.bf16.mxu0 %v1628
  %2290 = vmatpush1.bf16.msra.mxu0 %v1627
  %2291 = vmatprep.mubr.bf16.mxu0 %v432
  %2292 = vmatmul.mubr.bf16.gmra.mrb[0].mxu0 %v431
  %v2293 = vpop.f32.mrb[0].mxu0
  %v2294 = vadd.f32 %v720, %v2293
  %v2295 = vpop.f32.mrb[0].mxu0
  %v2296 = vadd.f32 %v724, %v2295
  %v2297 = vpop.f32.mrb[0].mxu0
  %v2298 = vpop.f32.mrb[0].mxu0
  %2299 = vdwg.mxu0
  %2300 = vmatprep.subr.bf16.mxu0 %v1636
  %2301 = vmatpush1.bf16.msra.mxu0 %v1635
  %2302 = vmatprep.subr.bf16.mxu0 %v1644
  %2303 = vmatpush1.bf16.msra.mxu0 %v1643
  %2304 = vmatprep.subr.bf16.mxu0 %v1652
  %2305 = vmatpush1.bf16.msra.mxu0 %v1651
  %2306 = vmatprep.subr.bf16.mxu0 %v1660
  %2307 = vmatpush1.bf16.msra.mxu0 %v1659
  %2308 = vmatprep.subr.bf16.mxu0 %v1668
  %2309 = vmatpush1.bf16.msra.mxu0 %v1667
  %2310 = vmatprep.subr.bf16.mxu0 %v1676
  %2311 = vmatpush1.bf16.msra.mxu0 %v1675
  %2312 = vmatprep.subr.bf16.mxu0 %v1684
  %2313 = vmatpush1.bf16.msra.mxu0 %v1683
  %2314 = vmatprep.subr.bf16.mxu0 %v1692
  %2315 = vmatpush1.bf16.msra.mxu0 %v1691
  %2316 = vmatprep.subr.bf16.mxu0 %v1700
  %2317 = vmatpush1.bf16.msra.mxu0 %v1699
  %2318 = vmatprep.subr.bf16.mxu0 %v1708
  %2319 = vmatpush1.bf16.msra.mxu0 %v1707
  %2320 = vmatprep.subr.bf16.mxu0 %v1716
  %2321 = vmatpush1.bf16.msra.mxu0 %v1715
  %2322 = vmatprep.subr.bf16.mxu0 %v1724
  %2323 = vmatpush1.bf16.msra.mxu0 %v1723
  %2324 = vmatprep.subr.bf16.mxu0 %v1732
  %2325 = vmatpush1.bf16.msra.mxu0 %v1731
  %2326 = vmatprep.subr.bf16.mxu0 %v1740
  %2327 = vmatpush1.bf16.msra.mxu0 %v1739
  %2328 = vmatprep.subr.bf16.mxu0 %v1748
  %2329 = vmatpush1.bf16.msra.mxu0 %v1747
  %2330 = vmatprep.subr.bf16.mxu0 %v1756
  %2331 = vmatpush1.bf16.msra.mxu0 %v1755
  %2332 = vmatprep.mubr.bf16.mxu0 %v434
  %2333 = vmatmul.mubr.bf16.gmra.mrb[0].mxu0 %v433
  %v2334 = vpop.f32.mrb[0].mxu0
  %v2335 = vadd.f32 %v2294, %v2334
  %v2336 = vpop.f32.mrb[0].mxu0
  %v2337 = vadd.f32 %v2296, %v2336
  %v2338 = vpop.f32.mrb[0].mxu0
  %v2339 = vpop.f32.mrb[0].mxu0
  %2340 = vdwg.mxu0
  %vm2341 = vcmask 1041408
  %v2342 = vsel %vm2341, %v2089, 0.0
  %v2343 = vrot.slane %v2342, 4
  %v2344 = vadd.f32 %v2342, %v2343
  %v2345 = vrot.slane %v2344, 2
  %v2346 = vadd.f32 %v2344, %v2345
  %v2347 = vrot.slane %v2346, 1
  %v2348 = vadd.f32 %v2346, %v2347
  %v2349 = vsel %vm2341, %v2091, 0.0
  %v2350 = vrot.slane %v2349, 4
  %v2351 = vadd.f32 %v2349, %v2350
  %v2352 = vrot.slane %v2351, 2
  %v2353 = vadd.f32 %v2351, %v2352
  %v2354 = vrot.slane %v2353, 1
  %v2355 = vadd.f32 %v2353, %v2354
  %v2356 = vsel %vm2341, %v2171, 0.0
  %v2357 = vrot.slane %v2356, 4
  %v2358 = vadd.f32 %v2356, %v2357
  %v2359 = vrot.slane %v2358, 2
  %v2360 = vadd.f32 %v2358, %v2359
  %v2361 = vrot.slane %v2360, 1
  %v2362 = vadd.f32 %v2360, %v2361
  %v2363 = vsel %vm2341, %v2173, 0.0
  %v2364 = vrot.slane %v2363, 4
  %v2365 = vadd.f32 %v2363, %v2364
  %v2366 = vrot.slane %v2365, 2
  %v2367 = vadd.f32 %v2365, %v2366
  %v2368 = vrot.slane %v2367, 1
  %v2369 = vadd.f32 %v2367, %v2368
  %v2370 = vsel %vm2341, %v2253, 0.0
  %v2371 = vrot.slane %v2370, 4
  %v2372 = vadd.f32 %v2370, %v2371
  %v2373 = vrot.slane %v2372, 2
  %v2374 = vadd.f32 %v2372, %v2373
  %v2375 = vrot.slane %v2374, 1
  %v2376 = vadd.f32 %v2374, %v2375
  %v2377 = vsel %vm2341, %v2255, 0.0
  %v2378 = vrot.slane %v2377, 4
  %v2379 = vadd.f32 %v2377, %v2378
  %v2380 = vrot.slane %v2379, 2
  %v2381 = vadd.f32 %v2379, %v2380
  %v2382 = vrot.slane %v2381, 1
  %v2383 = vadd.f32 %v2381, %v2382
  %v2384 = vsel %vm2341, %v2335, 0.0
  %v2385 = vrot.slane %v2384, 4
  %v2386 = vadd.f32 %v2384, %v2385
  %v2387 = vrot.slane %v2386, 2
  %v2388 = vadd.f32 %v2386, %v2387
  %v2389 = vrot.slane %v2388, 1
  %v2390 = vadd.f32 %v2388, %v2389
  %v2391 = vsel %vm2341, %v2337, 0.0
  %v2392 = vrot.slane %v2391, 4
  %v2393 = vadd.f32 %v2391, %v2392
  %v2394 = vrot.slane %v2393, 2
  %v2395 = vadd.f32 %v2393, %v2394
  %v2396 = vrot.slane %v2395, 1
  %v2397 = vadd.f32 %v2395, %v2396
  %v2398 = vrcp.pop 2.0
  %v2399 = vmul.f32 %v2348, %v2398
  %v2400 = vmul.f32 %v2355, %v2398
  %v2401 = vmul.f32 %v2362, %v2398
  %v2402 = vmul.f32 %v2369, %v2398
  %v2403 = vmul.f32 %v2376, %v2398
  %v2404 = vmul.f32 %v2383, %v2398
  %v2405 = vmul.f32 %v2390, %v2398
  %v2406 = vmul.f32 %v2397, %v2398
  %v2407 = vsub.f32 %v2089, %v2399
  %v2408 = vsub.f32 %v2091, %v2400
  %v2409 = vsub.f32 %v2171, %v2401
  %v2410 = vsub.f32 %v2173, %v2402
  %v2411 = vsub.f32 %v2253, %v2403
  %v2412 = vsub.f32 %v2255, %v2404
  %v2413 = vsub.f32 %v2335, %v2405
  %v2414 = vsub.f32 %v2337, %v2406
  %v2415 = vmul.f32 %v2407, %v2407
  %v2416 = vmul.f32 %v2408, %v2408
  %v2417 = vmul.f32 %v2409, %v2409
  %v2418 = vmul.f32 %v2410, %v2410
  %v2419 = vmul.f32 %v2411, %v2411
  %v2420 = vmul.f32 %v2412, %v2412
  %v2421 = vmul.f32 %v2413, %v2413
  %v2422 = vmul.f32 %v2414, %v2414
  %v2423 = vsel %vm2341, %v2415, 0.0
  %v2424 = vrot.slane %v2423, 4
  %v2425 = vadd.f32 %v2423, %v2424
  %v2426 = vrot.slane %v2425, 2
  %v2427 = vadd.f32 %v2425, %v2426
  %v2428 = vrot.slane %v2427, 1
  %v2429 = vadd.f32 %v2427, %v2428
  %v2430 = vsel %vm2341, %v2416, 0.0
  %v2431 = vrot.slane %v2430, 4
  %v2432 = vadd.f32 %v2430, %v2431
  %v2433 = vrot.slane %v2432, 2
  %v2434 = vadd.f32 %v2432, %v2433
  %v2435 = vrot.slane %v2434, 1
  %v2436 = vadd.f32 %v2434, %v2435
  %v2437 = vsel %vm2341, %v2417, 0.0
  %v2438 = vrot.slane %v2437, 4
  %v2439 = vadd.f32 %v2437, %v2438
  %v2440 = vrot.slane %v2439, 2
  %v2441 = vadd.f32 %v2439, %v2440
  %v2442 = vrot.slane %v2441, 1
  %v2443 = vadd.f32 %v2441, %v2442
  %v2444 = vsel %vm2341, %v2418, 0.0
  %v2445 = vrot.slane %v2444, 4
  %v2446 = vadd.f32 %v2444, %v2445
  %v2447 = vrot.slane %v2446, 2
  %v2448 = vadd.f32 %v2446, %v2447
  %v2449 = vrot.slane %v2448, 1
  %v2450 = vadd.f32 %v2448, %v2449
  %v2451 = vsel %vm2341, %v2419, 0.0
  %v2452 = vrot.slane %v2451, 4
  %v2453 = vadd.f32 %v2451, %v2452
  %v2454 = vrot.slane %v2453, 2
  %v2455 = vadd.f32 %v2453, %v2454
  %v2456 = vrot.slane %v2455, 1
  %v2457 = vadd.f32 %v2455, %v2456
  %v2458 = vsel %vm2341, %v2420, 0.0
  %v2459 = vrot.slane %v2458, 4
  %v2460 = vadd.f32 %v2458, %v2459
  %v2461 = vrot.slane %v2460, 2
  %v2462 = vadd.f32 %v2460, %v2461
  %v2463 = vrot.slane %v2462, 1
  %v2464 = vadd.f32 %v2462, %v2463
  %v2465 = vsel %vm2341, %v2421, 0.0
  %v2466 = vrot.slane %v2465, 4
  %v2467 = vadd.f32 %v2465, %v2466
  %v2468 = vrot.slane %v2467, 2
  %v2469 = vadd.f32 %v2467, %v2468
  %v2470 = vrot.slane %v2469, 1
  %v2471 = vadd.f32 %v2469, %v2470
  %v2472 = vsel %vm2341, %v2422, 0.0
  %v2473 = vrot.slane %v2472, 4
  %v2474 = vadd.f32 %v2472, %v2473
  %v2475 = vrot.slane %v2474, 2
  %v2476 = vadd.f32 %v2474, %v2475
  %v2477 = vrot.slane %v2476, 1
  %v2478 = vadd.f32 %v2476, %v2477
  %v2479 = vmul.f32 %v2429, %v2398
  %v2480 = vmul.f32 %v2436, %v2398
  %v2481 = vmul.f32 %v2443, %v2398
  %v2482 = vmul.f32 %v2450, %v2398
  %v2483 = vmul.f32 %v2457, %v2398
  %v2484 = vmul.f32 %v2464, %v2398
  %v2485 = vmul.f32 %v2471, %v2398
  %v2486 = vmul.f32 %v2478, %v2398
  %v2487 = vadd.f32 %v2479, 1e-05
  %v2488 = vadd.f32 %v2480, 1e-05
  %v2489 = vadd.f32 %v2481, 1e-05
  %v2490 = vadd.f32 %v2482, 1e-05
  %v2491 = vadd.f32 %v2483, 1e-05
  %v2492 = vadd.f32 %v2484, 1e-05
  %v2493 = vadd.f32 %v2485, 1e-05
  %v2494 = vadd.f32 %v2486, 1e-05
  %v2495 = vrsqrt.pop %v2487
  %v2496 = vrsqrt.pop %v2488
  %v2497 = vrsqrt.pop %v2489
  %v2498 = vrsqrt.pop %v2490
  %v2499 = vrsqrt.pop %v2491
  %v2500 = vrsqrt.pop %v2492
  %v2501 = vrsqrt.pop %v2493
  %v2502 = vrsqrt.pop %v2494
  %v2503 = vmul.f32 %v2407, %v2495
  %v2504 = vmul.f32 %v2408, %v2496
  %v2505 = vmul.f32 %v2409, %v2497
  %v2506 = vmul.f32 %v2410, %v2498
  %v2507 = vmul.f32 %v2411, %v2499
  %v2508 = vmul.f32 %v2412, %v2500
  %v2509 = vmul.f32 %v2413, %v2501
  %v2510 = vmul.f32 %v2414, %v2502
  %v2511 = vld [vmem:[%s4] sm:$0xff]
  %v2513 = vlaneseq
  %v2514 = vshrl.u32 %v2513, 7
  %v2515 = vsub.s32 0, %v2514
  %v2516 = vrot.slane %v2511, %v2515
  %v2517 = vlaneseq
  %v2518 = vshrl.u32 %v2517, 7
  %v2519 = vsub.s32 1, %v2518
  %v2520 = vrot.slane %v2511, %v2519
  %v2521 = vlaneseq
  %v2522 = vshrl.u32 %v2521, 7
  %v2523 = vsub.s32 2, %v2522
  %v2524 = vrot.slane %v2511, %v2523
  %v2525 = vlaneseq
  %v2526 = vshrl.u32 %v2525, 7
  %v2527 = vsub.s32 3, %v2526
  %v2528 = vrot.slane %v2511, %v2527
  %v2529 = vlaneseq
  %v2530 = vshrl.u32 %v2529, 7
  %v2531 = vsub.s32 4, %v2530
  %v2532 = vrot.slane %v2511, %v2531
  %v2533 = vlaneseq
  %v2534 = vshrl.u32 %v2533, 7
  %v2535 = vsub.s32 5, %v2534
  %v2536 = vrot.slane %v2511, %v2535
  %v2537 = vlaneseq
  %v2538 = vshrl.u32 %v2537, 7
  %v2539 = vsub.s32 6, %v2538
  %v2540 = vrot.slane %v2511, %v2539
  %v2541 = vlaneseq
  %v2542 = vshrl.u32 %v2541, 7
  %v2543 = vsub.s32 7, %v2542
  %v2544 = vrot.slane %v2511, %v2543
  %v2553 = vmul.f32 %v2503, %v2516
  %v2554 = vmul.f32 %v2504, %v2520
  %v2555 = vmul.f32 %v2505, %v2524
  %v2556 = vmul.f32 %v2506, %v2528
  %v2557 = vmul.f32 %v2507, %v2532
  %v2558 = vmul.f32 %v2508, %v2536
  %v2559 = vmul.f32 %v2509, %v2540
  %v2560 = vmul.f32 %v2510, %v2544
  %v2561 = vld [vmem:[%s5] sm:$0xff]
  %v2563 = vlaneseq
  %v2564 = vshrl.u32 %v2563, 7
  %v2565 = vsub.s32 0, %v2564
  %v2566 = vrot.slane %v2561, %v2565
  %v2567 = vlaneseq
  %v2568 = vshrl.u32 %v2567, 7
  %v2569 = vsub.s32 1, %v2568
  %v2570 = vrot.slane %v2561, %v2569
  %v2571 = vlaneseq
  %v2572 = vshrl.u32 %v2571, 7
  %v2573 = vsub.s32 2, %v2572
  %v2574 = vrot.slane %v2561, %v2573
  %v2575 = vlaneseq
  %v2576 = vshrl.u32 %v2575, 7
  %v2577 = vsub.s32 3, %v2576
  %v2578 = vrot.slane %v2561, %v2577
  %v2579 = vlaneseq
  %v2580 = vshrl.u32 %v2579, 7
  %v2581 = vsub.s32 4, %v2580
  %v2582 = vrot.slane %v2561, %v2581
  %v2583 = vlaneseq
  %v2584 = vshrl.u32 %v2583, 7
  %v2585 = vsub.s32 5, %v2584
  %v2586 = vrot.slane %v2561, %v2585
  %v2587 = vlaneseq
  %v2588 = vshrl.u32 %v2587, 7
  %v2589 = vsub.s32 6, %v2588
  %v2590 = vrot.slane %v2561, %v2589
  %v2591 = vlaneseq
  %v2592 = vshrl.u32 %v2591, 7
  %v2593 = vsub.s32 7, %v2592
  %v2594 = vrot.slane %v2561, %v2593
  %v2603 = vadd.f32 %v2553, %v2566
  %v2604 = vadd.f32 %v2554, %v2570
  %v2605 = vadd.f32 %v2555, %v2574
  %v2606 = vadd.f32 %v2556, %v2578
  %v2607 = vadd.f32 %v2557, %v2582
  %v2608 = vadd.f32 %v2558, %v2586
  %v2609 = vadd.f32 %v2559, %v2590
  %v2610 = vadd.f32 %v2560, %v2594
  %v2611 = vmul.f32 %v2603, 0.2
  %v2612 = vmul.f32 %v2604, 0.2
  %v2613 = vmul.f32 %v2605, 0.2
  %v2614 = vmul.f32 %v2606, 0.2
  %v2615 = vmul.f32 %v2607, 0.2
  %v2616 = vmul.f32 %v2608, 0.2
  %v2617 = vmul.f32 %v2609, 0.2
  %v2618 = vmul.f32 %v2610, 0.2
  %v2619 = vmax.f32 %v2603, %v2611
  %v2620 = vmax.f32 %v2604, %v2612
  %v2621 = vmax.f32 %v2605, %v2613
  %v2622 = vmax.f32 %v2606, %v2614
  %v2623 = vmax.f32 %v2607, %v2615
  %v2624 = vmax.f32 %v2608, %v2616
  %v2625 = vmax.f32 %v2609, %v2617
  %v2626 = vmax.f32 %v2610, %v2618
  %v2627 = vld [vmem:[%s6] sm:$0x3]
  %vm2628 = vcmask 15360
  %v2630 = vsel %vm2628, %v2627, 0
  %v2633 = vsel %vm2341, %v2619, 0
  %v2636 = vsel %vm2341, %v2620, 0
  %v2639 = vsel %vm2341, %v2621, 0
  %v2642 = vsel %vm2341, %v2622, 0
  %v2645 = vsel %vm2341, %v2623, 0
  %v2648 = vsel %vm2341, %v2624, 0
  %v2651 = vsel %vm2341, %v2625, 0
  %v2654 = vsel %vm2341, %v2626, 0
  %2656 = vmatprep.subr.mxu0 %v2636
  %2657 = vmatpush1.msra.mxu0 %v2633
  %2658 = vmatprep.subr.mxu0 0.0
  %2659 = vmatpush1.msra.mxu0 0.0
  %2660 = vmatprep.subr.mxu0 0.0
  %2661 = vmatpush1.msra.mxu0 0.0
  %2662 = vmatprep.subr.mxu0 0.0
  %2663 = vmatpush1.msra.mxu0 0.0
  %2664 = vmatprep.subr.mxu0 0.0
  %2665 = vmatpush1.msra.mxu0 0.0
  %2666 = vmatprep.subr.mxu0 0.0
  %2667 = vmatpush1.msra.mxu0 0.0
  %2668 = vmatprep.subr.mxu0 0.0
  %2669 = vmatpush1.msra.mxu0 0.0
  %2670 = vmatprep.subr.mxu0 0.0
  %2671 = vmatpush1.msra.mxu0 0.0
  %2672 = vmatprep.subr.mxu0 0.0
  %2673 = vmatpush1.msra.mxu0 0.0
  %2674 = vmatprep.subr.mxu0 0.0
  %2675 = vmatpush1.msra.mxu0 0.0
  %2676 = vmatprep.subr.mxu0 0.0
  %2677 = vmatpush1.msra.mxu0 0.0
  %2678 = vmatprep.subr.mxu0 0.0
  %2679 = vmatpush1.msra.mxu0 0.0
  %2680 = vmatprep.subr.mxu0 0.0
  %2681 = vmatpush1.msra.mxu0 0.0
  %2682 = vmatprep.subr.mxu0 0.0
  %2683 = vmatpush1.msra.mxu0 0.0
  %2684 = vmatprep.subr.mxu0 0.0
  %2685 = vmatpush1.msra.mxu0 0.0
  %2686 = vmatprep.subr.mxu0 0.0
  %2687 = vmatpush1.msra.mxu0 0.0
  %2688 = vmatprep.subr.mxu0 0.0
  %2689 = vmatpush1.msra.mxu0 0.0
  %2690 = vmatprep.subr.mxu0 0.0
  %2691 = vmatpush1.msra.mxu0 0.0
  %2692 = vmatprep.subr.mxu0 0.0
  %2693 = vmatpush1.msra.mxu0 0.0
  %2694 = vmatprep.subr.mxu0 0.0
  %2695 = vmatpush1.msra.mxu0 0.0
  %2696 = vmatprep.subr.mxu0 0.0
  %2697 = vmatpush1.msra.mxu0 0.0
  %2698 = vmatprep.subr.mxu0 0.0
  %2699 = vmatpush1.msra.mxu0 0.0
  %2700 = vmatprep.subr.mxu0 0.0
  %2701 = vmatpush1.msra.mxu0 0.0
  %2702 = vmatprep.subr.mxu0 0.0
  %2703 = vmatpush1.msra.mxu0 0.0
  %2704 = vmatprep.subr.mxu0 0.0
  %2705 = vmatpush1.msra.mxu0 0.0
  %2706 = vmatprep.subr.mxu0 0.0
  %2707 = vmatpush1.msra.mxu0 0.0
  %2708 = vmatprep.subr.mxu0 0.0
  %2709 = vmatpush1.msra.mxu0 0.0
  %2710 = vmatprep.subr.mxu0 0.0
  %2711 = vmatpush1.msra.mxu0 0.0
  %2712 = vmatprep.subr.mxu0 0.0
  %2713 = vmatpush1.msra.mxu0 0.0
  %2714 = vmatprep.subr.mxu0 0.0
  %2715 = vmatpush1.msra.mxu0 0.0
  %2716 = vmatprep.subr.mxu0 0.0
  %2717 = vmatpush1.msra.mxu0 0.0
  %2718 = vmatprep.subr.mxu0 0.0
  %2719 = vmatpush1.msra.mxu0 0.0
  %2720 = vmatprep.mubr.f32.mxu0 0.0
  %2721 = vmatmul.mubr.f32.gmra.mrb[0].mxu0 %v2630
  %v2722 = vpop.f32.mrb[0].mxu0
  %v2723 = vadd.f32 0.0, %v2722
  %v2724 = vpop.f32.mrb[0].mxu0
  %v2725 = vadd.f32 0.0, %v2724
  %2726 = vdwg.mxu0
  %2727 = vmatprep.subr.mxu0 %v2642
  %2728 = vmatpush1.msra.mxu0 %v2639
  %2729 = vmatprep.subr.mxu0 0.0
  %2730 = vmatpush1.msra.mxu0 0.0
  %2731 = vmatprep.subr.mxu0 0.0
  %2732 = vmatpush1.msra.mxu0 0.0
  %2733 = vmatprep.subr.mxu0 0.0
  %2734 = vmatpush1.msra.mxu0 0.0
  %2735 = vmatprep.subr.mxu0 0.0
  %2736 = vmatpush1.msra.mxu0 0.0
  %2737 = vmatprep.subr.mxu0 0.0
  %2738 = vmatpush1.msra.mxu0 0.0
  %2739 = vmatprep.subr.mxu0 0.0
  %2740 = vmatpush1.msra.mxu0 0.0
  %2741 = vmatprep.subr.mxu0 0.0
  %2742 = vmatpush1.msra.mxu0 0.0
  %2743 = vmatprep.subr.mxu0 0.0
  %2744 = vmatpush1.msra.mxu0 0.0
  %2745 = vmatprep.subr.mxu0 0.0
  %2746 = vmatpush1.msra.mxu0 0.0
  %2747 = vmatprep.subr.mxu0 0.0
  %2748 = vmatpush1.msra.mxu0 0.0
  %2749 = vmatprep.subr.mxu0 0.0
  %2750 = vmatpush1.msra.mxu0 0.0
  %2751 = vmatprep.subr.mxu0 0.0
  %2752 = vmatpush1.msra.mxu0 0.0
  %2753 = vmatprep.subr.mxu0 0.0
  %2754 = vmatpush1.msra.mxu0 0.0
  %2755 = vmatprep.subr.mxu0 0.0
  %2756 = vmatpush1.msra.mxu0 0.0
  %2757 = vmatprep.subr.mxu0 0.0
  %2758 = vmatpush1.msra.mxu0 0.0
  %2759 = vmatprep.subr.mxu0 0.0
  %2760 = vmatpush1.msra.mxu0 0.0
  %2761 = vmatprep.subr.mxu0 0.0
  %2762 = vmatpush1.msra.mxu0 0.0
  %2763 = vmatprep.subr.mxu0 0.0
  %2764 = vmatpush1.msra.mxu0 0.0
  %2765 = vmatprep.subr.mxu0 0.0
  %2766 = vmatpush1.msra.mxu0 0.0
  %2767 = vmatprep.subr.mxu0 0.0
  %2768 = vmatpush1.msra.mxu0 0.0
  %2769 = vmatprep.subr.mxu0 0.0
  %2770 = vmatpush1.msra.mxu0 0.0
  %2771 = vmatprep.subr.mxu0 0.0
  %2772 = vmatpush1.msra.mxu0 0.0
  %2773 = vmatprep.subr.mxu0 0.0
  %2774 = vmatpush1.msra.mxu0 0.0
  %2775 = vmatprep.subr.mxu0 0.0
  %2776 = vmatpush1.msra.mxu0 0.0
  %2777 = vmatprep.subr.mxu0 0.0
  %2778 = vmatpush1.msra.mxu0 0.0
  %2779 = vmatprep.subr.mxu0 0.0
  %2780 = vmatpush1.msra.mxu0 0.0
  %2781 = vmatprep.subr.mxu0 0.0
  %2782 = vmatpush1.msra.mxu0 0.0
  %2783 = vmatprep.subr.mxu0 0.0
  %2784 = vmatpush1.msra.mxu0 0.0
  %2785 = vmatprep.subr.mxu0 0.0
  %2786 = vmatpush1.msra.mxu0 0.0
  %2787 = vmatprep.subr.mxu0 0.0
  %2788 = vmatpush1.msra.mxu0 0.0
  %2789 = vmatprep.subr.mxu0 0.0
  %2790 = vmatpush1.msra.mxu0 0.0
  %2791 = vmatprep.mubr.f32.mxu0 0.0
  %2792 = vmatmul.mubr.f32.gmra.mrb[0].mxu0 %v2630
  %v2793 = vpop.f32.mrb[0].mxu0
  %v2794 = vadd.f32 0.0, %v2793
  %v2795 = vpop.f32.mrb[0].mxu0
  %v2796 = vadd.f32 0.0, %v2795
  %2797 = vdwg.mxu0
  %2798 = vmatprep.subr.mxu0 %v2648
  %2799 = vmatpush1.msra.mxu0 %v2645
  %2800 = vmatprep.subr.mxu0 0.0
  %2801 = vmatpush1.msra.mxu0 0.0
  %2802 = vmatprep.subr.mxu0 0.0
  %2803 = vmatpush1.msra.mxu0 0.0
  %2804 = vmatprep.subr.mxu0 0.0
  %2805 = vmatpush1.msra.mxu0 0.0
  %2806 = vmatprep.subr.mxu0 0.0
  %2807 = vmatpush1.msra.mxu0 0.0
  %2808 = vmatprep.subr.mxu0 0.0
  %2809 = vmatpush1.msra.mxu0 0.0
  %2810 = vmatprep.subr.mxu0 0.0
  %2811 = vmatpush1.msra.mxu0 0.0
  %2812 = vmatprep.subr.mxu0 0.0
  %2813 = vmatpush1.msra.mxu0 0.0
  %2814 = vmatprep.subr.mxu0 0.0
  %2815 = vmatpush1.msra.mxu0 0.0
  %2816 = vmatprep.subr.mxu0 0.0
  %2817 = vmatpush1.msra.mxu0 0.0
  %2818 = vmatprep.subr.mxu0 0.0
  %2819 = vmatpush1.msra.mxu0 0.0
  %2820 = vmatprep.subr.mxu0 0.0
  %2821 = vmatpush1.msra.mxu0 0.0
  %2822 = vmatprep.subr.mxu0 0.0
  %2823 = vmatpush1.msra.mxu0 0.0
  %2824 = vmatprep.subr.mxu0 0.0
  %2825 = vmatpush1.msra.mxu0 0.0
  %2826 = vmatprep.subr.mxu0 0.0
  %2827 = vmatpush1.msra.mxu0 0.0
  %2828 = vmatprep.subr.mxu0 0.0
  %2829 = vmatpush1.msra.mxu0 0.0
  %2830 = vmatprep.subr.mxu0 0.0
  %2831 = vmatpush1.msra.mxu0 0.0
  %2832 = vmatprep.subr.mxu0 0.0
  %2833 = vmatpush1.msra.mxu0 0.0
  %2834 = vmatprep.subr.mxu0 0.0
  %2835 = vmatpush1.msra.mxu0 0.0
  %2836 = vmatprep.subr.mxu0 0.0
  %2837 = vmatpush1.msra.mxu0 0.0
  %2838 = vmatprep.subr.mxu0 0.0
  %2839 = vmatpush1.msra.mxu0 0.0
  %2840 = vmatprep.subr.mxu0 0.0
  %2841 = vmatpush1.msra.mxu0 0.0
  %2842 = vmatprep.subr.mxu0 0.0
  %2843 = vmatpush1.msra.mxu0 0.0
  %2844 = vmatprep.subr.mxu0 0.0
  %2845 = vmatpush1.msra.mxu0 0.0
  %2846 = vmatprep.subr.mxu0 0.0
  %2847 = vmatpush1.msra.mxu0 0.0
  %2848 = vmatprep.subr.mxu0 0.0
  %2849 = vmatpush1.msra.mxu0 0.0
  %2850 = vmatprep.subr.mxu0 0.0
  %2851 = vmatpush1.msra.mxu0 0.0
  %2852 = vmatprep.subr.mxu0 0.0
  %2853 = vmatpush1.msra.mxu0 0.0
  %2854 = vmatprep.subr.mxu0 0.0
  %2855 = vmatpush1.msra.mxu0 0.0
  %2856 = vmatprep.subr.mxu0 0.0
  %2857 = vmatpush1.msra.mxu0 0.0
  %2858 = vmatprep.subr.mxu0 0.0
  %2859 = vmatpush1.msra.mxu0 0.0
  %2860 = vmatprep.subr.mxu0 0.0
  %2861 = vmatpush1.msra.mxu0 0.0
  %2862 = vmatprep.mubr.f32.mxu0 0.0
  %2863 = vmatmul.mubr.f32.gmra.mrb[0].mxu0 %v2630
  %v2864 = vpop.f32.mrb[0].mxu0
  %v2865 = vadd.f32 0.0, %v2864
  %v2866 = vpop.f32.mrb[0].mxu0
  %v2867 = vadd.f32 0.0, %v2866
  %2868 = vdwg.mxu0
  %2869 = vmatprep.subr.mxu0 %v2654
  %2870 = vmatpush1.msra.mxu0 %v2651
  %2871 = vmatprep.subr.mxu0 0.0
  %2872 = vmatpush1.msra.mxu0 0.0
  %2873 = vmatprep.subr.mxu0 0.0
  %2874 = vmatpush1.msra.mxu0 0.0
  %2875 = vmatprep.subr.mxu0 0.0
  %2876 = vmatpush1.msra.mxu0 0.0
  %2877 = vmatprep.subr.mxu0 0.0
  %2878 = vmatpush1.msra.mxu0 0.0
  %2879 = vmatprep.subr.mxu0 0.0
  %2880 = vmatpush1.msra.mxu0 0.0
  %2881 = vmatprep.subr.mxu0 0.0
  %2882 = vmatpush1.msra.mxu0 0.0
  %2883 = vmatprep.subr.mxu0 0.0
  %2884 = vmatpush1.msra.mxu0 0.0
  %2885 = vmatprep.subr.mxu0 0.0
  %2886 = vmatpush1.msra.mxu0 0.0
  %2887 = vmatprep.subr.mxu0 0.0
  %2888 = vmatpush1.msra.mxu0 0.0
  %2889 = vmatprep.subr.mxu0 0.0
  %2890 = vmatpush1.msra.mxu0 0.0
  %2891 = vmatprep.subr.mxu0 0.0
  %2892 = vmatpush1.msra.mxu0 0.0
  %2893 = vmatprep.subr.mxu0 0.0
  %2894 = vmatpush1.msra.mxu0 0.0
  %2895 = vmatprep.subr.mxu0 0.0
  %2896 = vmatpush1.msra.mxu0 0.0
  %2897 = vmatprep.subr.mxu0 0.0
  %2898 = vmatpush1.msra.mxu0 0.0
  %2899 = vmatprep.subr.mxu0 0.0
  %2900 = vmatpush1.msra.mxu0 0.0
  %2901 = vmatprep.subr.mxu0 0.0
  %2902 = vmatpush1.msra.mxu0 0.0
  %2903 = vmatprep.subr.mxu0 0.0
  %2904 = vmatpush1.msra.mxu0 0.0
  %2905 = vmatprep.subr.mxu0 0.0
  %2906 = vmatpush1.msra.mxu0 0.0
  %2907 = vmatprep.subr.mxu0 0.0
  %2908 = vmatpush1.msra.mxu0 0.0
  %2909 = vmatprep.subr.mxu0 0.0
  %2910 = vmatpush1.msra.mxu0 0.0
  %2911 = vmatprep.subr.mxu0 0.0
  %2912 = vmatpush1.msra.mxu0 0.0
  %2913 = vmatprep.subr.mxu0 0.0
  %2914 = vmatpush1.msra.mxu0 0.0
  %2915 = vmatprep.subr.mxu0 0.0
  %2916 = vmatpush1.msra.mxu0 0.0
  %2917 = vmatprep.subr.mxu0 0.0
  %2918 = vmatpush1.msra.mxu0 0.0
  %2919 = vmatprep.subr.mxu0 0.0
  %2920 = vmatpush1.msra.mxu0 0.0
  %2921 = vmatprep.subr.mxu0 0.0
  %2922 = vmatpush1.msra.mxu0 0.0
  %2923 = vmatprep.subr.mxu0 0.0
  %2924 = vmatpush1.msra.mxu0 0.0
  %2925 = vmatprep.subr.mxu0 0.0
  %2926 = vmatpush1.msra.mxu0 0.0
  %2927 = vmatprep.subr.mxu0 0.0
  %2928 = vmatpush1.msra.mxu0 0.0
  %2929 = vmatprep.subr.mxu0 0.0
  %2930 = vmatpush1.msra.mxu0 0.0
  %2931 = vmatprep.subr.mxu0 0.0
  %2932 = vmatpush1.msra.mxu0 0.0
  %2933 = vmatprep.mubr.f32.mxu0 0.0
  %2934 = vmatmul.mubr.f32.gmra.mrb[0].mxu0 %v2630
  %v2935 = vpop.f32.mrb[0].mxu0
  %v2936 = vadd.f32 0.0, %v2935
  %v2937 = vpop.f32.mrb[0].mxu0
  %v2938 = vadd.f32 0.0, %v2937
  %2939 = vdwg.mxu0
  %v2940 = vld [vmem:[%s7] sm:$0xff]
  %v2941 = vld [vmem:[%s7 + $0x8] sm:$0xff]
  %v2942 = vld [vmem:[%s7 + $0x10] sm:$0xff]
  %v2943 = vld [vmem:[%s7 + $0x18] sm:$0xff]
  %v2944 = vld [vmem:[%s7 + $0x20] sm:$0xff]
  %v2945 = vld [vmem:[%s7 + $0x28] sm:$0xff]
  %v2946 = vld [vmem:[%s7 + $0x30] sm:$0xff]
  %v2947 = vld [vmem:[%s7 + $0x38] sm:$0xff]
  %v2948 = vld [vmem:[%s7 + $0x40] sm:$0xff]
  %v2949 = vld [vmem:[%s7 + $0x48] sm:$0xff]
  %v2950 = vld [vmem:[%s7 + $0x50] sm:$0xff]
  %v2951 = vld [vmem:[%s7 + $0x58] sm:$0xff]
  %v2952 = vld [vmem:[%s7 + $0x60] sm:$0xff]
  %v2953 = vld [vmem:[%s7 + $0x68] sm:$0xff]
  %v2954 = vld [vmem:[%s7 + $0x70] sm:$0xff]
  %v2955 = vld [vmem:[%s7 + $0x78] sm:$0xff]
  %v2956 = vld [vmem:[%s7 + $0x80] sm:$0xff]
  %v2957 = vld [vmem:[%s7 + $0x88] sm:$0xff]
  %v2958 = vld [vmem:[%s7 + $0x90] sm:$0xff]
  %v2959 = vld [vmem:[%s7 + $0x98] sm:$0xff]
  %v2960 = vld [vmem:[%s7 + $0xa0] sm:$0xff]
  %v2961 = vld [vmem:[%s7 + $0xa8] sm:$0xff]
  %v2962 = vld [vmem:[%s7 + $0xb0] sm:$0xff]
  %v2963 = vld [vmem:[%s7 + $0xb8] sm:$0xff]
  %v2964 = vld [vmem:[%s7 + $0xc0] sm:$0xff]
  %v2965 = vld [vmem:[%s7 + $0xc8] sm:$0xff]
  %v2966 = vld [vmem:[%s7 + $0xd0] sm:$0xff]
  %v2967 = vld [vmem:[%s7 + $0xd8] sm:$0xff]
  %v2968 = vld [vmem:[%s7 + $0xe0] sm:$0xff]
  %v2969 = vld [vmem:[%s7 + $0xe8] sm:$0xff]
  %v2970 = vld [vmem:[%s7 + $0xf0] sm:$0xff]
  %v2971 = vld [vmem:[%s7 + $0xf8] sm:$0xff]
  %v2972 = vld [vmem:[%s7 + $0x100] sm:$0xff]
  %v2973 = vld [vmem:[%s7 + $0x108] sm:$0xff]
  %v2974 = vld [vmem:[%s7 + $0x110] sm:$0xff]
  %v2975 = vld [vmem:[%s7 + $0x118] sm:$0xff]
  %v2976 = vld [vmem:[%s7 + $0x120] sm:$0xff]
  %v2977 = vld [vmem:[%s7 + $0x128] sm:$0xff]
  %v2978 = vld [vmem:[%s7 + $0x130] sm:$0xff]
  %v2979 = vld [vmem:[%s7 + $0x138] sm:$0xff]
  %v2980 = vld [vmem:[%s7 + $0x140] sm:$0xff]
  %v2981 = vld [vmem:[%s7 + $0x148] sm:$0xff]
  %v2982 = vld [vmem:[%s7 + $0x150] sm:$0xff]
  %v2983 = vld [vmem:[%s7 + $0x158] sm:$0xff]
  %v2984 = vld [vmem:[%s7 + $0x160] sm:$0xff]
  %v2985 = vld [vmem:[%s7 + $0x168] sm:$0xff]
  %v2986 = vld [vmem:[%s7 + $0x170] sm:$0xff]
  %v2987 = vld [vmem:[%s7 + $0x178] sm:$0xff]
  %v2988 = vld [vmem:[%s7 + $0x180] sm:$0xff]
  %v2989 = vld [vmem:[%s7 + $0x188] sm:$0xff]
  %v2990 = vld [vmem:[%s7 + $0x190] sm:$0xff]
  %v2991 = vld [vmem:[%s7 + $0x198] sm:$0xff]
  %v2992 = vld [vmem:[%s7 + $0x1a0] sm:$0xff]
  %v2993 = vld [vmem:[%s7 + $0x1a8] sm:$0xff]
  %v2994 = vld [vmem:[%s7 + $0x1b0] sm:$0xff]
  %v2995 = vld [vmem:[%s7 + $0x1b8] sm:$0xff]
  %v2996 = vld [vmem:[%s7 + $0x1c0] sm:$0xff]
  %v2997 = vld [vmem:[%s7 + $0x1c8] sm:$0xff]
  %v2998 = vld [vmem:[%s7 + $0x1d0] sm:$0xff]
  %v2999 = vld [vmem:[%s7 + $0x1d8] sm:$0xff]
  %v3000 = vld [vmem:[%s7 + $0x1e0] sm:$0xff]
  %v3001 = vld [vmem:[%s7 + $0x1e8] sm:$0xff]
  %v3002 = vld [vmem:[%s7 + $0x1f0] sm:$0xff]
  %v3003 = vld [vmem:[%s7 + $0x1f8] sm:$0xff]
  %v3004 = vld [vmem:[%s7 + $0x200] sm:$0xff]
  %v3005 = vld [vmem:[%s7 + $0x208] sm:$0xff]
  %v3006 = vld [vmem:[%s7 + $0x210] sm:$0xff]
  %v3007 = vld [vmem:[%s7 + $0x218] sm:$0xff]
  %v3008 = vld [vmem:[%s7 + $0x220] sm:$0xff]
  %v3009 = vld [vmem:[%s7 + $0x228] sm:$0xff]
  %v3010 = vld [vmem:[%s7 + $0x230] sm:$0xff]
  %v3011 = vld [vmem:[%s7 + $0x238] sm:$0xff]
  %v3012 = vld [vmem:[%s7 + $0x240] sm:$0xff]
  %v3013 = vld [vmem:[%s7 + $0x248] sm:$0xff]
  %v3014 = vld [vmem:[%s7 + $0x250] sm:$0xff]
  %v3015 = vld [vmem:[%s7 + $0x258] sm:$0xff]
  %v3016 = vld [vmem:[%s7 + $0x260] sm:$0xff]
  %v3017 = vld [vmem:[%s7 + $0x268] sm:$0xff]
  %v3018 = vld [vmem:[%s7 + $0x270] sm:$0xff]
  %v3019 = vld [vmem:[%s7 + $0x278] sm:$0xff]
  %v3020 = vld [vmem:[%s7 + $0x280] sm:$0xff]
  %v3021 = vld [vmem:[%s7 + $0x288] sm:$0xff]
  %v3022 = vld [vmem:[%s7 + $0x290] sm:$0xff]
  %v3023 = vld [vmem:[%s7 + $0x298] sm:$0xff]
  %v3024 = vld [vmem:[%s7 + $0x2a0] sm:$0xff]
  %v3025 = vld [vmem:[%s7 + $0x2a8] sm:$0xff]
  %v3026 = vld [vmem:[%s7 + $0x2b0] sm:$0xff]
  %v3027 = vld [vmem:[%s7 + $0x2b8] sm:$0xff]
  %v3028 = vld [vmem:[%s7 + $0x2c0] sm:$0xff]
  %v3029 = vld [vmem:[%s7 + $0x2c8] sm:$0xff]
  %v3030 = vld [vmem:[%s7 + $0x2d0] sm:$0xff]
  %v3031 = vld [vmem:[%s7 + $0x2d8] sm:$0xff]
  %v3032 = vld [vmem:[%s7 + $0x2e0] sm:$0xff]
  %v3033 = vld [vmem:[%s7 + $0x2e8] sm:$0xff]
  %v3034 = vld [vmem:[%s7 + $0x2f0] sm:$0xff]
  %v3035 = vld [vmem:[%s7 + $0x2f8] sm:$0xff]
  %v3036 = vld [vmem:[%s7 + $0x300] sm:$0xff]
  %v3037 = vld [vmem:[%s7 + $0x308] sm:$0xff]
  %v3038 = vld [vmem:[%s7 + $0x310] sm:$0xff]
  %v3039 = vld [vmem:[%s7 + $0x318] sm:$0xff]
  %v3040 = vld [vmem:[%s7 + $0x320] sm:$0xff]
  %v3041 = vld [vmem:[%s7 + $0x328] sm:$0xff]
  %v3042 = vld [vmem:[%s7 + $0x330] sm:$0xff]
  %v3043 = vld [vmem:[%s7 + $0x338] sm:$0xff]
  %v3044 = vld [vmem:[%s7 + $0x340] sm:$0xff]
  %v3045 = vld [vmem:[%s7 + $0x348] sm:$0xff]
  %v3046 = vld [vmem:[%s7 + $0x350] sm:$0xff]
  %v3047 = vld [vmem:[%s7 + $0x358] sm:$0xff]
  %v3048 = vld [vmem:[%s7 + $0x360] sm:$0xff]
  %v3049 = vld [vmem:[%s7 + $0x368] sm:$0xff]
  %v3050 = vld [vmem:[%s7 + $0x370] sm:$0xff]
  %v3051 = vld [vmem:[%s7 + $0x378] sm:$0xff]
  %v3052 = vld [vmem:[%s7 + $0x380] sm:$0xff]
  %v3053 = vld [vmem:[%s7 + $0x388] sm:$0xff]
  %v3054 = vld [vmem:[%s7 + $0x390] sm:$0xff]
  %v3055 = vld [vmem:[%s7 + $0x398] sm:$0xff]
  %v3056 = vld [vmem:[%s7 + $0x3a0] sm:$0xff]
  %v3057 = vld [vmem:[%s7 + $0x3a8] sm:$0xff]
  %v3058 = vld [vmem:[%s7 + $0x3b0] sm:$0xff]
  %v3059 = vld [vmem:[%s7 + $0x3b8] sm:$0xff]
  %v3060 = vld [vmem:[%s7 + $0x3c0] sm:$0xff]
  %v3061 = vld [vmem:[%s7 + $0x3c8] sm:$0xff]
  %v3062 = vld [vmem:[%s7 + $0x3d0] sm:$0xff]
  %v3063 = vld [vmem:[%s7 + $0x3d8] sm:$0xff]
  %v3064 = vld [vmem:[%s7 + $0x3e0] sm:$0xff]
  %v3065 = vld [vmem:[%s7 + $0x3e8] sm:$0xff]
  %v3066 = vld [vmem:[%s7 + $0x3f0] sm:$0xff]
  %v3067 = vld [vmem:[%s7 + $0x3f8] sm:$0xff]
  %v3068 = vld [vmem:[#allocation2] sm:$0x1]
  %v3070 = vlaneseq
  %v3071 = vshrl.u32 %v3070, 7
  %v3072 = vsub.s32 0, %v3071
  %v3073 = vrot.slane %v3068, %v3072
  %3075 = vmatprep.subr.mxu0 0.0
  %3076 = vmatpush1.msra.mxu0 %v2940
  %3077 = vmatprep.subr.mxu0 0.0
  %3078 = vmatpush1.msra.mxu0 %v2941
  %3079 = vmatprep.subr.mxu0 0.0
  %3080 = vmatpush1.msra.mxu0 %v2942
  %3081 = vmatprep.subr.mxu0 0.0
  %3082 = vmatpush1.msra.mxu0 %v2943
  %3083 = vmatprep.subr.mxu0 0.0
  %3084 = vmatpush1.msra.mxu0 %v2944
  %3085 = vmatprep.subr.mxu0 0.0
  %3086 = vmatpush1.msra.mxu0 %v2945
  %3087 = vmatprep.subr.mxu0 0.0
  %3088 = vmatpush1.msra.mxu0 %v2946
  %3089 = vmatprep.subr.mxu0 0.0
  %3090 = vmatpush1.msra.mxu0 %v2947
  %3091 = vmatprep.subr.mxu0 0.0
  %3092 = vmatpush1.msra.mxu0 %v2948
  %3093 = vmatprep.subr.mxu0 0.0
  %3094 = vmatpush1.msra.mxu0 %v2949
  %3095 = vmatprep.subr.mxu0 0.0
  %3096 = vmatpush1.msra.mxu0 %v2950
  %3097 = vmatprep.subr.mxu0 0.0
  %3098 = vmatpush1.msra.mxu0 %v2951
  %3099 = vmatprep.subr.mxu0 0.0
  %3100 = vmatpush1.msra.mxu0 %v2952
  %3101 = vmatprep.subr.mxu0 0.0
  %3102 = vmatpush1.msra.mxu0 %v2953
  %3103 = vmatprep.subr.mxu0 0.0
  %3104 = vmatpush1.msra.mxu0 %v2954
  %3105 = vmatprep.subr.mxu0 0.0
  %3106 = vmatpush1.msra.mxu0 %v2955
  %3107 = vmatprep.subr.mxu0 0.0
  %3108 = vmatpush1.msra.mxu0 %v2956
  %3109 = vmatprep.subr.mxu0 0.0
  %3110 = vmatpush1.msra.mxu0 %v2957
  %3111 = vmatprep.subr.mxu0 0.0
  %3112 = vmatpush1.msra.mxu0 %v2958
  %3113 = vmatprep.subr.mxu0 0.0
  %3114 = vmatpush1.msra.mxu0 %v2959
  %3115 = vmatprep.subr.mxu0 0.0
  %3116 = vmatpush1.msra.mxu0 %v2960
  %3117 = vmatprep.subr.mxu0 0.0
  %3118 = vmatpush1.msra.mxu0 %v2961
  %3119 = vmatprep.subr.mxu0 0.0
  %3120 = vmatpush1.msra.mxu0 %v2962
  %3121 = vmatprep.subr.mxu0 0.0
  %3122 = vmatpush1.msra.mxu0 %v2963
  %3123 = vmatprep.subr.mxu0 0.0
  %3124 = vmatpush1.msra.mxu0 %v2964
  %3125 = vmatprep.subr.mxu0 0.0
  %3126 = vmatpush1.msra.mxu0 %v2965
  %3127 = vmatprep.subr.mxu0 0.0
  %3128 = vmatpush1.msra.mxu0 %v2966
  %3129 = vmatprep.subr.mxu0 0.0
  %3130 = vmatpush1.msra.mxu0 %v2967
  %3131 = vmatprep.subr.mxu0 0.0
  %3132 = vmatpush1.msra.mxu0 %v2968
  %3133 = vmatprep.subr.mxu0 0.0
  %3134 = vmatpush1.msra.mxu0 %v2969
  %3135 = vmatprep.subr.mxu0 0.0
  %3136 = vmatpush1.msra.mxu0 %v2970
  %3137 = vmatprep.subr.mxu0 0.0
  %3138 = vmatpush1.msra.mxu0 %v2971
  %3139 = vmatprep.mubr.f32.mxu0 %v2725
  %3140 = vmatmul.mubr.f32.gmra.mrb[0].mxu0 %v2723
  %v3141 = vpop.f32.mrb[0].mxu0
  %v3142 = vadd.f32 %v3073, %v3141
  %v3143 = vpop.f32.mrb[0].mxu0
  %3144 = vdwg.mxu0
  %3145 = vmatprep.subr.mxu0 0.0
  %3146 = vmatpush1.msra.mxu0 %v2972
  %3147 = vmatprep.subr.mxu0 0.0
  %3148 = vmatpush1.msra.mxu0 %v2973
  %3149 = vmatprep.subr.mxu0 0.0
  %3150 = vmatpush1.msra.mxu0 %v2974
  %3151 = vmatprep.subr.mxu0 0.0
  %3152 = vmatpush1.msra.mxu0 %v2975
  %3153 = vmatprep.subr.mxu0 0.0
  %3154 = vmatpush1.msra.mxu0 %v2976
  %3155 = vmatprep.subr.mxu0 0.0
  %3156 = vmatpush1.msra.mxu0 %v2977
  %3157 = vmatprep.subr.mxu0 0.0
  %3158 = vmatpush1.msra.mxu0 %v2978
  %3159 = vmatprep.subr.mxu0 0.0
  %3160 = vmatpush1.msra.mxu0 %v2979
  %3161 = vmatprep.subr.mxu0 0.0
  %3162 = vmatpush1.msra.mxu0 %v2980
  %3163 = vmatprep.subr.mxu0 0.0
  %3164 = vmatpush1.msra.mxu0 %v2981
  %3165 = vmatprep.subr.mxu0 0.0
  %3166 = vmatpush1.msra.mxu0 %v2982
  %3167 = vmatprep.subr.mxu0 0.0
  %3168 = vmatpush1.msra.mxu0 %v2983
  %3169 = vmatprep.subr.mxu0 0.0
  %3170 = vmatpush1.msra.mxu0 %v2984
  %3171 = vmatprep.subr.mxu0 0.0
  %3172 = vmatpush1.msra.mxu0 %v2985
  %3173 = vmatprep.subr.mxu0 0.0
  %3174 = vmatpush1.msra.mxu0 %v2986
  %3175 = vmatprep.subr.mxu0 0.0
  %3176 = vmatpush1.msra.mxu0 %v2987
  %3177 = vmatprep.subr.mxu0 0.0
  %3178 = vmatpush1.msra.mxu0 %v2988
  %3179 = vmatprep.subr.mxu0 0.0
  %3180 = vmatpush1.msra.mxu0 %v2989
  %3181 = vmatprep.subr.mxu0 0.0
  %3182 = vmatpush1.msra.mxu0 %v2990
  %3183 = vmatprep.subr.mxu0 0.0
  %3184 = vmatpush1.msra.mxu0 %v2991
  %3185 = vmatprep.subr.mxu0 0.0
  %3186 = vmatpush1.msra.mxu0 %v2992
  %3187 = vmatprep.subr.mxu0 0.0
  %3188 = vmatpush1.msra.mxu0 %v2993
  %3189 = vmatprep.subr.mxu0 0.0
  %3190 = vmatpush1.msra.mxu0 %v2994
  %3191 = vmatprep.subr.mxu0 0.0
  %3192 = vmatpush1.msra.mxu0 %v2995
  %3193 = vmatprep.subr.mxu0 0.0
  %3194 = vmatpush1.msra.mxu0 %v2996
  %3195 = vmatprep.subr.mxu0 0.0
  %3196 = vmatpush1.msra.mxu0 %v2997
  %3197 = vmatprep.subr.mxu0 0.0
  %3198 = vmatpush1.msra.mxu0 %v2998
  %3199 = vmatprep.subr.mxu0 0.0
  %3200 = vmatpush1.msra.mxu0 %v2999
  %3201 = vmatprep.subr.mxu0 0.0
  %3202 = vmatpush1.msra.mxu0 %v3000
  %3203 = vmatprep.subr.mxu0 0.0
  %3204 = vmatpush1.msra.mxu0 %v3001
  %3205 = vmatprep.subr.mxu0 0.0
  %3206 = vmatpush1.msra.mxu0 %v3002
  %3207 = vmatprep.subr.mxu0 0.0
  %3208 = vmatpush1.msra.mxu0 %v3003
  %3209 = vmatprep.mubr.f32.mxu0 %v2796
  %3210 = vmatmul.mubr.f32.gmra.mrb[0].mxu0 %v2794
  %v3211 = vpop.f32.mrb[0].mxu0
  %v3212 = vadd.f32 %v3142, %v3211
  %v3213 = vpop.f32.mrb[0].mxu0
  %3214 = vdwg.mxu0
  %3215 = vmatprep.subr.mxu0 0.0
  %3216 = vmatpush1.msra.mxu0 %v3004
  %3217 = vmatprep.subr.mxu0 0.0
  %3218 = vmatpush1.msra.mxu0 %v3005
  %3219 = vmatprep.subr.mxu0 0.0
  %3220 = vmatpush1.msra.mxu0 %v3006
  %3221 = vmatprep.subr.mxu0 0.0
  %3222 = vmatpush1.msra.mxu0 %v3007
  %3223 = vmatprep.subr.mxu0 0.0
  %3224 = vmatpush1.msra.mxu0 %v3008
  %3225 = vmatprep.subr.mxu0 0.0
  %3226 = vmatpush1.msra.mxu0 %v3009
  %3227 = vmatprep.subr.mxu0 0.0
  %3228 = vmatpush1.msra.mxu0 %v3010
  %3229 = vmatprep.subr.mxu0 0.0
  %3230 = vmatpush1.msra.mxu0 %v3011
  %3231 = vmatprep.subr.mxu0 0.0
  %3232 = vmatpush1.msra.mxu0 %v3012
  %3233 = vmatprep.subr.mxu0 0.0
  %3234 = vmatpush1.msra.mxu0 %v3013
  %3235 = vmatprep.subr.mxu0 0.0
  %3236 = vmatpush1.msra.mxu0 %v3014
  %3237 = vmatprep.subr.mxu0 0.0
  %3238 = vmatpush1.msra.mxu0 %v3015
  %3239 = vmatprep.subr.mxu0 0.0
  %3240 = vmatpush1.msra.mxu0 %v3016
  %3241 = vmatprep.subr.mxu0 0.0
  %3242 = vmatpush1.msra.mxu0 %v3017
  %3243 = vmatprep.subr.mxu0 0.0
  %3244 = vmatpush1.msra.mxu0 %v3018
  %3245 = vmatprep.subr.mxu0 0.0
  %3246 = vmatpush1.msra.mxu0 %v3019
  %3247 = vmatprep.subr.mxu0 0.0
  %3248 = vmatpush1.msra.mxu0 %v3020
  %3249 = vmatprep.subr.mxu0 0.0
  %3250 = vmatpush1.msra.mxu0 %v3021
  %3251 = vmatprep.subr.mxu0 0.0
  %3252 = vmatpush1.msra.mxu0 %v3022
  %3253 = vmatprep.subr.mxu0 0.0
  %3254 = vmatpush1.msra.mxu0 %v3023
  %3255 = vmatprep.subr.mxu0 0.0
  %3256 = vmatpush1.msra.mxu0 %v3024
  %3257 = vmatprep.subr.mxu0 0.0
  %3258 = vmatpush1.msra.mxu0 %v3025
  %3259 = vmatprep.subr.mxu0 0.0
  %3260 = vmatpush1.msra.mxu0 %v3026
  %3261 = vmatprep.subr.mxu0 0.0
  %3262 = vmatpush1.msra.mxu0 %v3027
  %3263 = vmatprep.subr.mxu0 0.0
  %3264 = vmatpush1.msra.mxu0 %v3028
  %3265 = vmatprep.subr.mxu0 0.0
  %3266 = vmatpush1.msra.mxu0 %v3029
  %3267 = vmatprep.subr.mxu0 0.0
  %3268 = vmatpush1.msra.mxu0 %v3030
  %3269 = vmatprep.subr.mxu0 0.0
  %3270 = vmatpush1.msra.mxu0 %v3031
  %3271 = vmatprep.subr.mxu0 0.0
  %3272 = vmatpush1.msra.mxu0 %v3032
  %3273 = vmatprep.subr.mxu0 0.0
  %3274 = vmatpush1.msra.mxu0 %v3033
  %3275 = vmatprep.subr.mxu0 0.0
  %3276 = vmatpush1.msra.mxu0 %v3034
  %3277 = vmatprep.subr.mxu0 0.0
  %3278 = vmatpush1.msra.mxu0 %v3035
  %3279 = vmatprep.mubr.f32.mxu0 %v2867
  %3280 = vmatmul.mubr.f32.gmra.mrb[0].mxu0 %v2865
  %v3281 = vpop.f32.mrb[0].mxu0
  %v3282 = vadd.f32 %v3212, %v3281
  %v3283 = vpop.f32.mrb[0].mxu0
  %3284 = vdwg.mxu0
  %3285 = vmatprep.subr.mxu0 0.0
  %3286 = vmatpush1.msra.mxu0 %v3036
  %3287 = vmatprep.subr.mxu0 0.0
  %3288 = vmatpush1.msra.mxu0 %v3037
  %3289 = vmatprep.subr.mxu0 0.0
  %3290 = vmatpush1.msra.mxu0 %v3038
  %3291 = vmatprep.subr.mxu0 0.0
  %3292 = vmatpush1.msra.mxu0 %v3039
  %3293 = vmatprep.subr.mxu0 0.0
  %3294 = vmatpush1.msra.mxu0 %v3040
  %3295 = vmatprep.subr.mxu0 0.0
  %3296 = vmatpush1.msra.mxu0 %v3041
  %3297 = vmatprep.subr.mxu0 0.0
  %3298 = vmatpush1.msra.mxu0 %v3042
  %3299 = vmatprep.subr.mxu0 0.0
  %3300 = vmatpush1.msra.mxu0 %v3043
  %3301 = vmatprep.subr.mxu0 0.0
  %3302 = vmatpush1.msra.mxu0 %v3044
  %3303 = vmatprep.subr.mxu0 0.0
  %3304 = vmatpush1.msra.mxu0 %v3045
  %3305 = vmatprep.subr.mxu0 0.0
  %3306 = vmatpush1.msra.mxu0 %v3046
  %3307 = vmatprep.subr.mxu0 0.0
  %3308 = vmatpush1.msra.mxu0 %v3047
  %3309 = vmatprep.subr.mxu0 0.0
  %3310 = vmatpush1.msra.mxu0 %v3048
  %3311 = vmatprep.subr.mxu0 0.0
  %3312 = vmatpush1.msra.mxu0 %v3049
  %3313 = vmatprep.subr.mxu0 0.0
  %3314 = vmatpush1.msra.mxu0 %v3050
  %3315 = vmatprep.subr.mxu0 0.0
  %3316 = vmatpush1.msra.mxu0 %v3051
  %3317 = vmatprep.subr.mxu0 0.0
  %3318 = vmatpush1.msra.mxu0 %v3052
  %3319 = vmatprep.subr.mxu0 0.0
  %3320 = vmatpush1.msra.mxu0 %v3053
  %3321 = vmatprep.subr.mxu0 0.0
  %3322 = vmatpush1.msra.mxu0 %v3054
  %3323 = vmatprep.subr.mxu0 0.0
  %3324 = vmatpush1.msra.mxu0 %v3055
  %3325 = vmatprep.subr.mxu0 0.0
  %3326 = vmatpush1.msra.mxu0 %v3056
  %3327 = vmatprep.subr.mxu0 0.0
  %3328 = vmatpush1.msra.mxu0 %v3057
  %3329 = vmatprep.subr.mxu0 0.0
  %3330 = vmatpush1.msra.mxu0 %v3058
  %3331 = vmatprep.subr.mxu0 0.0
  %3332 = vmatpush1.msra.mxu0 %v3059
  %3333 = vmatprep.subr.mxu0 0.0
  %3334 = vmatpush1.msra.mxu0 %v3060
  %3335 = vmatprep.subr.mxu0 0.0
  %3336 = vmatpush1.msra.mxu0 %v3061
  %3337 = vmatprep.subr.mxu0 0.0
  %3338 = vmatpush1.msra.mxu0 %v3062
  %3339 = vmatprep.subr.mxu0 0.0
  %3340 = vmatpush1.msra.mxu0 %v3063
  %3341 = vmatprep.subr.mxu0 0.0
  %3342 = vmatpush1.msra.mxu0 %v3064
  %3343 = vmatprep.subr.mxu0 0.0
  %3344 = vmatpush1.msra.mxu0 %v3065
  %3345 = vmatprep.subr.mxu0 0.0
  %3346 = vmatpush1.msra.mxu0 %v3066
  %3347 = vmatprep.subr.mxu0 0.0
  %3348 = vmatpush1.msra.mxu0 %v3067
  %3349 = vmatprep.mubr.f32.mxu0 %v2938
  %3350 = vmatmul.mubr.f32.gmra.mrb[0].mxu0 %v2936
  %v3351 = vpop.f32.mrb[0].mxu0
  %v3352 = vadd.f32 %v3282, %v3351
  %v3353 = vpop.f32.mrb[0].mxu0
  %3354 = vdwg.mxu0
  %v3355 = vsub.f32 0.0, %v3352
  %v3356 = vmul.f32 %v3355, 1.442695
  %v3357 = vpow.pop %v3356
  %v3358 = vadd.f32 %v3357, 1.0
  %v3359 = vrcp.pop %v3358
  %v3360 = vmul.f32 1.0, %v3359
  %vm3361 = vcmask 1024
  %3362 = vst.msk [vmem:[%s9] sm:$0x3] %vm3361, %v3360
  // Predicated region
  $region38: #{discriminator_forward.9} parent=0 // pred_check
    _
  $region39: #{discriminator_forward.9} parent=0 // pred_check_branch
    %3364 = sbr.rel (0) target = $region41
  $region40: #{discriminator_forward.9} parent=0 // pred_region
    _
  $region41: #{discriminator_forward.9} parent=0 // pred_fallthru
    _
  // Predicated region
  $region42: #{discriminator_forward.9} parent=0 // pred_check
    _
  $region43: #{discriminator_forward.9} parent=0 // pred_check_branch
    %3366 = sbr.rel (0) target = $region45
  $region44: #{discriminator_forward.9} parent=0 // pred_region
    _
  $region45: #{discriminator_forward.9} parent=0 // pred_fallthru
    _

</llo_original>
